<compile_context>
chip_gen: v7x
topology: tpu7x:2x2x1
jax: 0.10.0
libtpu: 0.0.40
codegen_flags: <defaults>
</compile_context>

<pallas_src>
import functools

import jax
import jax.numpy as jnp
from jax import lax
from jax.experimental import pallas as pl
from jax.experimental.pallas import tpu as pltpu


# ----------------------------------------------------------------------------
# Pallas kernel: single-shot matmul tile + per-channel bias + activation.
# Full K and full N per block -> no reduction grid axis, no accumulator.
# ----------------------------------------------------------------------------
def _apply_act(y, act):
    if act == "relu":
        return jnp.maximum(y, 0.0)
    if act == "leaky":
        return jnp.where(y > 0, y, 0.2 * y)
    return y


def _matmul_bias_act_kernel(x_ref, w_ref, b_ref, o_ref, *, act):
    y = jnp.dot(x_ref[...], w_ref[...], preferred_element_type=jnp.float32)
    y = y + b_ref[...]                       # bias add + activation in f32
    o_ref[...] = _apply_act(y, act).astype(o_ref.dtype)


def _pallas_plan(M):
    """Pick an M tile, or None to fall back to XLA.

    Requires >= 2 blocks along M (pipelining + v7x megacore) and a tile that
    divides M exactly so no rows are padded.  Larger tiles first: per-grid-step
    overhead is ~0.35 us and VMEM usage here is tiny (<2 MiB double-buffered).
    """
    if M % 8 != 0:
        return None
    for tm in (2048, 1024):
        if M % tm == 0 and M // tm >= 2:
            return tm
    return None


def fused_matmul_bias_act(x, w, bias, act, out_dtype):
    """act(x @ w + bias[None, :]) with x:(M,K) bf16, w:(K,N) bf16, bias:(N,) f32."""
    M, K = x.shape
    K2, N = w.shape
    assert K == K2
    bias = bias.astype(jnp.float32)

    tm = _pallas_plan(M)
    if tm is None:
        # Small / single-block GEMM: XLA fuses the glue, no custom-call cost.
        y = jnp.dot(x, w, preferred_element_type=jnp.float32) + bias[None, :]
        return _apply_act(y, act).astype(out_dtype)

    kernel = functools.partial(_matmul_bias_act_kernel, act=act)
    bp = bias.reshape(1, N)
    return pl.pallas_call(
        kernel,
        out_shape=jax.ShapeDtypeStruct((M, N), out_dtype),
        grid=(M // tm,),
        in_specs=[
            pl.BlockSpec((tm, K), lambda i: (i, 0)),   # full (unpadded) K
            pl.BlockSpec((K, N), lambda i: (0, 0)),    # full weight, full N
            pl.BlockSpec((1, N), lambda i: (0, 0)),    # per-channel bias
        ],
        out_specs=pl.BlockSpec((tm, N), lambda i: (i, 0)),  # unpadded N writeback
        compiler_params=pltpu.CompilerParams(
            dimension_semantics=("parallel",)),
    )(x, w, bp)


# ----------------------------------------------------------------------------
# JAX glue: NHWC im2col, conv+BN+act layer, parameter init, encoder forward.
# ----------------------------------------------------------------------------
def im2col_nhwc(x, kh, kw, stride, pad):
    """x: (N, H, W, C) -> (N*Ho*Wo, kh*kw*C) with (kh, kw, C)-ordered columns."""
    N, H, W, C = x.shape
    xp = jnp.pad(x, ((0, 0), (pad, pad), (pad, pad), (0, 0)))
    Ho = (H + 2 * pad - kh) // stride + 1
    Wo = (W + 2 * pad - kw) // stride + 1
    cols = []
    for i in range(kh):
        for j in range(kw):
            cols.append(
                xp[:, i:i + stride * Ho:stride, j:j + stride * Wo:stride, :])
    col = jnp.concatenate(cols, axis=-1)          # (N, Ho, Wo, kh*kw*C)
    return col.reshape(N * Ho * Wo, kh * kw * C), Ho, Wo


def conv_bn_act_nhwc(x, weight, scale, bias, stride, pad, act, out_dtype):
    """x: (N,H,W,Cin) NHWC bf16; weight: (Cout,Cin,kh,kw) OIHW f32. Returns NHWC."""
    Cout, Cin, kh, kw = weight.shape
    Nb = x.shape[0]
    col, Ho, Wo = im2col_nhwc(x, kh, kw, stride, pad)
    # (kh, kw, Cin, Cout) row order matches the im2col column order.
    wmat = weight.transpose(2, 3, 1, 0).reshape(kh * kw * Cin, Cout)
    wmat = (wmat * scale[None, :]).astype(jnp.bfloat16)   # fold BN scale, bf16 MXU
    out = fused_matmul_bias_act(col, wmat, bias, act, out_dtype)
    return out.reshape(Nb, Ho, Wo, Cout)


def init_encoder_params(key, nc, nz, base_channels):
    """Same layer structure as Encoder_D.__init__ (channel ladder x1,2,4,8,16)."""
    chans = [nc, base_channels, base_channels * 2, base_channels * 4,
             base_channels * 8, base_channels * 16]
    params = []
    for li in range(5):
        key, k1, k2, k3, k4, k5 = jax.random.split(key, 6)
        cin, cout = chans[li], chans[li + 1]
        params.append(dict(
            w=0.05 * jax.random.normal(k1, (cout, cin, 4, 4), jnp.float32),
            gamma=1.0 + 0.1 * jax.random.normal(k2, (cout,), jnp.float32),
            beta=0.1 * jax.random.normal(k3, (cout,), jnp.float32),
            rm=0.1 * jax.random.normal(k4, (cout,), jnp.float32),
            rv=1.0 + 0.1 * jax.random.uniform(k5, (cout,), jnp.float32),
        ))
    key, kf = jax.random.split(key)
    w_final = 0.05 * jax.random.normal(kf, (nz, chans[5], 4, 4), jnp.float32)
    return params, w_final


_ACTS = ["relu", "leaky", "leaky", "leaky", "leaky"]  # initial0 ReLU, pyramids LeakyReLU(0.2)


def encoder_d_forward(x_nchw, params, w_final, eps=1e-5):
    """Pallas-backed forward: 5 x (conv4x4 s2 p1 + BN + act) + final conv4x4 s1 p0."""
    x = x_nchw.transpose(0, 2, 3, 1).astype(jnp.bfloat16)   # NCHW -> NHWC, bf16 once
    for p, act in zip(params, _ACTS):
        scale = p["gamma"] / jnp.sqrt(p["rv"] + eps)
        bias = p["beta"] - p["rm"] * scale
        x = conv_bn_act_nhwc(x, p["w"], scale, bias, stride=2, pad=1, act=act,
                             out_dtype=jnp.bfloat16)        # bf16 between layers
    nz = w_final.shape[0]
    x = conv_bn_act_nhwc(x, w_final,
                         jnp.ones((nz,), jnp.float32),
                         jnp.zeros((nz,), jnp.float32),
                         stride=1, pad=0, act="none", out_dtype=jnp.float32)
    return x.transpose(0, 3, 1, 2)                           # NCHW (N, nz, 1, 1)


# Pure-JAX reference (f32 lax conv, NCHW) for correctness checking.
def encoder_d_reference(x, params, w_final, eps=1e-5):
    def conv(x, w, stride, pad):
        return lax.conv_general_dilated(
            x, w, (stride, stride), [(pad, pad), (pad, pad)],
            dimension_numbers=("NCHW", "OIHW", "NCHW"))

    for p, act in zip(params, _ACTS):
        y = conv(x, p["w"], 2, 1)
        scale = (p["gamma"] / jnp.sqrt(p["rv"] + eps))[None, :, None, None]
        bias = (p["beta"] - p["rm"] * p["gamma"] / jnp.sqrt(p["rv"] + eps))[None, :, None, None]
        y = y * scale + bias
        x = jnp.maximum(y, 0.0) if act == "relu" else jnp.where(y > 0, y, 0.2 * y)
    return conv(x, w_final, 1, 0)


if __name__ == "__main__":
    # imageSize=128 is the smallest size this module supports (128 / 2^5 = 4 ->
    # final 4x4 conv gives 1x1).  Channels scaled down (base_channels=8, nz=16).
    batch, nc, image_size = 2, 3, 128
    nz, base_channels = 16, 8

    key = jax.random.PRNGKey(0)
    key, kx = jax.random.split(key)
    x = jax.random.normal(kx, (batch, nc, image_size, image_size), jnp.float32)
    params, w_final = init_encoder_params(key, nc, nz, base_channels)

    fwd = jax.jit(encoder_d_forward)
    out = jax.block_until_ready(fwd(x, params, w_final))
    assert out.shape == (batch, nz, 1, 1), out.shape

    ref = jax.block_until_ready(jax.jit(encoder_d_reference)(x, params, w_final))
    max_err = float(jnp.max(jnp.abs(out - ref)))
    # bf16 activations + bf16 MXU operands over 6 stacked layers -> loosened
    # tolerance vs the f32 reference.
    assert jnp.allclose(out, ref, rtol=7.5e-2, atol=7.5e-2), max_err

    print("KERNEL_OK")
</pallas_src>

<mosaic_0001>
module attributes {stable_mosaic.version = 11 : i64} {
  func.func @_matmul_bias_act_kernel(%arg0: i32, %arg1: memref<2048x48xbf16, #tpu.memory_space<vmem>>, %arg2: memref<48x8xbf16, #tpu.memory_space<vmem>>, %arg3: memref<1x8xf32, #tpu.memory_space<vmem>>, %arg4: memref<2048x8xbf16, #tpu.memory_space<vmem>>) attributes {dimension_semantics = [#tpu.dimension_semantics<parallel>], iteration_bounds = array<i64: 4>, scalar_prefetch = 0 : i64, scratch_operands = 0 : i64, tpu.core_type = #tpu.core_type<tc>, window_params = [{transform_indices = @transform_0, window_bounds = array<i64: 2048, 48>}, {pipeline_mode = #tpu.pipeline_mode<synchronous>, transform_indices = @transform_1, window_bounds = array<i64: 48, 8>}, {pipeline_mode = #tpu.pipeline_mode<synchronous>, transform_indices = @transform_2, window_bounds = array<i64: 1, 8>}, {transform_indices = @transform_3, window_bounds = array<i64: 2048, 8>}]} {
    %c0 = arith.constant 0 : index
    %c0_0 = arith.constant 0 : index
    %0 = vector.load %arg1[%c0, %c0_0] : memref<2048x48xbf16, #tpu.memory_space<vmem>>, vector<2048x48xbf16>
    %c0_1 = arith.constant 0 : index
    %c0_2 = arith.constant 0 : index
    %1 = vector.load %arg2[%c0_1, %c0_2] : memref<48x8xbf16, #tpu.memory_space<vmem>>, vector<48x8xbf16>
    %cst = arith.constant dense<0.000000e+00> : vector<2048x8xf32>
    %2 = tpu.matmul %0, %1, %cst {dimension_numbers = #tpu.dot_dimension_numbers<[1], [0], [0], [1], [0, 0, 1, 1], [], []>} : vector<2048x48xbf16>, vector<48x8xbf16>, vector<2048x8xf32> -> vector<2048x8xf32>
    %c0_3 = arith.constant 0 : index
    %c0_4 = arith.constant 0 : index
    %3 = vector.load %arg3[%c0_3, %c0_4] : memref<1x8xf32, #tpu.memory_space<vmem>>, vector<1x8xf32>
    %4 = vector.broadcast %3 : vector<1x8xf32> to vector<2048x8xf32>
    %5 = arith.addf %2, %4 : vector<2048x8xf32>
    %cst_5 = arith.constant 0.000000e+00 : f32
    %6 = vector.broadcast %cst_5 : f32 to vector<2048x8xf32>
    %7 = arith.maximumf %5, %6 : vector<2048x8xf32>
    %8 = arith.truncf %7 : vector<2048x8xf32> to vector<2048x8xbf16>
    %c0_6 = arith.constant 0 : index
    %c0_7 = arith.constant 0 : index
    %9 = vector.load %arg4[%c0_6, %c0_7] : memref<2048x8xbf16, #tpu.memory_space<vmem>>, vector<2048x8xbf16>
    tpu.vector_store %arg4[%c0_6, %c0_7], %8 {strides = array<i32>} : memref<2048x8xbf16, #tpu.memory_space<vmem>>, vector<2048x8xbf16>,
    return
  }
  func.func @transform_0(%arg0: i32) -> (i32, i32) {
    %c0_i32 = arith.constant 0 : i32
    %c0_i32_0 = arith.constant 0 : i32
    return %arg0, %c0_i32 : i32, i32
  }
  func.func @transform_1(%arg0: i32) -> (i32, i32) {
    %c0_i32 = arith.constant 0 : i32
    %c0_i32_0 = arith.constant 0 : i32
    %c0_i32_1 = arith.constant 0 : i32
    return %c0_i32, %c0_i32_0 : i32, i32
  }
  func.func @transform_2(%arg0: i32) -> (i32, i32) {
    %c0_i32 = arith.constant 0 : i32
    %c0_i32_0 = arith.constant 0 : i32
    %c0_i32_1 = arith.constant 0 : i32
    return %c0_i32, %c0_i32_0 : i32, i32
  }
  func.func @transform_3(%arg0: i32) -> (i32, i32) {
    %c0_i32 = arith.constant 0 : i32
    %c0_i32_0 = arith.constant 0 : i32
    return %arg0, %c0_i32 : i32, i32
  }
}

module attributes {stable_mosaic.version = 11 : i64} {
  func.func @_matmul_bias_act_kernel(%arg0: i32, %arg1: memref<1024x128xbf16, #tpu.memory_space<vmem>>, %arg2: memref<128x16xbf16, #tpu.memory_space<vmem>>, %arg3: memref<1x16xf32, #tpu.memory_space<vmem>>, %arg4: memref<1024x16xbf16, #tpu.memory_space<vmem>>) attributes {dimension_semantics = [#tpu.dimension_semantics<parallel>], iteration_bounds = array<i64: 2>, scalar_prefetch = 0 : i64, scratch_operands = 0 : i64, tpu.core_type = #tpu.core_type<tc>, window_params = [{transform_indices = @transform_0, window_bounds = array<i64: 1024, 128>}, {pipeline_mode = #tpu.pipeline_mode<synchronous>, transform_indices = @transform_1, window_bounds = array<i64: 128, 16>}, {pipeline_mode = #tpu.pipeline_mode<synchronous>, transform_indices = @transform_2, window_bounds = array<i64: 1, 16>}, {transform_indices = @transform_3, window_bounds = array<i64: 1024, 16>}]} {
    %c0 = arith.constant 0 : index
    %c0_0 = arith.constant 0 : index
    %0 = vector.load %arg1[%c0, %c0_0] : memref<1024x128xbf16, #tpu.memory_space<vmem>>, vector<1024x128xbf16>
    %c0_1 = arith.constant 0 : index
    %c0_2 = arith.constant 0 : index
    %1 = vector.load %arg2[%c0_1, %c0_2] : memref<128x16xbf16, #tpu.memory_space<vmem>>, vector<128x16xbf16>
    %cst = arith.constant dense<0.000000e+00> : vector<1024x16xf32>
    %2 = tpu.matmul %0, %1, %cst {dimension_numbers = #tpu.dot_dimension_numbers<[1], [0], [0], [1], [0, 0, 1, 1], [], []>} : vector<1024x128xbf16>, vector<128x16xbf16>, vector<1024x16xf32> -> vector<1024x16xf32>
    %c0_3 = arith.constant 0 : index
    %c0_4 = arith.constant 0 : index
    %3 = vector.load %arg3[%c0_3, %c0_4] : memref<1x16xf32, #tpu.memory_space<vmem>>, vector<1x16xf32>
    %4 = vector.broadcast %3 : vector<1x16xf32> to vector<1024x16xf32>
    %5 = arith.addf %2, %4 : vector<1024x16xf32>
    %cst_5 = arith.constant 0.000000e+00 : f32
    %6 = vector.broadcast %cst_5 : f32 to vector<1024x16xf32>
    %7 = arith.cmpf ogt, %5, %6 : vector<1024x16xf32>
    %cst_6 = arith.constant 2.000000e-01 : f32
    %8 = vector.broadcast %cst_6 : f32 to vector<1024x16xf32>
    %9 = arith.mulf %8, %5 : vector<1024x16xf32>
    %10 = arith.select %7, %5, %9 : vector<1024x16xi1>, vector<1024x16xf32>
    %11 = arith.truncf %10 : vector<1024x16xf32> to vector<1024x16xbf16>
    %c0_7 = arith.constant 0 : index
    %c0_8 = arith.constant 0 : index
    %12 = vector.load %arg4[%c0_7, %c0_8] : memref<1024x16xbf16, #tpu.memory_space<vmem>>, vector<1024x16xbf16>
    tpu.vector_store %arg4[%c0_7, %c0_8], %11 {strides = array<i32>} : memref<1024x16xbf16, #tpu.memory_space<vmem>>, vector<1024x16xbf16>,
    return
  }
  func.func @transform_0(%arg0: i32) -> (i32, i32) {
    %c0_i32 = arith.constant 0 : i32
    %c0_i32_0 = arith.constant 0 : i32
    return %arg0, %c0_i32 : i32, i32
  }
  func.func @transform_1(%arg0: i32) -> (i32, i32) {
    %c0_i32 = arith.constant 0 : i32
    %c0_i32_0 = arith.constant 0 : i32
    %c0_i32_1 = arith.constant 0 : i32
    return %c0_i32, %c0_i32_0 : i32, i32
  }
  func.func @transform_2(%arg0: i32) -> (i32, i32) {
    %c0_i32 = arith.constant 0 : i32
    %c0_i32_0 = arith.constant 0 : i32
    %c0_i32_1 = arith.constant 0 : i32
    return %c0_i32, %c0_i32_0 : i32, i32
  }
  func.func @transform_3(%arg0: i32) -> (i32, i32) {
    %c0_i32 = arith.constant 0 : i32
    %c0_i32_0 = arith.constant 0 : i32
    return %arg0, %c0_i32 : i32, i32
  }
}

</mosaic_0001>

<llo_original>
// kernel: encoder_d_forward.2
$region0: #{encoder_d_forward.2}
  #allocation0 [shape = 'u32[]', space=smem, size = 0x4, offset = 0x4, fixed_abs, tag = 'smem constant byte address 0x4 - core index']
  #allocation1 [shape = 'u32[144,128]{1,0:T(1,128)}', space=vmem, size = 0x12000, scoped, tag = 'internal scratch']
  %s0 = inlined_call_operand.vmem [shape: bf16[8192,48], index: 0, kind: input, shape index: {}]
  %s1 = inlined_call_operand.vmem [shape: bf16[48,8], index: 1, kind: input, shape index: {}]
  %s2 = inlined_call_operand.vmem [shape: f32[1,8], index: 2, kind: input, shape index: {}]
  %s3 = inlined_call_operand.vmem [shape: bf16[8192,8], index: 3, kind: output, shape index: {}]
  %s4 = sld [smem:[#allocation0]]
  $region45: #{encoder_d_forward.2} parent=0
    _
  %s6 = ssub.s32 1, %s4
  %s7 = scalar_select 0, %s6, %s4
  loop: start=0, step=1, limit=6
  $region2: #{encoder_d_forward.2} parent=0 // loop_pre_header
    _
  $region3: #{encoder_d_forward.2} parent=0 // loop_header
    %s9 = sphi 0, %s13
    %p10 = scmp.ge.s32.totalorder %s9, 6
    %s19 = sphi 0, %s21
    %s22 = sphi 0, %s19
    %s23 = sphi 0, %s22
    %s39 = sphi 0, %s23
    %s43 = sphi 0, %s43
    %s45 = sphi 0, %s43
    %s46 = sphi 0, %s45
    %s60 = sphi 0, %s46
    %s64 = sphi 0, %s64
    %s66 = sphi 0, %s64
    %s67 = sphi 0, %s66
    %s81 = sphi 0, %s67
    %s87 = sphi 0, %s89
    %s90 = sphi 0, %s87
    %s91 = sphi 0, %s90
    %s107 = sphi 0, %s91
  $region4: #{encoder_d_forward.2} parent=0 // loop_header_branch
    %12 = sbr.rel (%p10) target = $region8
  $region5: #{encoder_d_forward.2} parent=0 // loop_body
    %s14 = ssub.s32 %s9, 1
    %s15 = ssub.s32 %s9, 2
    %s16 = sadd.s32 %s9, 1
    %s17 = ssub.s32 %s9, %s16
    %p18 = scmp.eq.s32.totalorder %s17, 0
    %s20 = sadd.s32 %s19, 1
    %s21 = scalar_select %p18, %s19, %s20
    %p24 = pneg %p18
    %p25 = scmp.eq.s32.totalorder %s9, 3
    %p26 = por %p24, %p25
    %p27 = scmp.ne.s32.totalorder %s19, %s22
    %p28 = scmp.eq.s32.totalorder %s9, 0
    %p29 = por %p27, %p28
    %p30 = scmp.ne.s32.totalorder %s19, %s22
    %p31 = scmp.eq.s32.totalorder %s14, 3
    %p32 = por %p30, %p31
    %p33 = scmp.ne.s32.totalorder %s22, %s23
    %p34 = scmp.eq.s32.totalorder %s14, 0
    %p35 = por %p33, %p34
    %p36 = scmp.ne.s32.totalorder %s22, %s23
    %p37 = scmp.eq.s32.totalorder %s15, 3
    %p38 = por %p36, %p37
    %p40 = scmp.ne.s32.totalorder %s23, %s39
    %p41 = scmp.eq.s32.totalorder %s15, 0
    %p42 = por %p40, %p41
    %s44 = sadd.s32 %s43, 1
    %p47 = scmp.eq.s32.totalorder %s9, 3
    %p48 = scmp.ne.s32.totalorder %s43, %s45
    %p49 = scmp.eq.s32.totalorder %s9, 0
    %p50 = por %p48, %p49
    %p51 = scmp.ne.s32.totalorder %s43, %s45
    %p52 = scmp.eq.s32.totalorder %s14, 3
    %p53 = por %p51, %p52
    %p54 = scmp.ne.s32.totalorder %s45, %s46
    %p55 = scmp.eq.s32.totalorder %s14, 0
    %p56 = por %p54, %p55
    %p57 = scmp.ne.s32.totalorder %s45, %s46
    %p58 = scmp.eq.s32.totalorder %s15, 3
    %p59 = por %p57, %p58
    %p61 = scmp.ne.s32.totalorder %s46, %s60
    %p62 = scmp.eq.s32.totalorder %s15, 0
    %p63 = por %p61, %p62
    %s65 = sadd.s32 %s64, 1
    %p68 = scmp.eq.s32.totalorder %s9, 3
    %p69 = scmp.ne.s32.totalorder %s64, %s66
    %p70 = scmp.eq.s32.totalorder %s9, 0
    %p71 = por %p69, %p70
    %p72 = scmp.ne.s32.totalorder %s64, %s66
    %p73 = scmp.eq.s32.totalorder %s14, 3
    %p74 = por %p72, %p73
    %p75 = scmp.ne.s32.totalorder %s66, %s67
    %p76 = scmp.eq.s32.totalorder %s14, 0
    %p77 = por %p75, %p76
    %p78 = scmp.ne.s32.totalorder %s66, %s67
    %p79 = scmp.eq.s32.totalorder %s15, 3
    %p80 = por %p78, %p79
    %p82 = scmp.ne.s32.totalorder %s67, %s81
    %p83 = scmp.eq.s32.totalorder %s15, 0
    %p84 = por %p82, %p83
    %s85 = ssub.s32 %s9, %s16
    %p86 = scmp.eq.s32.totalorder %s85, 0
    %s88 = sadd.s32 %s87, 1
    %s89 = scalar_select %p86, %s87, %s88
    %p92 = pneg %p86
    %p93 = scmp.eq.s32.totalorder %s9, 3
    %p94 = por %p92, %p93
    %p95 = scmp.ne.s32.totalorder %s87, %s90
    %p96 = scmp.eq.s32.totalorder %s9, 0
    %p97 = por %p95, %p96
    %p98 = scmp.ne.s32.totalorder %s87, %s90
    %p99 = scmp.eq.s32.totalorder %s14, 3
    %p100 = por %p98, %p99
    %p101 = scmp.ne.s32.totalorder %s90, %s91
    %p102 = scmp.eq.s32.totalorder %s14, 0
    %p103 = por %p101, %p102
    %p104 = scmp.ne.s32.totalorder %s90, %s91
    %p105 = scmp.eq.s32.totalorder %s15, 3
    %p106 = por %p104, %p105
    %p108 = scmp.ne.s32.totalorder %s91, %s107
    %p109 = scmp.eq.s32.totalorder %s15, 0
    %p110 = por %p108, %p109
    %p111 = scmp.le.s32.totalorder 1, %s9
    %p112 = scmp.lt.s32.totalorder %s9, 5
    %p113 = pnand %p111, %p112
    %p114 = pneg %p113
    // Predicated region
    $region9: #{encoder_d_forward.2} parent=5 // pred_check
      _
    $region10: #{encoder_d_forward.2} parent=5 // pred_check_branch
      %116 = sbr.rel (%p113) target = $region12
    $region11: #{encoder_d_forward.2} parent=5 // pred_region
      %s117 = ssub.s32 %s9, 1
      // Predicated region
      $region13: #{encoder_d_forward.2} parent=11 // pred_check
        %p118 = pneg %p56
      $region14: #{encoder_d_forward.2} parent=11 // pred_check_branch
        %120 = sbr.rel (%p118) target = $region16
      $region15: #{encoder_d_forward.2} parent=11 // pred_region
        _
      $region16: #{encoder_d_forward.2} parent=11 // pred_fallthru
        _
      // Predicated region
      $region17: #{encoder_d_forward.2} parent=11 // pred_check
        %p121 = pneg %p77
      $region18: #{encoder_d_forward.2} parent=11 // pred_check_branch
        %123 = sbr.rel (%p121) target = $region20
      $region19: #{encoder_d_forward.2} parent=11 // pred_region
        _
      $region20: #{encoder_d_forward.2} parent=11 // pred_fallthru
        _
    $region12: #{encoder_d_forward.2} parent=5 // pred_fallthru
      _
    %p124 = scmp.lt.s32.totalorder %s9, 4
    // Predicated region
    $region21: #{encoder_d_forward.2} parent=5 // pred_check
      %p125 = pneg %p124
    $region22: #{encoder_d_forward.2} parent=5 // pred_check_branch
      %127 = sbr.rel (%p125) target = $region24
    $region23: #{encoder_d_forward.2} parent=5 // pred_region
      // Predicated region
      $region25: #{encoder_d_forward.2} parent=23 // pred_check
        %p128 = pneg %p29
      $region26: #{encoder_d_forward.2} parent=23 // pred_check_branch
        %130 = sbr.rel (%p128) target = $region28
      $region27: #{encoder_d_forward.2} parent=23 // pred_region
        %s131 = smul.u32 256, %s9
        %p132 = scmp.lt.s32.totalorder %s131, 1023
        %s133 = scalar_select %p132, %s131, 1023
        %s134 = smul.addr %s133, 4
        %s135 = scalar_lea.vmem %s0, %s134
        %s136 = smul.u32 256, %s9
      $region28: #{encoder_d_forward.2} parent=23 // pred_fallthru
        _
    $region24: #{encoder_d_forward.2} parent=5 // pred_fallthru
      _
    %p137 = scmp.le.s32.totalorder 1, %s9
    %p138 = scmp.lt.s32.totalorder %s9, 5
    %p139 = pnand %p137, %p138
    %p140 = pneg %p139
    // Predicated region
    $region29: #{encoder_d_forward.2} parent=5 // pred_check
      _
    $region30: #{encoder_d_forward.2} parent=5 // pred_check_branch
      %142 = sbr.rel (%p139) target = $region32
    $region31: #{encoder_d_forward.2} parent=5 // pred_region
      %s143 = ssub.s32 %s9, 1
      %s144 = smul.u32 256, %s14
      %p145 = scmp.lt.s32.totalorder %s144, 1023
      %s146 = scalar_select %p145, %s144, 1023
      %s147 = smul.addr %s146, 4
      %s148 = scalar_lea.vmem %s0, %s147
      %p149 = pneg %p35
      %p150 = pneg %p32
      %p151 = pneg %p56
      %p152 = pneg %p53
      %p153 = pneg %p77
      %p154 = pneg %p74
      %p155 = pneg %p103
      %p156 = pneg %p100
      %s157 = smul.u32 256, %s14
      %p158 = scmp.lt.s32.totalorder %s157, 1023
      %s159 = scalar_select %p158, %s157, 1023
      %s160 = smul.addr %s159, 4
      %s161 = scalar_lea.vmem %s3, %s160
      %s162 = smul.u32 256, %s14
      %p163 = scmp.lt.s32.totalorder %s162, 1023
      %s164 = scalar_select %p163, %s162, 1023
      %s165 = smul.addr %s164, 4
      %s166 = scalar_lea.vmem %s0, %s165
      %s167 = smul.u32 256, %s14
      %s168 = smul.u32 256, %s14
      %p169 = scmp.lt.s32.totalorder %s168, 1023
      %s170 = scalar_select %p169, %s168, 1023
      %s171 = smul.addr %s170, 4
      %s172 = scalar_lea.vmem %s3, %s171
      %s173 = smul.u32 256, %s14
      %v175 = vld [vmem:[%s166] sm:$0xf]
      %v176 = vld [vmem:[%s166 + $0x4] sm:$0xf]
      %v177 = vld [vmem:[%s166 + $0x8] sm:$0xf]
      %v178 = vld [vmem:[%s166 + $0xc] sm:$0xf]
      %v179 = vld [vmem:[%s166 + $0x10] sm:$0xf]
      %v180 = vld [vmem:[%s166 + $0x14] sm:$0xf]
      %v181 = vld [vmem:[%s166 + $0x18] sm:$0xf]
      %v182 = vld [vmem:[%s166 + $0x1c] sm:$0xf]
      %v183 = vld [vmem:[%s166 + $0x20] sm:$0xf]
      %v184 = vld [vmem:[%s166 + $0x24] sm:$0xf]
      %v185 = vld [vmem:[%s166 + $0x28] sm:$0xf]
      %v186 = vld [vmem:[%s166 + $0x2c] sm:$0xf]
      %v187 = vld [vmem:[%s166 + $0x30] sm:$0xf]
      %v188 = vld [vmem:[%s166 + $0x34] sm:$0xf]
      %v189 = vld [vmem:[%s166 + $0x38] sm:$0xf]
      %v190 = vld [vmem:[%s166 + $0x3c] sm:$0xf]
      %v191 = vld [vmem:[%s166 + $0x40] sm:$0xf]
      %v192 = vld [vmem:[%s166 + $0x44] sm:$0xf]
      %v193 = vld [vmem:[%s166 + $0x48] sm:$0xf]
      %v194 = vld [vmem:[%s166 + $0x4c] sm:$0xf]
      %v195 = vld [vmem:[%s166 + $0x50] sm:$0xf]
      %v196 = vld [vmem:[%s166 + $0x54] sm:$0xf]
      %v197 = vld [vmem:[%s166 + $0x58] sm:$0xf]
      %v198 = vld [vmem:[%s166 + $0x5c] sm:$0xf]
      %v199 = vld [vmem:[%s166 + $0x60] sm:$0xf]
      %v200 = vld [vmem:[%s166 + $0x64] sm:$0xf]
      %v201 = vld [vmem:[%s166 + $0x68] sm:$0xf]
      %v202 = vld [vmem:[%s166 + $0x6c] sm:$0xf]
      %v203 = vld [vmem:[%s166 + $0x70] sm:$0xf]
      %v204 = vld [vmem:[%s166 + $0x74] sm:$0xf]
      %v205 = vld [vmem:[%s166 + $0x78] sm:$0xf]
      %v206 = vld [vmem:[%s166 + $0x7c] sm:$0xf]
      %v207 = vld [vmem:[%s166 + $0x80] sm:$0xf]
      %v208 = vld [vmem:[%s166 + $0x84] sm:$0xf]
      %v209 = vld [vmem:[%s166 + $0x88] sm:$0xf]
      %v210 = vld [vmem:[%s166 + $0x8c] sm:$0xf]
      %v211 = vld [vmem:[%s166 + $0x90] sm:$0xf]
      %v212 = vld [vmem:[%s166 + $0x94] sm:$0xf]
      %v213 = vld [vmem:[%s166 + $0x98] sm:$0xf]
      %v214 = vld [vmem:[%s166 + $0x9c] sm:$0xf]
      %v215 = vld [vmem:[%s166 + $0xa0] sm:$0xf]
      %v216 = vld [vmem:[%s166 + $0xa4] sm:$0xf]
      %v217 = vld [vmem:[%s166 + $0xa8] sm:$0xf]
      %v218 = vld [vmem:[%s166 + $0xac] sm:$0xf]
      %v219 = vld [vmem:[%s166 + $0xb0] sm:$0xf]
      %v220 = vld [vmem:[%s166 + $0xb4] sm:$0xf]
      %v221 = vld [vmem:[%s166 + $0xb8] sm:$0xf]
      %v222 = vld [vmem:[%s166 + $0xbc] sm:$0xf]
      %v223 = vld [vmem:[%s166 + $0xc0] sm:$0xf]
      %v224 = vld [vmem:[%s166 + $0xc4] sm:$0xf]
      %v225 = vld [vmem:[%s166 + $0xc8] sm:$0xf]
      %v226 = vld [vmem:[%s166 + $0xcc] sm:$0xf]
      %v227 = vld [vmem:[%s166 + $0xd0] sm:$0xf]
      %v228 = vld [vmem:[%s166 + $0xd4] sm:$0xf]
      %v229 = vld [vmem:[%s166 + $0xd8] sm:$0xf]
      %v230 = vld [vmem:[%s166 + $0xdc] sm:$0xf]
      %v231 = vld [vmem:[%s166 + $0xe0] sm:$0xf]
      %v232 = vld [vmem:[%s166 + $0xe4] sm:$0xf]
      %v233 = vld [vmem:[%s166 + $0xe8] sm:$0xf]
      %v234 = vld [vmem:[%s166 + $0xec] sm:$0xf]
      %v235 = vld [vmem:[%s166 + $0xf0] sm:$0xf]
      %v236 = vld [vmem:[%s166 + $0xf4] sm:$0xf]
      %v237 = vld [vmem:[%s166 + $0xf8] sm:$0xf]
      %v238 = vld [vmem:[%s166 + $0xfc] sm:$0xf]
      %v239 = vld [vmem:[%s166 + $0x100] sm:$0xf]
      %v240 = vld [vmem:[%s166 + $0x104] sm:$0xf]
      %v241 = vld [vmem:[%s166 + $0x108] sm:$0xf]
      %v242 = vld [vmem:[%s166 + $0x10c] sm:$0xf]
      %v243 = vld [vmem:[%s166 + $0x110] sm:$0xf]
      %v244 = vld [vmem:[%s166 + $0x114] sm:$0xf]
      %v245 = vld [vmem:[%s166 + $0x118] sm:$0xf]
      %v246 = vld [vmem:[%s166 + $0x11c] sm:$0xf]
      %v247 = vld [vmem:[%s166 + $0x120] sm:$0xf]
      %v248 = vld [vmem:[%s166 + $0x124] sm:$0xf]
      %v249 = vld [vmem:[%s166 + $0x128] sm:$0xf]
      %v250 = vld [vmem:[%s166 + $0x12c] sm:$0xf]
      %v251 = vld [vmem:[%s166 + $0x130] sm:$0xf]
      %v252 = vld [vmem:[%s166 + $0x134] sm:$0xf]
      %v253 = vld [vmem:[%s166 + $0x138] sm:$0xf]
      %v254 = vld [vmem:[%s166 + $0x13c] sm:$0xf]
      %v255 = vld [vmem:[%s166 + $0x140] sm:$0xf]
      %v256 = vld [vmem:[%s166 + $0x144] sm:$0xf]
      %v257 = vld [vmem:[%s166 + $0x148] sm:$0xf]
      %v258 = vld [vmem:[%s166 + $0x14c] sm:$0xf]
      %v259 = vld [vmem:[%s166 + $0x150] sm:$0xf]
      %v260 = vld [vmem:[%s166 + $0x154] sm:$0xf]
      %v261 = vld [vmem:[%s166 + $0x158] sm:$0xf]
      %v262 = vld [vmem:[%s166 + $0x15c] sm:$0xf]
      %v263 = vld [vmem:[%s166 + $0x160] sm:$0xf]
      %v264 = vld [vmem:[%s166 + $0x164] sm:$0xf]
      %v265 = vld [vmem:[%s166 + $0x168] sm:$0xf]
      %v266 = vld [vmem:[%s166 + $0x16c] sm:$0xf]
      %v267 = vld [vmem:[%s166 + $0x170] sm:$0xf]
      %v268 = vld [vmem:[%s166 + $0x174] sm:$0xf]
      %v269 = vld [vmem:[%s166 + $0x178] sm:$0xf]
      %v270 = vld [vmem:[%s166 + $0x17c] sm:$0xf]
      %v271 = vld [vmem:[%s166 + $0x180] sm:$0xf]
      %v272 = vld [vmem:[%s166 + $0x184] sm:$0xf]
      %v273 = vld [vmem:[%s166 + $0x188] sm:$0xf]
      %v274 = vld [vmem:[%s166 + $0x18c] sm:$0xf]
      %v275 = vld [vmem:[%s166 + $0x190] sm:$0xf]
      %v276 = vld [vmem:[%s166 + $0x194] sm:$0xf]
      %v277 = vld [vmem:[%s166 + $0x198] sm:$0xf]
      %v278 = vld [vmem:[%s166 + $0x19c] sm:$0xf]
      %v279 = vld [vmem:[%s166 + $0x1a0] sm:$0xf]
      %v280 = vld [vmem:[%s166 + $0x1a4] sm:$0xf]
      %v281 = vld [vmem:[%s166 + $0x1a8] sm:$0xf]
      %v282 = vld [vmem:[%s166 + $0x1ac] sm:$0xf]
      %v283 = vld [vmem:[%s166 + $0x1b0] sm:$0xf]
      %v284 = vld [vmem:[%s166 + $0x1b4] sm:$0xf]
      %v285 = vld [vmem:[%s166 + $0x1b8] sm:$0xf]
      %v286 = vld [vmem:[%s166 + $0x1bc] sm:$0xf]
      %v287 = vld [vmem:[%s166 + $0x1c0] sm:$0xf]
      %v288 = vld [vmem:[%s166 + $0x1c4] sm:$0xf]
      %v289 = vld [vmem:[%s166 + $0x1c8] sm:$0xf]
      %v290 = vld [vmem:[%s166 + $0x1cc] sm:$0xf]
      %v291 = vld [vmem:[%s166 + $0x1d0] sm:$0xf]
      %v292 = vld [vmem:[%s166 + $0x1d4] sm:$0xf]
      %v293 = vld [vmem:[%s166 + $0x1d8] sm:$0xf]
      %v294 = vld [vmem:[%s166 + $0x1dc] sm:$0xf]
      %v295 = vld [vmem:[%s166 + $0x1e0] sm:$0xf]
      %v296 = vld [vmem:[%s166 + $0x1e4] sm:$0xf]
      %v297 = vld [vmem:[%s166 + $0x1e8] sm:$0xf]
      %v298 = vld [vmem:[%s166 + $0x1ec] sm:$0xf]
      %v299 = vld [vmem:[%s166 + $0x1f0] sm:$0xf]
      %v300 = vld [vmem:[%s166 + $0x1f4] sm:$0xf]
      %v301 = vld [vmem:[%s166 + $0x1f8] sm:$0xf]
      %v302 = vld [vmem:[%s166 + $0x1fc] sm:$0xf]
      %v303 = vld [vmem:[%s166 + $0x200] sm:$0xf]
      %v304 = vld [vmem:[%s166 + $0x204] sm:$0xf]
      %v305 = vld [vmem:[%s166 + $0x208] sm:$0xf]
      %v306 = vld [vmem:[%s166 + $0x20c] sm:$0xf]
      %v307 = vld [vmem:[%s166 + $0x210] sm:$0xf]
      %v308 = vld [vmem:[%s166 + $0x214] sm:$0xf]
      %v309 = vld [vmem:[%s166 + $0x218] sm:$0xf]
      %v310 = vld [vmem:[%s166 + $0x21c] sm:$0xf]
      %v311 = vld [vmem:[%s166 + $0x220] sm:$0xf]
      %v312 = vld [vmem:[%s166 + $0x224] sm:$0xf]
      %v313 = vld [vmem:[%s166 + $0x228] sm:$0xf]
      %v314 = vld [vmem:[%s166 + $0x22c] sm:$0xf]
      %v315 = vld [vmem:[%s166 + $0x230] sm:$0xf]
      %v316 = vld [vmem:[%s166 + $0x234] sm:$0xf]
      %v317 = vld [vmem:[%s166 + $0x238] sm:$0xf]
      %v318 = vld [vmem:[%s166 + $0x23c] sm:$0xf]
      %v319 = vld [vmem:[%s166 + $0x240] sm:$0xf]
      %v320 = vld [vmem:[%s166 + $0x244] sm:$0xf]
      %v321 = vld [vmem:[%s166 + $0x248] sm:$0xf]
      %v322 = vld [vmem:[%s166 + $0x24c] sm:$0xf]
      %v323 = vld [vmem:[%s166 + $0x250] sm:$0xf]
      %v324 = vld [vmem:[%s166 + $0x254] sm:$0xf]
      %v325 = vld [vmem:[%s166 + $0x258] sm:$0xf]
      %v326 = vld [vmem:[%s166 + $0x25c] sm:$0xf]
      %v327 = vld [vmem:[%s166 + $0x260] sm:$0xf]
      %v328 = vld [vmem:[%s166 + $0x264] sm:$0xf]
      %v329 = vld [vmem:[%s166 + $0x268] sm:$0xf]
      %v330 = vld [vmem:[%s166 + $0x26c] sm:$0xf]
      %v331 = vld [vmem:[%s166 + $0x270] sm:$0xf]
      %v332 = vld [vmem:[%s166 + $0x274] sm:$0xf]
      %v333 = vld [vmem:[%s166 + $0x278] sm:$0xf]
      %v334 = vld [vmem:[%s166 + $0x27c] sm:$0xf]
      %v335 = vld [vmem:[%s166 + $0x280] sm:$0xf]
      %v336 = vld [vmem:[%s166 + $0x284] sm:$0xf]
      %v337 = vld [vmem:[%s166 + $0x288] sm:$0xf]
      %v338 = vld [vmem:[%s166 + $0x28c] sm:$0xf]
      %v339 = vld [vmem:[%s166 + $0x290] sm:$0xf]
      %v340 = vld [vmem:[%s166 + $0x294] sm:$0xf]
      %v341 = vld [vmem:[%s166 + $0x298] sm:$0xf]
      %v342 = vld [vmem:[%s166 + $0x29c] sm:$0xf]
      %v343 = vld [vmem:[%s166 + $0x2a0] sm:$0xf]
      %v344 = vld [vmem:[%s166 + $0x2a4] sm:$0xf]
      %v345 = vld [vmem:[%s166 + $0x2a8] sm:$0xf]
      %v346 = vld [vmem:[%s166 + $0x2ac] sm:$0xf]
      %v347 = vld [vmem:[%s166 + $0x2b0] sm:$0xf]
      %v348 = vld [vmem:[%s166 + $0x2b4] sm:$0xf]
      %v349 = vld [vmem:[%s166 + $0x2b8] sm:$0xf]
      %v350 = vld [vmem:[%s166 + $0x2bc] sm:$0xf]
      %v351 = vld [vmem:[%s166 + $0x2c0] sm:$0xf]
      %v352 = vld [vmem:[%s166 + $0x2c4] sm:$0xf]
      %v353 = vld [vmem:[%s166 + $0x2c8] sm:$0xf]
      %v354 = vld [vmem:[%s166 + $0x2cc] sm:$0xf]
      %v355 = vld [vmem:[%s166 + $0x2d0] sm:$0xf]
      %v356 = vld [vmem:[%s166 + $0x2d4] sm:$0xf]
      %v357 = vld [vmem:[%s166 + $0x2d8] sm:$0xf]
      %v358 = vld [vmem:[%s166 + $0x2dc] sm:$0xf]
      %v359 = vld [vmem:[%s166 + $0x2e0] sm:$0xf]
      %v360 = vld [vmem:[%s166 + $0x2e4] sm:$0xf]
      %v361 = vld [vmem:[%s166 + $0x2e8] sm:$0xf]
      %v362 = vld [vmem:[%s166 + $0x2ec] sm:$0xf]
      %v363 = vld [vmem:[%s166 + $0x2f0] sm:$0xf]
      %v364 = vld [vmem:[%s166 + $0x2f4] sm:$0xf]
      %v365 = vld [vmem:[%s166 + $0x2f8] sm:$0xf]
      %v366 = vld [vmem:[%s166 + $0x2fc] sm:$0xf]
      %v367 = vld [vmem:[%s166 + $0x300] sm:$0xf]
      %v368 = vld [vmem:[%s166 + $0x304] sm:$0xf]
      %v369 = vld [vmem:[%s166 + $0x308] sm:$0xf]
      %v370 = vld [vmem:[%s166 + $0x30c] sm:$0xf]
      %v371 = vld [vmem:[%s166 + $0x310] sm:$0xf]
      %v372 = vld [vmem:[%s166 + $0x314] sm:$0xf]
      %v373 = vld [vmem:[%s166 + $0x318] sm:$0xf]
      %v374 = vld [vmem:[%s166 + $0x31c] sm:$0xf]
      %v375 = vld [vmem:[%s166 + $0x320] sm:$0xf]
      %v376 = vld [vmem:[%s166 + $0x324] sm:$0xf]
      %v377 = vld [vmem:[%s166 + $0x328] sm:$0xf]
      %v378 = vld [vmem:[%s166 + $0x32c] sm:$0xf]
      %v379 = vld [vmem:[%s166 + $0x330] sm:$0xf]
      %v380 = vld [vmem:[%s166 + $0x334] sm:$0xf]
      %v381 = vld [vmem:[%s166 + $0x338] sm:$0xf]
      %v382 = vld [vmem:[%s166 + $0x33c] sm:$0xf]
      %v383 = vld [vmem:[%s166 + $0x340] sm:$0xf]
      %v384 = vld [vmem:[%s166 + $0x344] sm:$0xf]
      %v385 = vld [vmem:[%s166 + $0x348] sm:$0xf]
      %v386 = vld [vmem:[%s166 + $0x34c] sm:$0xf]
      %v387 = vld [vmem:[%s166 + $0x350] sm:$0xf]
      %v388 = vld [vmem:[%s166 + $0x354] sm:$0xf]
      %v389 = vld [vmem:[%s166 + $0x358] sm:$0xf]
      %v390 = vld [vmem:[%s166 + $0x35c] sm:$0xf]
      %v391 = vld [vmem:[%s166 + $0x360] sm:$0xf]
      %v392 = vld [vmem:[%s166 + $0x364] sm:$0xf]
      %v393 = vld [vmem:[%s166 + $0x368] sm:$0xf]
      %v394 = vld [vmem:[%s166 + $0x36c] sm:$0xf]
      %v395 = vld [vmem:[%s166 + $0x370] sm:$0xf]
      %v396 = vld [vmem:[%s166 + $0x374] sm:$0xf]
      %v397 = vld [vmem:[%s166 + $0x378] sm:$0xf]
      %v398 = vld [vmem:[%s166 + $0x37c] sm:$0xf]
      %v399 = vld [vmem:[%s166 + $0x380] sm:$0xf]
      %v400 = vld [vmem:[%s166 + $0x384] sm:$0xf]
      %v401 = vld [vmem:[%s166 + $0x388] sm:$0xf]
      %v402 = vld [vmem:[%s166 + $0x38c] sm:$0xf]
      %v403 = vld [vmem:[%s166 + $0x390] sm:$0xf]
      %v404 = vld [vmem:[%s166 + $0x394] sm:$0xf]
      %v405 = vld [vmem:[%s166 + $0x398] sm:$0xf]
      %v406 = vld [vmem:[%s166 + $0x39c] sm:$0xf]
      %v407 = vld [vmem:[%s166 + $0x3a0] sm:$0xf]
      %v408 = vld [vmem:[%s166 + $0x3a4] sm:$0xf]
      %v409 = vld [vmem:[%s166 + $0x3a8] sm:$0xf]
      %v410 = vld [vmem:[%s166 + $0x3ac] sm:$0xf]
      %v411 = vld [vmem:[%s166 + $0x3b0] sm:$0xf]
      %v412 = vld [vmem:[%s166 + $0x3b4] sm:$0xf]
      %v413 = vld [vmem:[%s166 + $0x3b8] sm:$0xf]
      %v414 = vld [vmem:[%s166 + $0x3bc] sm:$0xf]
      %v415 = vld [vmem:[%s166 + $0x3c0] sm:$0xf]
      %v416 = vld [vmem:[%s166 + $0x3c4] sm:$0xf]
      %v417 = vld [vmem:[%s166 + $0x3c8] sm:$0xf]
      %v418 = vld [vmem:[%s166 + $0x3cc] sm:$0xf]
      %v419 = vld [vmem:[%s166 + $0x3d0] sm:$0xf]
      %v420 = vld [vmem:[%s166 + $0x3d4] sm:$0xf]
      %v421 = vld [vmem:[%s166 + $0x3d8] sm:$0xf]
      %v422 = vld [vmem:[%s166 + $0x3dc] sm:$0xf]
      %v423 = vld [vmem:[%s166 + $0x3e0] sm:$0xf]
      %v424 = vld [vmem:[%s166 + $0x3e4] sm:$0xf]
      %v425 = vld [vmem:[%s166 + $0x3e8] sm:$0xf]
      %v426 = vld [vmem:[%s166 + $0x3ec] sm:$0xf]
      %v427 = vld [vmem:[%s166 + $0x3f0] sm:$0xf]
      %v428 = vld [vmem:[%s166 + $0x3f4] sm:$0xf]
      %v429 = vld [vmem:[%s166 + $0x3f8] sm:$0xf]
      %v430 = vld [vmem:[%s166 + $0x3fc] sm:$0xf]
      %v431 = vld [vmem:[%s1] sm:$0xf]
      %v432 = vld [vmem:[%s1 + $0x4] sm:$0xf]
      %v433 = vld [vmem:[%s1 + $0x8] sm:$0xf]
      %v434 = vld [vmem:[%s1 + $0xc] sm:$0xf]
      %v435 = vld [vmem:[%s1 + $0x10] sm:$0xf]
      %v436 = vld [vmem:[%s1 + $0x14] sm:$0xf]
      %v437 = vld [vmem:[%s2] sm:$0x1]
      %v439 = vlaneseq
      %v440 = vshrl.u32 %v439, 7
      %v441 = vsub.s32 0, %v440
      %v442 = vrot.slane %v437, %v441
      %v700 = vunpack.c.l.b16 %v175
      %v701 = vunpack.c.l.b16 %v176
      %v702 = vunpack.c.l.b16 %v177
      %v703 = vunpack.c.l.b16 %v178
      %v704 = vunpack.c.l.b16 %v179
      %v705 = vunpack.c.l.b16 %v180
      %v706 = vunpack.c.l.b16 %v181
      %v707 = vunpack.c.l.b16 %v182
      %v708 = vunpack.c.l.b16 %v183
      %v709 = vunpack.c.l.b16 %v184
      %v710 = vunpack.c.l.b16 %v185
      %v711 = vunpack.c.l.b16 %v186
      %v712 = vunpack.c.l.b16 %v187
      %v713 = vunpack.c.l.b16 %v188
      %v714 = vunpack.c.l.b16 %v189
      %v715 = vunpack.c.l.b16 %v190
      %v716 = vunpack.c.l.b16 %v191
      %v717 = vunpack.c.l.b16 %v192
      %v718 = vunpack.c.l.b16 %v193
      %v719 = vunpack.c.l.b16 %v194
      %v720 = vunpack.c.l.b16 %v195
      %v721 = vunpack.c.l.b16 %v196
      %v722 = vunpack.c.l.b16 %v197
      %v723 = vunpack.c.l.b16 %v198
      %v724 = vunpack.c.l.b16 %v199
      %v725 = vunpack.c.l.b16 %v200
      %v726 = vunpack.c.l.b16 %v201
      %v727 = vunpack.c.l.b16 %v202
      %v728 = vunpack.c.l.b16 %v203
      %v729 = vunpack.c.l.b16 %v204
      %v730 = vunpack.c.l.b16 %v205
      %v731 = vunpack.c.l.b16 %v206
      %v732 = vunpack.c.l.b16 %v207
      %v733 = vunpack.c.l.b16 %v208
      %v734 = vunpack.c.l.b16 %v209
      %v735 = vunpack.c.l.b16 %v210
      %v736 = vunpack.c.l.b16 %v211
      %v737 = vunpack.c.l.b16 %v212
      %v738 = vunpack.c.l.b16 %v213
      %v739 = vunpack.c.l.b16 %v214
      %v740 = vunpack.c.l.b16 %v215
      %v741 = vunpack.c.l.b16 %v216
      %v742 = vunpack.c.l.b16 %v217
      %v743 = vunpack.c.l.b16 %v218
      %v744 = vunpack.c.l.b16 %v219
      %v745 = vunpack.c.l.b16 %v220
      %v746 = vunpack.c.l.b16 %v221
      %v747 = vunpack.c.l.b16 %v222
      %v748 = vunpack.c.l.b16 %v223
      %v749 = vunpack.c.l.b16 %v224
      %v750 = vunpack.c.l.b16 %v225
      %v751 = vunpack.c.l.b16 %v226
      %v752 = vunpack.c.l.b16 %v227
      %v753 = vunpack.c.l.b16 %v228
      %v754 = vunpack.c.l.b16 %v229
      %v755 = vunpack.c.l.b16 %v230
      %v756 = vunpack.c.l.b16 %v231
      %v757 = vunpack.c.l.b16 %v232
      %v758 = vunpack.c.l.b16 %v233
      %v759 = vunpack.c.l.b16 %v234
      %v760 = vunpack.c.l.b16 %v235
      %v761 = vunpack.c.l.b16 %v236
      %v762 = vunpack.c.l.b16 %v237
      %v763 = vunpack.c.l.b16 %v238
      %v764 = vunpack.c.l.b16 %v239
      %v765 = vunpack.c.l.b16 %v240
      %v766 = vunpack.c.l.b16 %v241
      %v767 = vunpack.c.l.b16 %v242
      %v768 = vunpack.c.l.b16 %v243
      %v769 = vunpack.c.l.b16 %v244
      %v770 = vunpack.c.l.b16 %v245
      %v771 = vunpack.c.l.b16 %v246
      %v772 = vunpack.c.l.b16 %v247
      %v773 = vunpack.c.l.b16 %v248
      %v774 = vunpack.c.l.b16 %v249
      %v775 = vunpack.c.l.b16 %v250
      %v776 = vunpack.c.l.b16 %v251
      %v777 = vunpack.c.l.b16 %v252
      %v778 = vunpack.c.l.b16 %v253
      %v779 = vunpack.c.l.b16 %v254
      %v780 = vunpack.c.l.b16 %v255
      %v781 = vunpack.c.l.b16 %v256
      %v782 = vunpack.c.l.b16 %v257
      %v783 = vunpack.c.l.b16 %v258
      %v784 = vunpack.c.l.b16 %v259
      %v785 = vunpack.c.l.b16 %v260
      %v786 = vunpack.c.l.b16 %v261
      %v787 = vunpack.c.l.b16 %v262
      %v788 = vunpack.c.l.b16 %v263
      %v789 = vunpack.c.l.b16 %v264
      %v790 = vunpack.c.l.b16 %v265
      %v791 = vunpack.c.l.b16 %v266
      %v792 = vunpack.c.l.b16 %v267
      %v793 = vunpack.c.l.b16 %v268
      %v794 = vunpack.c.l.b16 %v269
      %v795 = vunpack.c.l.b16 %v270
      %v796 = vunpack.c.l.b16 %v271
      %v797 = vunpack.c.l.b16 %v272
      %v798 = vunpack.c.l.b16 %v273
      %v799 = vunpack.c.l.b16 %v274
      %v800 = vunpack.c.l.b16 %v275
      %v801 = vunpack.c.l.b16 %v276
      %v802 = vunpack.c.l.b16 %v277
      %v803 = vunpack.c.l.b16 %v278
      %v804 = vunpack.c.l.b16 %v279
      %v805 = vunpack.c.l.b16 %v280
      %v806 = vunpack.c.l.b16 %v281
      %v807 = vunpack.c.l.b16 %v282
      %v808 = vunpack.c.l.b16 %v283
      %v809 = vunpack.c.l.b16 %v284
      %v810 = vunpack.c.l.b16 %v285
      %v811 = vunpack.c.l.b16 %v286
      %v812 = vunpack.c.l.b16 %v287
      %v813 = vunpack.c.l.b16 %v288
      %v814 = vunpack.c.l.b16 %v289
      %v815 = vunpack.c.l.b16 %v290
      %v816 = vunpack.c.l.b16 %v291
      %v817 = vunpack.c.l.b16 %v292
      %v818 = vunpack.c.l.b16 %v293
      %v819 = vunpack.c.l.b16 %v294
      %v820 = vunpack.c.l.b16 %v295
      %v821 = vunpack.c.l.b16 %v296
      %v822 = vunpack.c.l.b16 %v297
      %v823 = vunpack.c.l.b16 %v298
      %v824 = vunpack.c.l.b16 %v299
      %v825 = vunpack.c.l.b16 %v300
      %v826 = vunpack.c.l.b16 %v301
      %v827 = vunpack.c.l.b16 %v302
      %v828 = vunpack.c.l.b16 %v303
      %v829 = vunpack.c.l.b16 %v304
      %v830 = vunpack.c.l.b16 %v305
      %v831 = vunpack.c.l.b16 %v306
      %v832 = vunpack.c.l.b16 %v307
      %v833 = vunpack.c.l.b16 %v308
      %v834 = vunpack.c.l.b16 %v309
      %v835 = vunpack.c.l.b16 %v310
      %v836 = vunpack.c.l.b16 %v311
      %v837 = vunpack.c.l.b16 %v312
      %v838 = vunpack.c.l.b16 %v313
      %v839 = vunpack.c.l.b16 %v314
      %v840 = vunpack.c.l.b16 %v315
      %v841 = vunpack.c.l.b16 %v316
      %v842 = vunpack.c.l.b16 %v317
      %v843 = vunpack.c.l.b16 %v318
      %v844 = vunpack.c.l.b16 %v319
      %v845 = vunpack.c.l.b16 %v320
      %v846 = vunpack.c.l.b16 %v321
      %v847 = vunpack.c.l.b16 %v322
      %v848 = vunpack.c.l.b16 %v323
      %v849 = vunpack.c.l.b16 %v324
      %v850 = vunpack.c.l.b16 %v325
      %v851 = vunpack.c.l.b16 %v326
      %v852 = vunpack.c.l.b16 %v327
      %v853 = vunpack.c.l.b16 %v328
      %v854 = vunpack.c.l.b16 %v329
      %v855 = vunpack.c.l.b16 %v330
      %v856 = vunpack.c.l.b16 %v331
      %v857 = vunpack.c.l.b16 %v332
      %v858 = vunpack.c.l.b16 %v333
      %v859 = vunpack.c.l.b16 %v334
      %v860 = vunpack.c.l.b16 %v335
      %v861 = vunpack.c.l.b16 %v336
      %v862 = vunpack.c.l.b16 %v337
      %v863 = vunpack.c.l.b16 %v338
      %v864 = vunpack.c.l.b16 %v339
      %v865 = vunpack.c.l.b16 %v340
      %v866 = vunpack.c.l.b16 %v341
      %v867 = vunpack.c.l.b16 %v342
      %v868 = vunpack.c.l.b16 %v343
      %v869 = vunpack.c.l.b16 %v344
      %v870 = vunpack.c.l.b16 %v345
      %v871 = vunpack.c.l.b16 %v346
      %v872 = vunpack.c.l.b16 %v347
      %v873 = vunpack.c.l.b16 %v348
      %v874 = vunpack.c.l.b16 %v349
      %v875 = vunpack.c.l.b16 %v350
      %v876 = vunpack.c.l.b16 %v351
      %v877 = vunpack.c.l.b16 %v352
      %v878 = vunpack.c.l.b16 %v353
      %v879 = vunpack.c.l.b16 %v354
      %v880 = vunpack.c.l.b16 %v355
      %v881 = vunpack.c.l.b16 %v356
      %v882 = vunpack.c.l.b16 %v357
      %v883 = vunpack.c.l.b16 %v358
      %v884 = vunpack.c.l.b16 %v359
      %v885 = vunpack.c.l.b16 %v360
      %v886 = vunpack.c.l.b16 %v361
      %v887 = vunpack.c.l.b16 %v362
      %v888 = vunpack.c.l.b16 %v363
      %v889 = vunpack.c.l.b16 %v364
      %v890 = vunpack.c.l.b16 %v365
      %v891 = vunpack.c.l.b16 %v366
      %v892 = vunpack.c.l.b16 %v367
      %v893 = vunpack.c.l.b16 %v368
      %v894 = vunpack.c.l.b16 %v369
      %v895 = vunpack.c.l.b16 %v370
      %v896 = vunpack.c.l.b16 %v371
      %v897 = vunpack.c.l.b16 %v372
      %v898 = vunpack.c.l.b16 %v373
      %v899 = vunpack.c.l.b16 %v374
      %v900 = vunpack.c.l.b16 %v375
      %v901 = vunpack.c.l.b16 %v376
      %v902 = vunpack.c.l.b16 %v377
      %v903 = vunpack.c.l.b16 %v378
      %v904 = vunpack.c.l.b16 %v379
      %v905 = vunpack.c.l.b16 %v380
      %v906 = vunpack.c.l.b16 %v381
      %v907 = vunpack.c.l.b16 %v382
      %v908 = vunpack.c.l.b16 %v383
      %v909 = vunpack.c.l.b16 %v384
      %v910 = vunpack.c.l.b16 %v385
      %v911 = vunpack.c.l.b16 %v386
      %v912 = vunpack.c.l.b16 %v387
      %v913 = vunpack.c.l.b16 %v388
      %v914 = vunpack.c.l.b16 %v389
      %v915 = vunpack.c.l.b16 %v390
      %v916 = vunpack.c.l.b16 %v391
      %v917 = vunpack.c.l.b16 %v392
      %v918 = vunpack.c.l.b16 %v393
      %v919 = vunpack.c.l.b16 %v394
      %v920 = vunpack.c.l.b16 %v395
      %v921 = vunpack.c.l.b16 %v396
      %v922 = vunpack.c.l.b16 %v397
      %v923 = vunpack.c.l.b16 %v398
      %v924 = vunpack.c.l.b16 %v399
      %v925 = vunpack.c.l.b16 %v400
      %v926 = vunpack.c.l.b16 %v401
      %v927 = vunpack.c.l.b16 %v402
      %v928 = vunpack.c.l.b16 %v403
      %v929 = vunpack.c.l.b16 %v404
      %v930 = vunpack.c.l.b16 %v405
      %v931 = vunpack.c.l.b16 %v406
      %v932 = vunpack.c.l.b16 %v407
      %v933 = vunpack.c.l.b16 %v408
      %v934 = vunpack.c.l.b16 %v409
      %v935 = vunpack.c.l.b16 %v410
      %v936 = vunpack.c.l.b16 %v411
      %v937 = vunpack.c.l.b16 %v412
      %v938 = vunpack.c.l.b16 %v413
      %v939 = vunpack.c.l.b16 %v414
      %v940 = vunpack.c.l.b16 %v415
      %v941 = vunpack.c.l.b16 %v416
      %v942 = vunpack.c.l.b16 %v417
      %v943 = vunpack.c.l.b16 %v418
      %v944 = vunpack.c.l.b16 %v419
      %v945 = vunpack.c.l.b16 %v420
      %v946 = vunpack.c.l.b16 %v421
      %v947 = vunpack.c.l.b16 %v422
      %v948 = vunpack.c.l.b16 %v423
      %v949 = vunpack.c.l.b16 %v424
      %v950 = vunpack.c.l.b16 %v425
      %v951 = vunpack.c.l.b16 %v426
      %v952 = vunpack.c.l.b16 %v427
      %v953 = vunpack.c.l.b16 %v428
      %v954 = vunpack.c.l.b16 %v429
      %v955 = vunpack.c.l.b16 %v430
      %v956 = vpack.c.b16 %v701, %v700
      %v957 = vpack.c.b16 %v703, %v702
      %v958 = vpack.c.b16 %v705, %v704
      %v959 = vpack.c.b16 %v707, %v706
      %v960 = vpack.c.b16 %v709, %v708
      %v961 = vpack.c.b16 %v711, %v710
      %v962 = vpack.c.b16 %v713, %v712
      %v963 = vpack.c.b16 %v715, %v714
      %v964 = vpack.c.b16 %v717, %v716
      %v965 = vpack.c.b16 %v719, %v718
      %v966 = vpack.c.b16 %v721, %v720
      %v967 = vpack.c.b16 %v723, %v722
      %v968 = vpack.c.b16 %v725, %v724
      %v969 = vpack.c.b16 %v727, %v726
      %v970 = vpack.c.b16 %v729, %v728
      %v971 = vpack.c.b16 %v731, %v730
      %v972 = vpack.c.b16 %v733, %v732
      %v973 = vpack.c.b16 %v735, %v734
      %v974 = vpack.c.b16 %v737, %v736
      %v975 = vpack.c.b16 %v739, %v738
      %v976 = vpack.c.b16 %v741, %v740
      %v977 = vpack.c.b16 %v743, %v742
      %v978 = vpack.c.b16 %v745, %v744
      %v979 = vpack.c.b16 %v747, %v746
      %v980 = vpack.c.b16 %v749, %v748
      %v981 = vpack.c.b16 %v751, %v750
      %v982 = vpack.c.b16 %v753, %v752
      %v983 = vpack.c.b16 %v755, %v754
      %v984 = vpack.c.b16 %v757, %v756
      %v985 = vpack.c.b16 %v759, %v758
      %v986 = vpack.c.b16 %v761, %v760
      %v987 = vpack.c.b16 %v763, %v762
      %v988 = vpack.c.b16 %v765, %v764
      %v989 = vpack.c.b16 %v767, %v766
      %v990 = vpack.c.b16 %v769, %v768
      %v991 = vpack.c.b16 %v771, %v770
      %v992 = vpack.c.b16 %v773, %v772
      %v993 = vpack.c.b16 %v775, %v774
      %v994 = vpack.c.b16 %v777, %v776
      %v995 = vpack.c.b16 %v779, %v778
      %v996 = vpack.c.b16 %v781, %v780
      %v997 = vpack.c.b16 %v783, %v782
      %v998 = vpack.c.b16 %v785, %v784
      %v999 = vpack.c.b16 %v787, %v786
      %v1000 = vpack.c.b16 %v789, %v788
      %v1001 = vpack.c.b16 %v791, %v790
      %v1002 = vpack.c.b16 %v793, %v792
      %v1003 = vpack.c.b16 %v795, %v794
      %v1004 = vpack.c.b16 %v797, %v796
      %v1005 = vpack.c.b16 %v799, %v798
      %v1006 = vpack.c.b16 %v801, %v800
      %v1007 = vpack.c.b16 %v803, %v802
      %v1008 = vpack.c.b16 %v805, %v804
      %v1009 = vpack.c.b16 %v807, %v806
      %v1010 = vpack.c.b16 %v809, %v808
      %v1011 = vpack.c.b16 %v811, %v810
      %v1012 = vpack.c.b16 %v813, %v812
      %v1013 = vpack.c.b16 %v815, %v814
      %v1014 = vpack.c.b16 %v817, %v816
      %v1015 = vpack.c.b16 %v819, %v818
      %v1016 = vpack.c.b16 %v821, %v820
      %v1017 = vpack.c.b16 %v823, %v822
      %v1018 = vpack.c.b16 %v825, %v824
      %v1019 = vpack.c.b16 %v827, %v826
      %v1020 = vpack.c.b16 %v829, %v828
      %v1021 = vpack.c.b16 %v831, %v830
      %v1022 = vpack.c.b16 %v833, %v832
      %v1023 = vpack.c.b16 %v835, %v834
      %v1024 = vpack.c.b16 %v837, %v836
      %v1025 = vpack.c.b16 %v839, %v838
      %v1026 = vpack.c.b16 %v841, %v840
      %v1027 = vpack.c.b16 %v843, %v842
      %v1028 = vpack.c.b16 %v845, %v844
      %v1029 = vpack.c.b16 %v847, %v846
      %v1030 = vpack.c.b16 %v849, %v848
      %v1031 = vpack.c.b16 %v851, %v850
      %v1032 = vpack.c.b16 %v853, %v852
      %v1033 = vpack.c.b16 %v855, %v854
      %v1034 = vpack.c.b16 %v857, %v856
      %v1035 = vpack.c.b16 %v859, %v858
      %v1036 = vpack.c.b16 %v861, %v860
      %v1037 = vpack.c.b16 %v863, %v862
      %v1038 = vpack.c.b16 %v865, %v864
      %v1039 = vpack.c.b16 %v867, %v866
      %v1040 = vpack.c.b16 %v869, %v868
      %v1041 = vpack.c.b16 %v871, %v870
      %v1042 = vpack.c.b16 %v873, %v872
      %v1043 = vpack.c.b16 %v875, %v874
      %v1044 = vpack.c.b16 %v877, %v876
      %v1045 = vpack.c.b16 %v879, %v878
      %v1046 = vpack.c.b16 %v881, %v880
      %v1047 = vpack.c.b16 %v883, %v882
      %v1048 = vpack.c.b16 %v885, %v884
      %v1049 = vpack.c.b16 %v887, %v886
      %v1050 = vpack.c.b16 %v889, %v888
      %v1051 = vpack.c.b16 %v891, %v890
      %v1052 = vpack.c.b16 %v893, %v892
      %v1053 = vpack.c.b16 %v895, %v894
      %v1054 = vpack.c.b16 %v897, %v896
      %v1055 = vpack.c.b16 %v899, %v898
      %v1056 = vpack.c.b16 %v901, %v900
      %v1057 = vpack.c.b16 %v903, %v902
      %v1058 = vpack.c.b16 %v905, %v904
      %v1059 = vpack.c.b16 %v907, %v906
      %v1060 = vpack.c.b16 %v909, %v908
      %v1061 = vpack.c.b16 %v911, %v910
      %v1062 = vpack.c.b16 %v913, %v912
      %v1063 = vpack.c.b16 %v915, %v914
      %v1064 = vpack.c.b16 %v917, %v916
      %v1065 = vpack.c.b16 %v919, %v918
      %v1066 = vpack.c.b16 %v921, %v920
      %v1067 = vpack.c.b16 %v923, %v922
      %v1068 = vpack.c.b16 %v925, %v924
      %v1069 = vpack.c.b16 %v927, %v926
      %v1070 = vpack.c.b16 %v929, %v928
      %v1071 = vpack.c.b16 %v931, %v930
      %v1072 = vpack.c.b16 %v933, %v932
      %v1073 = vpack.c.b16 %v935, %v934
      %v1074 = vpack.c.b16 %v937, %v936
      %v1075 = vpack.c.b16 %v939, %v938
      %v1076 = vpack.c.b16 %v941, %v940
      %v1077 = vpack.c.b16 %v943, %v942
      %v1078 = vpack.c.b16 %v945, %v944
      %v1079 = vpack.c.b16 %v947, %v946
      %v1080 = vpack.c.b16 %v949, %v948
      %v1081 = vpack.c.b16 %v951, %v950
      %v1082 = vpack.c.b16 %v953, %v952
      %v1083 = vpack.c.b16 %v955, %v954
      %v1090 = vunpack.c.l.b16 %v431
      %v1091 = vunpack.c.l.b16 %v432
      %v1092 = vunpack.c.l.b16 %v433
      %v1093 = vunpack.c.l.b16 %v434
      %v1094 = vunpack.c.l.b16 %v435
      %v1095 = vunpack.c.l.b16 %v436
      %v1096 = vpack.c.b16 %v1091, %v1090
      %v1097 = vpack.c.b16 %v1093, %v1092
      %v1098 = vpack.c.b16 %v1095, %v1094
      %vm1102 = vcmask 392192
      %v1104 = vsel %vm1102, %v956, 0
      %v1107 = vsel %vm1102, %v957, 0
      %v1110 = vsel %vm1102, %v958, 0
      %v1113 = vsel %vm1102, %v959, 0
      %v1116 = vsel %vm1102, %v960, 0
      %v1119 = vsel %vm1102, %v961, 0
      %v1122 = vsel %vm1102, %v962, 0
      %v1125 = vsel %vm1102, %v963, 0
      %v1128 = vsel %vm1102, %v964, 0
      %v1131 = vsel %vm1102, %v965, 0
      %v1134 = vsel %vm1102, %v966, 0
      %v1137 = vsel %vm1102, %v967, 0
      %v1140 = vsel %vm1102, %v968, 0
      %v1143 = vsel %vm1102, %v969, 0
      %v1146 = vsel %vm1102, %v970, 0
      %v1149 = vsel %vm1102, %v971, 0
      %v1152 = vsel %vm1102, %v972, 0
      %v1155 = vsel %vm1102, %v973, 0
      %v1158 = vsel %vm1102, %v974, 0
      %v1161 = vsel %vm1102, %v975, 0
      %v1164 = vsel %vm1102, %v976, 0
      %v1167 = vsel %vm1102, %v977, 0
      %v1170 = vsel %vm1102, %v978, 0
      %v1173 = vsel %vm1102, %v979, 0
      %v1176 = vsel %vm1102, %v980, 0
      %v1179 = vsel %vm1102, %v981, 0
      %v1182 = vsel %vm1102, %v982, 0
      %v1185 = vsel %vm1102, %v983, 0
      %v1188 = vsel %vm1102, %v984, 0
      %v1191 = vsel %vm1102, %v985, 0
      %v1194 = vsel %vm1102, %v986, 0
      %v1197 = vsel %vm1102, %v987, 0
      %v1200 = vsel %vm1102, %v988, 0
      %v1203 = vsel %vm1102, %v989, 0
      %v1206 = vsel %vm1102, %v990, 0
      %v1209 = vsel %vm1102, %v991, 0
      %v1212 = vsel %vm1102, %v992, 0
      %v1215 = vsel %vm1102, %v993, 0
      %v1218 = vsel %vm1102, %v994, 0
      %v1221 = vsel %vm1102, %v995, 0
      %v1224 = vsel %vm1102, %v996, 0
      %v1227 = vsel %vm1102, %v997, 0
      %v1230 = vsel %vm1102, %v998, 0
      %v1233 = vsel %vm1102, %v999, 0
      %v1236 = vsel %vm1102, %v1000, 0
      %v1239 = vsel %vm1102, %v1001, 0
      %v1242 = vsel %vm1102, %v1002, 0
      %v1245 = vsel %vm1102, %v1003, 0
      %v1248 = vsel %vm1102, %v1004, 0
      %v1251 = vsel %vm1102, %v1005, 0
      %v1254 = vsel %vm1102, %v1006, 0
      %v1257 = vsel %vm1102, %v1007, 0
      %v1260 = vsel %vm1102, %v1008, 0
      %v1263 = vsel %vm1102, %v1009, 0
      %v1266 = vsel %vm1102, %v1010, 0
      %v1269 = vsel %vm1102, %v1011, 0
      %v1272 = vsel %vm1102, %v1012, 0
      %v1275 = vsel %vm1102, %v1013, 0
      %v1278 = vsel %vm1102, %v1014, 0
      %v1281 = vsel %vm1102, %v1015, 0
      %v1284 = vsel %vm1102, %v1016, 0
      %v1287 = vsel %vm1102, %v1017, 0
      %v1290 = vsel %vm1102, %v1018, 0
      %v1293 = vsel %vm1102, %v1019, 0
      %v1296 = vsel %vm1102, %v1020, 0
      %v1299 = vsel %vm1102, %v1021, 0
      %v1302 = vsel %vm1102, %v1022, 0
      %v1305 = vsel %vm1102, %v1023, 0
      %v1308 = vsel %vm1102, %v1024, 0
      %v1311 = vsel %vm1102, %v1025, 0
      %v1314 = vsel %vm1102, %v1026, 0
      %v1317 = vsel %vm1102, %v1027, 0
      %v1320 = vsel %vm1102, %v1028, 0
      %v1323 = vsel %vm1102, %v1029, 0
      %v1326 = vsel %vm1102, %v1030, 0
      %v1329 = vsel %vm1102, %v1031, 0
      %v1332 = vsel %vm1102, %v1032, 0
      %v1335 = vsel %vm1102, %v1033, 0
      %v1338 = vsel %vm1102, %v1034, 0
      %v1341 = vsel %vm1102, %v1035, 0
      %v1344 = vsel %vm1102, %v1036, 0
      %v1347 = vsel %vm1102, %v1037, 0
      %v1350 = vsel %vm1102, %v1038, 0
      %v1353 = vsel %vm1102, %v1039, 0
      %v1356 = vsel %vm1102, %v1040, 0
      %v1359 = vsel %vm1102, %v1041, 0
      %v1362 = vsel %vm1102, %v1042, 0
      %v1365 = vsel %vm1102, %v1043, 0
      %v1368 = vsel %vm1102, %v1044, 0
      %v1371 = vsel %vm1102, %v1045, 0
      %v1374 = vsel %vm1102, %v1046, 0
      %v1377 = vsel %vm1102, %v1047, 0
      %v1380 = vsel %vm1102, %v1048, 0
      %v1383 = vsel %vm1102, %v1049, 0
      %v1386 = vsel %vm1102, %v1050, 0
      %v1389 = vsel %vm1102, %v1051, 0
      %v1392 = vsel %vm1102, %v1052, 0
      %v1395 = vsel %vm1102, %v1053, 0
      %v1398 = vsel %vm1102, %v1054, 0
      %v1401 = vsel %vm1102, %v1055, 0
      %v1404 = vsel %vm1102, %v1056, 0
      %v1407 = vsel %vm1102, %v1057, 0
      %v1410 = vsel %vm1102, %v1058, 0
      %v1413 = vsel %vm1102, %v1059, 0
      %v1416 = vsel %vm1102, %v1060, 0
      %v1419 = vsel %vm1102, %v1061, 0
      %v1422 = vsel %vm1102, %v1062, 0
      %v1425 = vsel %vm1102, %v1063, 0
      %v1428 = vsel %vm1102, %v1064, 0
      %v1431 = vsel %vm1102, %v1065, 0
      %v1434 = vsel %vm1102, %v1066, 0
      %v1437 = vsel %vm1102, %v1067, 0
      %v1440 = vsel %vm1102, %v1068, 0
      %v1443 = vsel %vm1102, %v1069, 0
      %v1446 = vsel %vm1102, %v1070, 0
      %v1449 = vsel %vm1102, %v1071, 0
      %v1452 = vsel %vm1102, %v1072, 0
      %v1455 = vsel %vm1102, %v1073, 0
      %v1458 = vsel %vm1102, %v1074, 0
      %v1461 = vsel %vm1102, %v1075, 0
      %v1464 = vsel %vm1102, %v1076, 0
      %v1467 = vsel %vm1102, %v1077, 0
      %v1470 = vsel %vm1102, %v1078, 0
      %v1473 = vsel %vm1102, %v1079, 0
      %v1476 = vsel %vm1102, %v1080, 0
      %v1479 = vsel %vm1102, %v1081, 0
      %v1482 = vsel %vm1102, %v1082, 0
      %v1485 = vsel %vm1102, %v1083, 0
      %1487 = vmatprep.subr.bf16.mxu0 0
      %1488 = vmatpush1.bf16.msra.mxu0 %v1096
      %1489 = vmatprep.subr.bf16.mxu0 0
      %1490 = vmatpush1.bf16.msra.mxu0 %v1097
      %1491 = vmatprep.subr.bf16.mxu0 0
      %1492 = vmatpush1.bf16.msra.mxu0 %v1098
      %1493 = vmatprep.subr.bf16.mxu0 0
      %1494 = vmatpush1.bf16.msra.mxu0 0
      %1495 = vmatprep.subr.bf16.mxu0 0
      %1496 = vmatpush1.bf16.msra.mxu0 0
      %1497 = vmatprep.subr.bf16.mxu0 0
      %1498 = vmatpush1.bf16.msra.mxu0 0
      %1499 = vmatprep.subr.bf16.mxu0 0
      %1500 = vmatpush1.bf16.msra.mxu0 0
      %1501 = vmatprep.subr.bf16.mxu0 0
      %1502 = vmatpush1.bf16.msra.mxu0 0
      %1503 = vmatprep.subr.bf16.mxu0 0
      %1504 = vmatpush1.bf16.msra.mxu0 0
      %1505 = vmatprep.subr.bf16.mxu0 0
      %1506 = vmatpush1.bf16.msra.mxu0 0
      %1507 = vmatprep.subr.bf16.mxu0 0
      %1508 = vmatpush1.bf16.msra.mxu0 0
      %1509 = vmatprep.subr.bf16.mxu0 0
      %1510 = vmatpush1.bf16.msra.mxu0 0
      %1511 = vmatprep.subr.bf16.mxu0 0
      %1512 = vmatpush1.bf16.msra.mxu0 0
      %1513 = vmatprep.subr.bf16.mxu0 0
      %1514 = vmatpush1.bf16.msra.mxu0 0
      %1515 = vmatprep.subr.bf16.mxu0 0
      %1516 = vmatpush1.bf16.msra.mxu0 0
      %1517 = vmatprep.subr.bf16.mxu0 0
      %1518 = vmatpush1.bf16.msra.mxu0 0
      %1519 = vmatprep.mubr.bf16.mxu0 0
      %1520 = vmatmul.mubr.bf16.gmra.mrb[0].mxu0 %v1104
      %v1521 = vpop.f32.mrb[0].mxu0
      %v1522 = vadd.f32 %v442, %v1521
      %v1523 = vpop.f32.mrb[0].mxu0
      %v1524 = vpop.f32.mrb[0].mxu0
      %v1525 = vadd.f32 %v442, %v1524
      %v1526 = vpop.f32.mrb[0].mxu0
      %1527 = vmatprep.mubr.bf16.mxu0 0
      %1528 = vmatmul.mubr.bf16.gmra.mrb[0].mxu0 %v1107
      %v1529 = vpop.f32.mrb[0].mxu0
      %v1530 = vadd.f32 %v442, %v1529
      %v1531 = vpop.f32.mrb[0].mxu0
      %v1532 = vpop.f32.mrb[0].mxu0
      %v1533 = vadd.f32 %v442, %v1532
      %v1534 = vpop.f32.mrb[0].mxu0
      %1535 = vmatprep.mubr.bf16.mxu0 0
      %1536 = vmatmul.mubr.bf16.gmra.mrb[0].mxu0 %v1110
      %v1537 = vpop.f32.mrb[0].mxu0
      %v1538 = vadd.f32 %v442, %v1537
      %v1539 = vpop.f32.mrb[0].mxu0
      %v1540 = vpop.f32.mrb[0].mxu0
      %v1541 = vadd.f32 %v442, %v1540
      %v1542 = vpop.f32.mrb[0].mxu0
      %1543 = vmatprep.mubr.bf16.mxu0 0
      %1544 = vmatmul.mubr.bf16.gmra.mrb[0].mxu0 %v1113
      %v1545 = vpop.f32.mrb[0].mxu0
      %v1546 = vadd.f32 %v442, %v1545
      %v1547 = vpop.f32.mrb[0].mxu0
      %v1548 = vpop.f32.mrb[0].mxu0
      %v1549 = vadd.f32 %v442, %v1548
      %v1550 = vpop.f32.mrb[0].mxu0
      %1551 = vmatprep.mubr.bf16.mxu0 0
      %1552 = vmatmul.mubr.bf16.gmra.mrb[0].mxu0 %v1116
      %v1553 = vpop.f32.mrb[0].mxu0
      %v1554 = vadd.f32 %v442, %v1553
      %v1555 = vpop.f32.mrb[0].mxu0
      %v1556 = vpop.f32.mrb[0].mxu0
      %v1557 = vadd.f32 %v442, %v1556
      %v1558 = vpop.f32.mrb[0].mxu0
      %1559 = vmatprep.mubr.bf16.mxu0 0
      %1560 = vmatmul.mubr.bf16.gmra.mrb[0].mxu0 %v1119
      %v1561 = vpop.f32.mrb[0].mxu0
      %v1562 = vadd.f32 %v442, %v1561
      %v1563 = vpop.f32.mrb[0].mxu0
      %v1564 = vpop.f32.mrb[0].mxu0
      %v1565 = vadd.f32 %v442, %v1564
      %v1566 = vpop.f32.mrb[0].mxu0
      %1567 = vmatprep.mubr.bf16.mxu0 0
      %1568 = vmatmul.mubr.bf16.gmra.mrb[0].mxu0 %v1122
      %v1569 = vpop.f32.mrb[0].mxu0
      %v1570 = vadd.f32 %v442, %v1569
      %v1571 = vpop.f32.mrb[0].mxu0
      %v1572 = vpop.f32.mrb[0].mxu0
      %v1573 = vadd.f32 %v442, %v1572
      %v1574 = vpop.f32.mrb[0].mxu0
      %1575 = vmatprep.mubr.bf16.mxu0 0
      %1576 = vmatmul.mubr.bf16.gmra.mrb[0].mxu0 %v1125
      %v1577 = vpop.f32.mrb[0].mxu0
      %v1578 = vadd.f32 %v442, %v1577
      %v1579 = vpop.f32.mrb[0].mxu0
      %v1580 = vpop.f32.mrb[0].mxu0
      %v1581 = vadd.f32 %v442, %v1580
      %v1582 = vpop.f32.mrb[0].mxu0
      %1583 = vmatprep.mubr.bf16.mxu0 0
      %1584 = vmatmul.mubr.bf16.gmra.mrb[0].mxu0 %v1128
      %v1585 = vpop.f32.mrb[0].mxu0
      %v1586 = vadd.f32 %v442, %v1585
      %v1587 = vpop.f32.mrb[0].mxu0
      %v1588 = vpop.f32.mrb[0].mxu0
      %v1589 = vadd.f32 %v442, %v1588
      %v1590 = vpop.f32.mrb[0].mxu0
      %1591 = vmatprep.mubr.bf16.mxu0 0
      %1592 = vmatmul.mubr.bf16.gmra.mrb[0].mxu0 %v1131
      %v1593 = vpop.f32.mrb[0].mxu0
      %v1594 = vadd.f32 %v442, %v1593
      %v1595 = vpop.f32.mrb[0].mxu0
      %v1596 = vpop.f32.mrb[0].mxu0
      %v1597 = vadd.f32 %v442, %v1596
      %v1598 = vpop.f32.mrb[0].mxu0
      %1599 = vmatprep.mubr.bf16.mxu0 0
      %1600 = vmatmul.mubr.bf16.gmra.mrb[0].mxu0 %v1134
      %v1601 = vpop.f32.mrb[0].mxu0
      %v1602 = vadd.f32 %v442, %v1601
      %v1603 = vpop.f32.mrb[0].mxu0
      %v1604 = vpop.f32.mrb[0].mxu0
      %v1605 = vadd.f32 %v442, %v1604
      %v1606 = vpop.f32.mrb[0].mxu0
      %1607 = vmatprep.mubr.bf16.mxu0 0
      %1608 = vmatmul.mubr.bf16.gmra.mrb[0].mxu0 %v1137
      %v1609 = vpop.f32.mrb[0].mxu0
      %v1610 = vadd.f32 %v442, %v1609
      %v1611 = vpop.f32.mrb[0].mxu0
      %v1612 = vpop.f32.mrb[0].mxu0
      %v1613 = vadd.f32 %v442, %v1612
      %v1614 = vpop.f32.mrb[0].mxu0
      %1615 = vmatprep.mubr.bf16.mxu0 0
      %1616 = vmatmul.mubr.bf16.gmra.mrb[0].mxu0 %v1140
      %v1617 = vpop.f32.mrb[0].mxu0
      %v1618 = vadd.f32 %v442, %v1617
      %v1619 = vpop.f32.mrb[0].mxu0
      %v1620 = vpop.f32.mrb[0].mxu0
      %v1621 = vadd.f32 %v442, %v1620
      %v1622 = vpop.f32.mrb[0].mxu0
      %1623 = vmatprep.mubr.bf16.mxu0 0
      %1624 = vmatmul.mubr.bf16.gmra.mrb[0].mxu0 %v1143
      %v1625 = vpop.f32.mrb[0].mxu0
      %v1626 = vadd.f32 %v442, %v1625
      %v1627 = vpop.f32.mrb[0].mxu0
      %v1628 = vpop.f32.mrb[0].mxu0
      %v1629 = vadd.f32 %v442, %v1628
      %v1630 = vpop.f32.mrb[0].mxu0
      %1631 = vmatprep.mubr.bf16.mxu0 0
      %1632 = vmatmul.mubr.bf16.gmra.mrb[0].mxu0 %v1146
      %v1633 = vpop.f32.mrb[0].mxu0
      %v1634 = vadd.f32 %v442, %v1633
      %v1635 = vpop.f32.mrb[0].mxu0
      %v1636 = vpop.f32.mrb[0].mxu0
      %v1637 = vadd.f32 %v442, %v1636
      %v1638 = vpop.f32.mrb[0].mxu0
      %1639 = vmatprep.mubr.bf16.mxu0 0
      %1640 = vmatmul.mubr.bf16.gmra.mrb[0].mxu0 %v1149
      %v1641 = vpop.f32.mrb[0].mxu0
      %v1642 = vadd.f32 %v442, %v1641
      %v1643 = vpop.f32.mrb[0].mxu0
      %v1644 = vpop.f32.mrb[0].mxu0
      %v1645 = vadd.f32 %v442, %v1644
      %v1646 = vpop.f32.mrb[0].mxu0
      %1647 = vmatprep.mubr.bf16.mxu0 0
      %1648 = vmatmul.mubr.bf16.gmra.mrb[0].mxu0 %v1152
      %v1649 = vpop.f32.mrb[0].mxu0
      %v1650 = vadd.f32 %v442, %v1649
      %v1651 = vpop.f32.mrb[0].mxu0
      %v1652 = vpop.f32.mrb[0].mxu0
      %v1653 = vadd.f32 %v442, %v1652
      %v1654 = vpop.f32.mrb[0].mxu0
      %1655 = vmatprep.mubr.bf16.mxu0 0
      %1656 = vmatmul.mubr.bf16.gmra.mrb[0].mxu0 %v1155
      %v1657 = vpop.f32.mrb[0].mxu0
      %v1658 = vadd.f32 %v442, %v1657
      %v1659 = vpop.f32.mrb[0].mxu0
      %v1660 = vpop.f32.mrb[0].mxu0
      %v1661 = vadd.f32 %v442, %v1660
      %v1662 = vpop.f32.mrb[0].mxu0
      %1663 = vmatprep.mubr.bf16.mxu0 0
      %1664 = vmatmul.mubr.bf16.gmra.mrb[0].mxu0 %v1158
      %v1665 = vpop.f32.mrb[0].mxu0
      %v1666 = vadd.f32 %v442, %v1665
      %v1667 = vpop.f32.mrb[0].mxu0
      %v1668 = vpop.f32.mrb[0].mxu0
      %v1669 = vadd.f32 %v442, %v1668
      %v1670 = vpop.f32.mrb[0].mxu0
      %1671 = vmatprep.mubr.bf16.mxu0 0
      %1672 = vmatmul.mubr.bf16.gmra.mrb[0].mxu0 %v1161
      %v1673 = vpop.f32.mrb[0].mxu0
      %v1674 = vadd.f32 %v442, %v1673
      %v1675 = vpop.f32.mrb[0].mxu0
      %v1676 = vpop.f32.mrb[0].mxu0
      %v1677 = vadd.f32 %v442, %v1676
      %v1678 = vpop.f32.mrb[0].mxu0
      %1679 = vmatprep.mubr.bf16.mxu0 0
      %1680 = vmatmul.mubr.bf16.gmra.mrb[0].mxu0 %v1164
      %v1681 = vpop.f32.mrb[0].mxu0
      %v1682 = vadd.f32 %v442, %v1681
      %v1683 = vpop.f32.mrb[0].mxu0
      %v1684 = vpop.f32.mrb[0].mxu0
      %v1685 = vadd.f32 %v442, %v1684
      %v1686 = vpop.f32.mrb[0].mxu0
      %1687 = vmatprep.mubr.bf16.mxu0 0
      %1688 = vmatmul.mubr.bf16.gmra.mrb[0].mxu0 %v1167
      %v1689 = vpop.f32.mrb[0].mxu0
      %v1690 = vadd.f32 %v442, %v1689
      %v1691 = vpop.f32.mrb[0].mxu0
      %v1692 = vpop.f32.mrb[0].mxu0
      %v1693 = vadd.f32 %v442, %v1692
      %v1694 = vpop.f32.mrb[0].mxu0
      %1695 = vmatprep.mubr.bf16.mxu0 0
      %1696 = vmatmul.mubr.bf16.gmra.mrb[0].mxu0 %v1170
      %v1697 = vpop.f32.mrb[0].mxu0
      %v1698 = vadd.f32 %v442, %v1697
      %v1699 = vpop.f32.mrb[0].mxu0
      %v1700 = vpop.f32.mrb[0].mxu0
      %v1701 = vadd.f32 %v442, %v1700
      %v1702 = vpop.f32.mrb[0].mxu0
      %1703 = vmatprep.mubr.bf16.mxu0 0
      %1704 = vmatmul.mubr.bf16.gmra.mrb[0].mxu0 %v1173
      %v1705 = vpop.f32.mrb[0].mxu0
      %v1706 = vadd.f32 %v442, %v1705
      %v1707 = vpop.f32.mrb[0].mxu0
      %v1708 = vpop.f32.mrb[0].mxu0
      %v1709 = vadd.f32 %v442, %v1708
      %v1710 = vpop.f32.mrb[0].mxu0
      %1711 = vmatprep.mubr.bf16.mxu0 0
      %1712 = vmatmul.mubr.bf16.gmra.mrb[0].mxu0 %v1176
      %v1713 = vpop.f32.mrb[0].mxu0
      %v1714 = vadd.f32 %v442, %v1713
      %v1715 = vpop.f32.mrb[0].mxu0
      %v1716 = vpop.f32.mrb[0].mxu0
      %v1717 = vadd.f32 %v442, %v1716
      %v1718 = vpop.f32.mrb[0].mxu0
      %1719 = vmatprep.mubr.bf16.mxu0 0
      %1720 = vmatmul.mubr.bf16.gmra.mrb[0].mxu0 %v1179
      %v1721 = vpop.f32.mrb[0].mxu0
      %v1722 = vadd.f32 %v442, %v1721
      %v1723 = vpop.f32.mrb[0].mxu0
      %v1724 = vpop.f32.mrb[0].mxu0
      %v1725 = vadd.f32 %v442, %v1724
      %v1726 = vpop.f32.mrb[0].mxu0
      %1727 = vmatprep.mubr.bf16.mxu0 0
      %1728 = vmatmul.mubr.bf16.gmra.mrb[0].mxu0 %v1182
      %v1729 = vpop.f32.mrb[0].mxu0
      %v1730 = vadd.f32 %v442, %v1729
      %v1731 = vpop.f32.mrb[0].mxu0
      %v1732 = vpop.f32.mrb[0].mxu0
      %v1733 = vadd.f32 %v442, %v1732
      %v1734 = vpop.f32.mrb[0].mxu0
      %1735 = vmatprep.mubr.bf16.mxu0 0
      %1736 = vmatmul.mubr.bf16.gmra.mrb[0].mxu0 %v1185
      %v1737 = vpop.f32.mrb[0].mxu0
      %v1738 = vadd.f32 %v442, %v1737
      %v1739 = vpop.f32.mrb[0].mxu0
      %v1740 = vpop.f32.mrb[0].mxu0
      %v1741 = vadd.f32 %v442, %v1740
      %v1742 = vpop.f32.mrb[0].mxu0
      %1743 = vmatprep.mubr.bf16.mxu0 0
      %1744 = vmatmul.mubr.bf16.gmra.mrb[0].mxu0 %v1188
      %v1745 = vpop.f32.mrb[0].mxu0
      %v1746 = vadd.f32 %v442, %v1745
      %v1747 = vpop.f32.mrb[0].mxu0
      %v1748 = vpop.f32.mrb[0].mxu0
      %v1749 = vadd.f32 %v442, %v1748
      %v1750 = vpop.f32.mrb[0].mxu0
      %1751 = vmatprep.mubr.bf16.mxu0 0
      %1752 = vmatmul.mubr.bf16.gmra.mrb[0].mxu0 %v1191
      %v1753 = vpop.f32.mrb[0].mxu0
      %v1754 = vadd.f32 %v442, %v1753
      %v1755 = vpop.f32.mrb[0].mxu0
      %v1756 = vpop.f32.mrb[0].mxu0
      %v1757 = vadd.f32 %v442, %v1756
      %v1758 = vpop.f32.mrb[0].mxu0
      %1759 = vmatprep.mubr.bf16.mxu0 0
      %1760 = vmatmul.mubr.bf16.gmra.mrb[0].mxu0 %v1194
      %v1761 = vpop.f32.mrb[0].mxu0
      %v1762 = vadd.f32 %v442, %v1761
      %v1763 = vpop.f32.mrb[0].mxu0
      %v1764 = vpop.f32.mrb[0].mxu0
      %v1765 = vadd.f32 %v442, %v1764
      %v1766 = vpop.f32.mrb[0].mxu0
      %1767 = vmatprep.mubr.bf16.mxu0 0
      %1768 = vmatmul.mubr.bf16.gmra.mrb[0].mxu0 %v1197
      %v1769 = vpop.f32.mrb[0].mxu0
      %v1770 = vadd.f32 %v442, %v1769
      %v1771 = vpop.f32.mrb[0].mxu0
      %v1772 = vpop.f32.mrb[0].mxu0
      %v1773 = vadd.f32 %v442, %v1772
      %v1774 = vpop.f32.mrb[0].mxu0
      %1775 = vmatprep.mubr.bf16.mxu0 0
      %1776 = vmatmul.mubr.bf16.gmra.mrb[0].mxu0 %v1200
      %v1777 = vpop.f32.mrb[0].mxu0
      %v1778 = vadd.f32 %v442, %v1777
      %v1779 = vpop.f32.mrb[0].mxu0
      %v1780 = vpop.f32.mrb[0].mxu0
      %v1781 = vadd.f32 %v442, %v1780
      %v1782 = vpop.f32.mrb[0].mxu0
      %1783 = vmatprep.mubr.bf16.mxu0 0
      %1784 = vmatmul.mubr.bf16.gmra.mrb[0].mxu0 %v1203
      %v1785 = vpop.f32.mrb[0].mxu0
      %v1786 = vadd.f32 %v442, %v1785
      %v1787 = vpop.f32.mrb[0].mxu0
      %v1788 = vpop.f32.mrb[0].mxu0
      %v1789 = vadd.f32 %v442, %v1788
      %v1790 = vpop.f32.mrb[0].mxu0
      %1791 = vmatprep.mubr.bf16.mxu0 0
      %1792 = vmatmul.mubr.bf16.gmra.mrb[0].mxu0 %v1206
      %v1793 = vpop.f32.mrb[0].mxu0
      %v1794 = vadd.f32 %v442, %v1793
      %v1795 = vpop.f32.mrb[0].mxu0
      %v1796 = vpop.f32.mrb[0].mxu0
      %v1797 = vadd.f32 %v442, %v1796
      %v1798 = vpop.f32.mrb[0].mxu0
      %1799 = vmatprep.mubr.bf16.mxu0 0
      %1800 = vmatmul.mubr.bf16.gmra.mrb[0].mxu0 %v1209
      %v1801 = vpop.f32.mrb[0].mxu0
      %v1802 = vadd.f32 %v442, %v1801
      %v1803 = vpop.f32.mrb[0].mxu0
      %v1804 = vpop.f32.mrb[0].mxu0
      %v1805 = vadd.f32 %v442, %v1804
      %v1806 = vpop.f32.mrb[0].mxu0
      %1807 = vmatprep.mubr.bf16.mxu0 0
      %1808 = vmatmul.mubr.bf16.gmra.mrb[0].mxu0 %v1212
      %v1809 = vpop.f32.mrb[0].mxu0
      %v1810 = vadd.f32 %v442, %v1809
      %v1811 = vpop.f32.mrb[0].mxu0
      %v1812 = vpop.f32.mrb[0].mxu0
      %v1813 = vadd.f32 %v442, %v1812
      %v1814 = vpop.f32.mrb[0].mxu0
      %1815 = vmatprep.mubr.bf16.mxu0 0
      %1816 = vmatmul.mubr.bf16.gmra.mrb[0].mxu0 %v1215
      %v1817 = vpop.f32.mrb[0].mxu0
      %v1818 = vadd.f32 %v442, %v1817
      %v1819 = vpop.f32.mrb[0].mxu0
      %v1820 = vpop.f32.mrb[0].mxu0
      %v1821 = vadd.f32 %v442, %v1820
      %v1822 = vpop.f32.mrb[0].mxu0
      %1823 = vmatprep.mubr.bf16.mxu0 0
      %1824 = vmatmul.mubr.bf16.gmra.mrb[0].mxu0 %v1218
      %v1825 = vpop.f32.mrb[0].mxu0
      %v1826 = vadd.f32 %v442, %v1825
      %v1827 = vpop.f32.mrb[0].mxu0
      %v1828 = vpop.f32.mrb[0].mxu0
      %v1829 = vadd.f32 %v442, %v1828
      %v1830 = vpop.f32.mrb[0].mxu0
      %1831 = vmatprep.mubr.bf16.mxu0 0
      %1832 = vmatmul.mubr.bf16.gmra.mrb[0].mxu0 %v1221
      %v1833 = vpop.f32.mrb[0].mxu0
      %v1834 = vadd.f32 %v442, %v1833
      %v1835 = vpop.f32.mrb[0].mxu0
      %v1836 = vpop.f32.mrb[0].mxu0
      %v1837 = vadd.f32 %v442, %v1836
      %v1838 = vpop.f32.mrb[0].mxu0
      %1839 = vmatprep.mubr.bf16.mxu0 0
      %1840 = vmatmul.mubr.bf16.gmra.mrb[0].mxu0 %v1224
      %v1841 = vpop.f32.mrb[0].mxu0
      %v1842 = vadd.f32 %v442, %v1841
      %v1843 = vpop.f32.mrb[0].mxu0
      %v1844 = vpop.f32.mrb[0].mxu0
      %v1845 = vadd.f32 %v442, %v1844
      %v1846 = vpop.f32.mrb[0].mxu0
      %1847 = vmatprep.mubr.bf16.mxu0 0
      %1848 = vmatmul.mubr.bf16.gmra.mrb[0].mxu0 %v1227
      %v1849 = vpop.f32.mrb[0].mxu0
      %v1850 = vadd.f32 %v442, %v1849
      %v1851 = vpop.f32.mrb[0].mxu0
      %v1852 = vpop.f32.mrb[0].mxu0
      %v1853 = vadd.f32 %v442, %v1852
      %v1854 = vpop.f32.mrb[0].mxu0
      %1855 = vmatprep.mubr.bf16.mxu0 0
      %1856 = vmatmul.mubr.bf16.gmra.mrb[0].mxu0 %v1230
      %v1857 = vpop.f32.mrb[0].mxu0
      %v1858 = vadd.f32 %v442, %v1857
      %v1859 = vpop.f32.mrb[0].mxu0
      %v1860 = vpop.f32.mrb[0].mxu0
      %v1861 = vadd.f32 %v442, %v1860
      %v1862 = vpop.f32.mrb[0].mxu0
      %1863 = vmatprep.mubr.bf16.mxu0 0
      %1864 = vmatmul.mubr.bf16.gmra.mrb[0].mxu0 %v1233
      %v1865 = vpop.f32.mrb[0].mxu0
      %v1866 = vadd.f32 %v442, %v1865
      %v1867 = vpop.f32.mrb[0].mxu0
      %v1868 = vpop.f32.mrb[0].mxu0
      %v1869 = vadd.f32 %v442, %v1868
      %v1870 = vpop.f32.mrb[0].mxu0
      %1871 = vmatprep.mubr.bf16.mxu0 0
      %1872 = vmatmul.mubr.bf16.gmra.mrb[0].mxu0 %v1236
      %v1873 = vpop.f32.mrb[0].mxu0
      %v1874 = vadd.f32 %v442, %v1873
      %v1875 = vpop.f32.mrb[0].mxu0
      %v1876 = vpop.f32.mrb[0].mxu0
      %v1877 = vadd.f32 %v442, %v1876
      %v1878 = vpop.f32.mrb[0].mxu0
      %1879 = vmatprep.mubr.bf16.mxu0 0
      %1880 = vmatmul.mubr.bf16.gmra.mrb[0].mxu0 %v1239
      %v1881 = vpop.f32.mrb[0].mxu0
      %v1882 = vadd.f32 %v442, %v1881
      %v1883 = vpop.f32.mrb[0].mxu0
      %v1884 = vpop.f32.mrb[0].mxu0
      %v1885 = vadd.f32 %v442, %v1884
      %v1886 = vpop.f32.mrb[0].mxu0
      %1887 = vmatprep.mubr.bf16.mxu0 0
      %1888 = vmatmul.mubr.bf16.gmra.mrb[0].mxu0 %v1242
      %v1889 = vpop.f32.mrb[0].mxu0
      %v1890 = vadd.f32 %v442, %v1889
      %v1891 = vpop.f32.mrb[0].mxu0
      %v1892 = vpop.f32.mrb[0].mxu0
      %v1893 = vadd.f32 %v442, %v1892
      %v1894 = vpop.f32.mrb[0].mxu0
      %1895 = vmatprep.mubr.bf16.mxu0 0
      %1896 = vmatmul.mubr.bf16.gmra.mrb[0].mxu0 %v1245
      %v1897 = vpop.f32.mrb[0].mxu0
      %v1898 = vadd.f32 %v442, %v1897
      %v1899 = vpop.f32.mrb[0].mxu0
      %v1900 = vpop.f32.mrb[0].mxu0
      %v1901 = vadd.f32 %v442, %v1900
      %v1902 = vpop.f32.mrb[0].mxu0
      %1903 = vmatprep.mubr.bf16.mxu0 0
      %1904 = vmatmul.mubr.bf16.gmra.mrb[0].mxu0 %v1248
      %v1905 = vpop.f32.mrb[0].mxu0
      %v1906 = vadd.f32 %v442, %v1905
      %v1907 = vpop.f32.mrb[0].mxu0
      %v1908 = vpop.f32.mrb[0].mxu0
      %v1909 = vadd.f32 %v442, %v1908
      %v1910 = vpop.f32.mrb[0].mxu0
      %1911 = vmatprep.mubr.bf16.mxu0 0
      %1912 = vmatmul.mubr.bf16.gmra.mrb[0].mxu0 %v1251
      %v1913 = vpop.f32.mrb[0].mxu0
      %v1914 = vadd.f32 %v442, %v1913
      %v1915 = vpop.f32.mrb[0].mxu0
      %v1916 = vpop.f32.mrb[0].mxu0
      %v1917 = vadd.f32 %v442, %v1916
      %v1918 = vpop.f32.mrb[0].mxu0
      %1919 = vmatprep.mubr.bf16.mxu0 0
      %1920 = vmatmul.mubr.bf16.gmra.mrb[0].mxu0 %v1254
      %v1921 = vpop.f32.mrb[0].mxu0
      %v1922 = vadd.f32 %v442, %v1921
      %v1923 = vpop.f32.mrb[0].mxu0
      %v1924 = vpop.f32.mrb[0].mxu0
      %v1925 = vadd.f32 %v442, %v1924
      %v1926 = vpop.f32.mrb[0].mxu0
      %1927 = vmatprep.mubr.bf16.mxu0 0
      %1928 = vmatmul.mubr.bf16.gmra.mrb[0].mxu0 %v1257
      %v1929 = vpop.f32.mrb[0].mxu0
      %v1930 = vadd.f32 %v442, %v1929
      %v1931 = vpop.f32.mrb[0].mxu0
      %v1932 = vpop.f32.mrb[0].mxu0
      %v1933 = vadd.f32 %v442, %v1932
      %v1934 = vpop.f32.mrb[0].mxu0
      %1935 = vmatprep.mubr.bf16.mxu0 0
      %1936 = vmatmul.mubr.bf16.gmra.mrb[0].mxu0 %v1260
      %v1937 = vpop.f32.mrb[0].mxu0
      %v1938 = vadd.f32 %v442, %v1937
      %v1939 = vpop.f32.mrb[0].mxu0
      %v1940 = vpop.f32.mrb[0].mxu0
      %v1941 = vadd.f32 %v442, %v1940
      %v1942 = vpop.f32.mrb[0].mxu0
      %1943 = vmatprep.mubr.bf16.mxu0 0
      %1944 = vmatmul.mubr.bf16.gmra.mrb[0].mxu0 %v1263
      %v1945 = vpop.f32.mrb[0].mxu0
      %v1946 = vadd.f32 %v442, %v1945
      %v1947 = vpop.f32.mrb[0].mxu0
      %v1948 = vpop.f32.mrb[0].mxu0
      %v1949 = vadd.f32 %v442, %v1948
      %v1950 = vpop.f32.mrb[0].mxu0
      %1951 = vmatprep.mubr.bf16.mxu0 0
      %1952 = vmatmul.mubr.bf16.gmra.mrb[0].mxu0 %v1266
      %v1953 = vpop.f32.mrb[0].mxu0
      %v1954 = vadd.f32 %v442, %v1953
      %v1955 = vpop.f32.mrb[0].mxu0
      %v1956 = vpop.f32.mrb[0].mxu0
      %v1957 = vadd.f32 %v442, %v1956
      %v1958 = vpop.f32.mrb[0].mxu0
      %1959 = vmatprep.mubr.bf16.mxu0 0
      %1960 = vmatmul.mubr.bf16.gmra.mrb[0].mxu0 %v1269
      %v1961 = vpop.f32.mrb[0].mxu0
      %v1962 = vadd.f32 %v442, %v1961
      %v1963 = vpop.f32.mrb[0].mxu0
      %v1964 = vpop.f32.mrb[0].mxu0
      %v1965 = vadd.f32 %v442, %v1964
      %v1966 = vpop.f32.mrb[0].mxu0
      %1967 = vmatprep.mubr.bf16.mxu0 0
      %1968 = vmatmul.mubr.bf16.gmra.mrb[0].mxu0 %v1272
      %v1969 = vpop.f32.mrb[0].mxu0
      %v1970 = vadd.f32 %v442, %v1969
      %v1971 = vpop.f32.mrb[0].mxu0
      %v1972 = vpop.f32.mrb[0].mxu0
      %v1973 = vadd.f32 %v442, %v1972
      %v1974 = vpop.f32.mrb[0].mxu0
      %1975 = vmatprep.mubr.bf16.mxu0 0
      %1976 = vmatmul.mubr.bf16.gmra.mrb[0].mxu0 %v1275
      %v1977 = vpop.f32.mrb[0].mxu0
      %v1978 = vadd.f32 %v442, %v1977
      %v1979 = vpop.f32.mrb[0].mxu0
      %v1980 = vpop.f32.mrb[0].mxu0
      %v1981 = vadd.f32 %v442, %v1980
      %v1982 = vpop.f32.mrb[0].mxu0
      %1983 = vmatprep.mubr.bf16.mxu0 0
      %1984 = vmatmul.mubr.bf16.gmra.mrb[0].mxu0 %v1278
      %v1985 = vpop.f32.mrb[0].mxu0
      %v1986 = vadd.f32 %v442, %v1985
      %v1987 = vpop.f32.mrb[0].mxu0
      %v1988 = vpop.f32.mrb[0].mxu0
      %v1989 = vadd.f32 %v442, %v1988
      %v1990 = vpop.f32.mrb[0].mxu0
      %1991 = vmatprep.mubr.bf16.mxu0 0
      %1992 = vmatmul.mubr.bf16.gmra.mrb[0].mxu0 %v1281
      %v1993 = vpop.f32.mrb[0].mxu0
      %v1994 = vadd.f32 %v442, %v1993
      %v1995 = vpop.f32.mrb[0].mxu0
      %v1996 = vpop.f32.mrb[0].mxu0
      %v1997 = vadd.f32 %v442, %v1996
      %v1998 = vpop.f32.mrb[0].mxu0
      %1999 = vmatprep.mubr.bf16.mxu0 0
      %2000 = vmatmul.mubr.bf16.gmra.mrb[0].mxu0 %v1284
      %v2001 = vpop.f32.mrb[0].mxu0
      %v2002 = vadd.f32 %v442, %v2001
      %v2003 = vpop.f32.mrb[0].mxu0
      %v2004 = vpop.f32.mrb[0].mxu0
      %v2005 = vadd.f32 %v442, %v2004
      %v2006 = vpop.f32.mrb[0].mxu0
      %2007 = vmatprep.mubr.bf16.mxu0 0
      %2008 = vmatmul.mubr.bf16.gmra.mrb[0].mxu0 %v1287
      %v2009 = vpop.f32.mrb[0].mxu0
      %v2010 = vadd.f32 %v442, %v2009
      %v2011 = vpop.f32.mrb[0].mxu0
      %v2012 = vpop.f32.mrb[0].mxu0
      %v2013 = vadd.f32 %v442, %v2012
      %v2014 = vpop.f32.mrb[0].mxu0
      %2015 = vmatprep.mubr.bf16.mxu0 0
      %2016 = vmatmul.mubr.bf16.gmra.mrb[0].mxu0 %v1290
      %v2017 = vpop.f32.mrb[0].mxu0
      %v2018 = vadd.f32 %v442, %v2017
      %v2019 = vpop.f32.mrb[0].mxu0
      %v2020 = vpop.f32.mrb[0].mxu0
      %v2021 = vadd.f32 %v442, %v2020
      %v2022 = vpop.f32.mrb[0].mxu0
      %2023 = vmatprep.mubr.bf16.mxu0 0
      %2024 = vmatmul.mubr.bf16.gmra.mrb[0].mxu0 %v1293
      %v2025 = vpop.f32.mrb[0].mxu0
      %v2026 = vadd.f32 %v442, %v2025
      %v2027 = vpop.f32.mrb[0].mxu0
      %v2028 = vpop.f32.mrb[0].mxu0
      %v2029 = vadd.f32 %v442, %v2028
      %v2030 = vpop.f32.mrb[0].mxu0
      %2031 = vmatprep.mubr.bf16.mxu0 0
      %2032 = vmatmul.mubr.bf16.gmra.mrb[0].mxu0 %v1296
      %v2033 = vpop.f32.mrb[0].mxu0
      %v2034 = vadd.f32 %v442, %v2033
      %v2035 = vpop.f32.mrb[0].mxu0
      %v2036 = vpop.f32.mrb[0].mxu0
      %v2037 = vadd.f32 %v442, %v2036
      %v2038 = vpop.f32.mrb[0].mxu0
      %2039 = vmatprep.mubr.bf16.mxu0 0
      %2040 = vmatmul.mubr.bf16.gmra.mrb[0].mxu0 %v1299
      %v2041 = vpop.f32.mrb[0].mxu0
      %v2042 = vadd.f32 %v442, %v2041
      %v2043 = vpop.f32.mrb[0].mxu0
      %v2044 = vpop.f32.mrb[0].mxu0
      %v2045 = vadd.f32 %v442, %v2044
      %v2046 = vpop.f32.mrb[0].mxu0
      %2047 = vmatprep.mubr.bf16.mxu0 0
      %2048 = vmatmul.mubr.bf16.gmra.mrb[0].mxu0 %v1302
      %v2049 = vpop.f32.mrb[0].mxu0
      %v2050 = vadd.f32 %v442, %v2049
      %v2051 = vpop.f32.mrb[0].mxu0
      %v2052 = vpop.f32.mrb[0].mxu0
      %v2053 = vadd.f32 %v442, %v2052
      %v2054 = vpop.f32.mrb[0].mxu0
      %2055 = vmatprep.mubr.bf16.mxu0 0
      %2056 = vmatmul.mubr.bf16.gmra.mrb[0].mxu0 %v1305
      %v2057 = vpop.f32.mrb[0].mxu0
      %v2058 = vadd.f32 %v442, %v2057
      %v2059 = vpop.f32.mrb[0].mxu0
      %v2060 = vpop.f32.mrb[0].mxu0
      %v2061 = vadd.f32 %v442, %v2060
      %v2062 = vpop.f32.mrb[0].mxu0
      %2063 = vmatprep.mubr.bf16.mxu0 0
      %2064 = vmatmul.mubr.bf16.gmra.mrb[0].mxu0 %v1308
      %v2065 = vpop.f32.mrb[0].mxu0
      %v2066 = vadd.f32 %v442, %v2065
      %v2067 = vpop.f32.mrb[0].mxu0
      %v2068 = vpop.f32.mrb[0].mxu0
      %v2069 = vadd.f32 %v442, %v2068
      %v2070 = vpop.f32.mrb[0].mxu0
      %2071 = vmatprep.mubr.bf16.mxu0 0
      %2072 = vmatmul.mubr.bf16.gmra.mrb[0].mxu0 %v1311
      %v2073 = vpop.f32.mrb[0].mxu0
      %v2074 = vadd.f32 %v442, %v2073
      %v2075 = vpop.f32.mrb[0].mxu0
      %v2076 = vpop.f32.mrb[0].mxu0
      %v2077 = vadd.f32 %v442, %v2076
      %v2078 = vpop.f32.mrb[0].mxu0
      %2079 = vmatprep.mubr.bf16.mxu0 0
      %2080 = vmatmul.mubr.bf16.gmra.mrb[0].mxu0 %v1314
      %v2081 = vpop.f32.mrb[0].mxu0
      %v2082 = vadd.f32 %v442, %v2081
      %v2083 = vpop.f32.mrb[0].mxu0
      %v2084 = vpop.f32.mrb[0].mxu0
      %v2085 = vadd.f32 %v442, %v2084
      %v2086 = vpop.f32.mrb[0].mxu0
      %2087 = vmatprep.mubr.bf16.mxu0 0
      %2088 = vmatmul.mubr.bf16.gmra.mrb[0].mxu0 %v1317
      %v2089 = vpop.f32.mrb[0].mxu0
      %v2090 = vadd.f32 %v442, %v2089
      %v2091 = vpop.f32.mrb[0].mxu0
      %v2092 = vpop.f32.mrb[0].mxu0
      %v2093 = vadd.f32 %v442, %v2092
      %v2094 = vpop.f32.mrb[0].mxu0
      %2095 = vmatprep.mubr.bf16.mxu0 0
      %2096 = vmatmul.mubr.bf16.gmra.mrb[0].mxu0 %v1320
      %v2097 = vpop.f32.mrb[0].mxu0
      %v2098 = vadd.f32 %v442, %v2097
      %v2099 = vpop.f32.mrb[0].mxu0
      %v2100 = vpop.f32.mrb[0].mxu0
      %v2101 = vadd.f32 %v442, %v2100
      %v2102 = vpop.f32.mrb[0].mxu0
      %2103 = vmatprep.mubr.bf16.mxu0 0
      %2104 = vmatmul.mubr.bf16.gmra.mrb[0].mxu0 %v1323
      %v2105 = vpop.f32.mrb[0].mxu0
      %v2106 = vadd.f32 %v442, %v2105
      %v2107 = vpop.f32.mrb[0].mxu0
      %v2108 = vpop.f32.mrb[0].mxu0
      %v2109 = vadd.f32 %v442, %v2108
      %v2110 = vpop.f32.mrb[0].mxu0
      %2111 = vmatprep.mubr.bf16.mxu0 0
      %2112 = vmatmul.mubr.bf16.gmra.mrb[0].mxu0 %v1326
      %v2113 = vpop.f32.mrb[0].mxu0
      %v2114 = vadd.f32 %v442, %v2113
      %v2115 = vpop.f32.mrb[0].mxu0
      %v2116 = vpop.f32.mrb[0].mxu0
      %v2117 = vadd.f32 %v442, %v2116
      %v2118 = vpop.f32.mrb[0].mxu0
      %2119 = vmatprep.mubr.bf16.mxu0 0
      %2120 = vmatmul.mubr.bf16.gmra.mrb[0].mxu0 %v1329
      %v2121 = vpop.f32.mrb[0].mxu0
      %v2122 = vadd.f32 %v442, %v2121
      %v2123 = vpop.f32.mrb[0].mxu0
      %v2124 = vpop.f32.mrb[0].mxu0
      %v2125 = vadd.f32 %v442, %v2124
      %v2126 = vpop.f32.mrb[0].mxu0
      %2127 = vmatprep.mubr.bf16.mxu0 0
      %2128 = vmatmul.mubr.bf16.gmra.mrb[0].mxu0 %v1332
      %v2129 = vpop.f32.mrb[0].mxu0
      %v2130 = vadd.f32 %v442, %v2129
      %v2131 = vpop.f32.mrb[0].mxu0
      %v2132 = vpop.f32.mrb[0].mxu0
      %v2133 = vadd.f32 %v442, %v2132
      %v2134 = vpop.f32.mrb[0].mxu0
      %2135 = vmatprep.mubr.bf16.mxu0 0
      %2136 = vmatmul.mubr.bf16.gmra.mrb[0].mxu0 %v1335
      %v2137 = vpop.f32.mrb[0].mxu0
      %v2138 = vadd.f32 %v442, %v2137
      %v2139 = vpop.f32.mrb[0].mxu0
      %v2140 = vpop.f32.mrb[0].mxu0
      %v2141 = vadd.f32 %v442, %v2140
      %v2142 = vpop.f32.mrb[0].mxu0
      %2143 = vmatprep.mubr.bf16.mxu0 0
      %2144 = vmatmul.mubr.bf16.gmra.mrb[0].mxu0 %v1338
      %v2145 = vpop.f32.mrb[0].mxu0
      %v2146 = vadd.f32 %v442, %v2145
      %v2147 = vpop.f32.mrb[0].mxu0
      %v2148 = vpop.f32.mrb[0].mxu0
      %v2149 = vadd.f32 %v442, %v2148
      %v2150 = vpop.f32.mrb[0].mxu0
      %2151 = vmatprep.mubr.bf16.mxu0 0
      %2152 = vmatmul.mubr.bf16.gmra.mrb[0].mxu0 %v1341
      %v2153 = vpop.f32.mrb[0].mxu0
      %v2154 = vadd.f32 %v442, %v2153
      %v2155 = vpop.f32.mrb[0].mxu0
      %v2156 = vpop.f32.mrb[0].mxu0
      %v2157 = vadd.f32 %v442, %v2156
      %v2158 = vpop.f32.mrb[0].mxu0
      %2159 = vmatprep.mubr.bf16.mxu0 0
      %2160 = vmatmul.mubr.bf16.gmra.mrb[0].mxu0 %v1344
      %v2161 = vpop.f32.mrb[0].mxu0
      %v2162 = vadd.f32 %v442, %v2161
      %v2163 = vpop.f32.mrb[0].mxu0
      %v2164 = vpop.f32.mrb[0].mxu0
      %v2165 = vadd.f32 %v442, %v2164
      %v2166 = vpop.f32.mrb[0].mxu0
      %2167 = vmatprep.mubr.bf16.mxu0 0
      %2168 = vmatmul.mubr.bf16.gmra.mrb[0].mxu0 %v1347
      %v2169 = vpop.f32.mrb[0].mxu0
      %v2170 = vadd.f32 %v442, %v2169
      %v2171 = vpop.f32.mrb[0].mxu0
      %v2172 = vpop.f32.mrb[0].mxu0
      %v2173 = vadd.f32 %v442, %v2172
      %v2174 = vpop.f32.mrb[0].mxu0
      %2175 = vmatprep.mubr.bf16.mxu0 0
      %2176 = vmatmul.mubr.bf16.gmra.mrb[0].mxu0 %v1350
      %v2177 = vpop.f32.mrb[0].mxu0
      %v2178 = vadd.f32 %v442, %v2177
      %v2179 = vpop.f32.mrb[0].mxu0
      %v2180 = vpop.f32.mrb[0].mxu0
      %v2181 = vadd.f32 %v442, %v2180
      %v2182 = vpop.f32.mrb[0].mxu0
      %2183 = vmatprep.mubr.bf16.mxu0 0
      %2184 = vmatmul.mubr.bf16.gmra.mrb[0].mxu0 %v1353
      %v2185 = vpop.f32.mrb[0].mxu0
      %v2186 = vadd.f32 %v442, %v2185
      %v2187 = vpop.f32.mrb[0].mxu0
      %v2188 = vpop.f32.mrb[0].mxu0
      %v2189 = vadd.f32 %v442, %v2188
      %v2190 = vpop.f32.mrb[0].mxu0
      %2191 = vmatprep.mubr.bf16.mxu0 0
      %2192 = vmatmul.mubr.bf16.gmra.mrb[0].mxu0 %v1356
      %v2193 = vpop.f32.mrb[0].mxu0
      %v2194 = vadd.f32 %v442, %v2193
      %v2195 = vpop.f32.mrb[0].mxu0
      %v2196 = vpop.f32.mrb[0].mxu0
      %v2197 = vadd.f32 %v442, %v2196
      %v2198 = vpop.f32.mrb[0].mxu0
      %2199 = vmatprep.mubr.bf16.mxu0 0
      %2200 = vmatmul.mubr.bf16.gmra.mrb[0].mxu0 %v1359
      %v2201 = vpop.f32.mrb[0].mxu0
      %v2202 = vadd.f32 %v442, %v2201
      %v2203 = vpop.f32.mrb[0].mxu0
      %v2204 = vpop.f32.mrb[0].mxu0
      %v2205 = vadd.f32 %v442, %v2204
      %v2206 = vpop.f32.mrb[0].mxu0
      %2207 = vmatprep.mubr.bf16.mxu0 0
      %2208 = vmatmul.mubr.bf16.gmra.mrb[0].mxu0 %v1362
      %v2209 = vpop.f32.mrb[0].mxu0
      %v2210 = vadd.f32 %v442, %v2209
      %v2211 = vpop.f32.mrb[0].mxu0
      %v2212 = vpop.f32.mrb[0].mxu0
      %v2213 = vadd.f32 %v442, %v2212
      %v2214 = vpop.f32.mrb[0].mxu0
      %2215 = vmatprep.mubr.bf16.mxu0 0
      %2216 = vmatmul.mubr.bf16.gmra.mrb[0].mxu0 %v1365
      %v2217 = vpop.f32.mrb[0].mxu0
      %v2218 = vadd.f32 %v442, %v2217
      %v2219 = vpop.f32.mrb[0].mxu0
      %v2220 = vpop.f32.mrb[0].mxu0
      %v2221 = vadd.f32 %v442, %v2220
      %v2222 = vpop.f32.mrb[0].mxu0
      %2223 = vmatprep.mubr.bf16.mxu0 0
      %2224 = vmatmul.mubr.bf16.gmra.mrb[0].mxu0 %v1368
      %v2225 = vpop.f32.mrb[0].mxu0
      %v2226 = vadd.f32 %v442, %v2225
      %v2227 = vpop.f32.mrb[0].mxu0
      %v2228 = vpop.f32.mrb[0].mxu0
      %v2229 = vadd.f32 %v442, %v2228
      %v2230 = vpop.f32.mrb[0].mxu0
      %2231 = vmatprep.mubr.bf16.mxu0 0
      %2232 = vmatmul.mubr.bf16.gmra.mrb[0].mxu0 %v1371
      %v2233 = vpop.f32.mrb[0].mxu0
      %v2234 = vadd.f32 %v442, %v2233
      %v2235 = vpop.f32.mrb[0].mxu0
      %v2236 = vpop.f32.mrb[0].mxu0
      %v2237 = vadd.f32 %v442, %v2236
      %v2238 = vpop.f32.mrb[0].mxu0
      %2239 = vmatprep.mubr.bf16.mxu0 0
      %2240 = vmatmul.mubr.bf16.gmra.mrb[0].mxu0 %v1374
      %v2241 = vpop.f32.mrb[0].mxu0
      %v2242 = vadd.f32 %v442, %v2241
      %v2243 = vpop.f32.mrb[0].mxu0
      %v2244 = vpop.f32.mrb[0].mxu0
      %v2245 = vadd.f32 %v442, %v2244
      %v2246 = vpop.f32.mrb[0].mxu0
      %2247 = vmatprep.mubr.bf16.mxu0 0
      %2248 = vmatmul.mubr.bf16.gmra.mrb[0].mxu0 %v1377
      %v2249 = vpop.f32.mrb[0].mxu0
      %v2250 = vadd.f32 %v442, %v2249
      %v2251 = vpop.f32.mrb[0].mxu0
      %v2252 = vpop.f32.mrb[0].mxu0
      %v2253 = vadd.f32 %v442, %v2252
      %v2254 = vpop.f32.mrb[0].mxu0
      %2255 = vmatprep.mubr.bf16.mxu0 0
      %2256 = vmatmul.mubr.bf16.gmra.mrb[0].mxu0 %v1380
      %v2257 = vpop.f32.mrb[0].mxu0
      %v2258 = vadd.f32 %v442, %v2257
      %v2259 = vpop.f32.mrb[0].mxu0
      %v2260 = vpop.f32.mrb[0].mxu0
      %v2261 = vadd.f32 %v442, %v2260
      %v2262 = vpop.f32.mrb[0].mxu0
      %2263 = vmatprep.mubr.bf16.mxu0 0
      %2264 = vmatmul.mubr.bf16.gmra.mrb[0].mxu0 %v1383
      %v2265 = vpop.f32.mrb[0].mxu0
      %v2266 = vadd.f32 %v442, %v2265
      %v2267 = vpop.f32.mrb[0].mxu0
      %v2268 = vpop.f32.mrb[0].mxu0
      %v2269 = vadd.f32 %v442, %v2268
      %v2270 = vpop.f32.mrb[0].mxu0
      %2271 = vmatprep.mubr.bf16.mxu0 0
      %2272 = vmatmul.mubr.bf16.gmra.mrb[0].mxu0 %v1386
      %v2273 = vpop.f32.mrb[0].mxu0
      %v2274 = vadd.f32 %v442, %v2273
      %v2275 = vpop.f32.mrb[0].mxu0
      %v2276 = vpop.f32.mrb[0].mxu0
      %v2277 = vadd.f32 %v442, %v2276
      %v2278 = vpop.f32.mrb[0].mxu0
      %2279 = vmatprep.mubr.bf16.mxu0 0
      %2280 = vmatmul.mubr.bf16.gmra.mrb[0].mxu0 %v1389
      %v2281 = vpop.f32.mrb[0].mxu0
      %v2282 = vadd.f32 %v442, %v2281
      %v2283 = vpop.f32.mrb[0].mxu0
      %v2284 = vpop.f32.mrb[0].mxu0
      %v2285 = vadd.f32 %v442, %v2284
      %v2286 = vpop.f32.mrb[0].mxu0
      %2287 = vmatprep.mubr.bf16.mxu0 0
      %2288 = vmatmul.mubr.bf16.gmra.mrb[0].mxu0 %v1392
      %v2289 = vpop.f32.mrb[0].mxu0
      %v2290 = vadd.f32 %v442, %v2289
      %v2291 = vpop.f32.mrb[0].mxu0
      %v2292 = vpop.f32.mrb[0].mxu0
      %v2293 = vadd.f32 %v442, %v2292
      %v2294 = vpop.f32.mrb[0].mxu0
      %2295 = vmatprep.mubr.bf16.mxu0 0
      %2296 = vmatmul.mubr.bf16.gmra.mrb[0].mxu0 %v1395
      %v2297 = vpop.f32.mrb[0].mxu0
      %v2298 = vadd.f32 %v442, %v2297
      %v2299 = vpop.f32.mrb[0].mxu0
      %v2300 = vpop.f32.mrb[0].mxu0
      %v2301 = vadd.f32 %v442, %v2300
      %v2302 = vpop.f32.mrb[0].mxu0
      %2303 = vmatprep.mubr.bf16.mxu0 0
      %2304 = vmatmul.mubr.bf16.gmra.mrb[0].mxu0 %v1398
      %v2305 = vpop.f32.mrb[0].mxu0
      %v2306 = vadd.f32 %v442, %v2305
      %v2307 = vpop.f32.mrb[0].mxu0
      %v2308 = vpop.f32.mrb[0].mxu0
      %v2309 = vadd.f32 %v442, %v2308
      %v2310 = vpop.f32.mrb[0].mxu0
      %2311 = vmatprep.mubr.bf16.mxu0 0
      %2312 = vmatmul.mubr.bf16.gmra.mrb[0].mxu0 %v1401
      %v2313 = vpop.f32.mrb[0].mxu0
      %v2314 = vadd.f32 %v442, %v2313
      %v2315 = vpop.f32.mrb[0].mxu0
      %v2316 = vpop.f32.mrb[0].mxu0
      %v2317 = vadd.f32 %v442, %v2316
      %v2318 = vpop.f32.mrb[0].mxu0
      %2319 = vmatprep.mubr.bf16.mxu0 0
      %2320 = vmatmul.mubr.bf16.gmra.mrb[0].mxu0 %v1404
      %v2321 = vpop.f32.mrb[0].mxu0
      %v2322 = vadd.f32 %v442, %v2321
      %v2323 = vpop.f32.mrb[0].mxu0
      %v2324 = vpop.f32.mrb[0].mxu0
      %v2325 = vadd.f32 %v442, %v2324
      %v2326 = vpop.f32.mrb[0].mxu0
      %2327 = vmatprep.mubr.bf16.mxu0 0
      %2328 = vmatmul.mubr.bf16.gmra.mrb[0].mxu0 %v1407
      %v2329 = vpop.f32.mrb[0].mxu0
      %v2330 = vadd.f32 %v442, %v2329
      %v2331 = vpop.f32.mrb[0].mxu0
      %v2332 = vpop.f32.mrb[0].mxu0
      %v2333 = vadd.f32 %v442, %v2332
      %v2334 = vpop.f32.mrb[0].mxu0
      %2335 = vmatprep.mubr.bf16.mxu0 0
      %2336 = vmatmul.mubr.bf16.gmra.mrb[0].mxu0 %v1410
      %v2337 = vpop.f32.mrb[0].mxu0
      %v2338 = vadd.f32 %v442, %v2337
      %v2339 = vpop.f32.mrb[0].mxu0
      %v2340 = vpop.f32.mrb[0].mxu0
      %v2341 = vadd.f32 %v442, %v2340
      %v2342 = vpop.f32.mrb[0].mxu0
      %2343 = vmatprep.mubr.bf16.mxu0 0
      %2344 = vmatmul.mubr.bf16.gmra.mrb[0].mxu0 %v1413
      %v2345 = vpop.f32.mrb[0].mxu0
      %v2346 = vadd.f32 %v442, %v2345
      %v2347 = vpop.f32.mrb[0].mxu0
      %v2348 = vpop.f32.mrb[0].mxu0
      %v2349 = vadd.f32 %v442, %v2348
      %v2350 = vpop.f32.mrb[0].mxu0
      %2351 = vmatprep.mubr.bf16.mxu0 0
      %2352 = vmatmul.mubr.bf16.gmra.mrb[0].mxu0 %v1416
      %v2353 = vpop.f32.mrb[0].mxu0
      %v2354 = vadd.f32 %v442, %v2353
      %v2355 = vpop.f32.mrb[0].mxu0
      %v2356 = vpop.f32.mrb[0].mxu0
      %v2357 = vadd.f32 %v442, %v2356
      %v2358 = vpop.f32.mrb[0].mxu0
      %2359 = vmatprep.mubr.bf16.mxu0 0
      %2360 = vmatmul.mubr.bf16.gmra.mrb[0].mxu0 %v1419
      %v2361 = vpop.f32.mrb[0].mxu0
      %v2362 = vadd.f32 %v442, %v2361
      %v2363 = vpop.f32.mrb[0].mxu0
      %v2364 = vpop.f32.mrb[0].mxu0
      %v2365 = vadd.f32 %v442, %v2364
      %v2366 = vpop.f32.mrb[0].mxu0
      %2367 = vmatprep.mubr.bf16.mxu0 0
      %2368 = vmatmul.mubr.bf16.gmra.mrb[0].mxu0 %v1422
      %v2369 = vpop.f32.mrb[0].mxu0
      %v2370 = vadd.f32 %v442, %v2369
      %v2371 = vpop.f32.mrb[0].mxu0
      %v2372 = vpop.f32.mrb[0].mxu0
      %v2373 = vadd.f32 %v442, %v2372
      %v2374 = vpop.f32.mrb[0].mxu0
      %2375 = vmatprep.mubr.bf16.mxu0 0
      %2376 = vmatmul.mubr.bf16.gmra.mrb[0].mxu0 %v1425
      %v2377 = vpop.f32.mrb[0].mxu0
      %v2378 = vadd.f32 %v442, %v2377
      %v2379 = vpop.f32.mrb[0].mxu0
      %v2380 = vpop.f32.mrb[0].mxu0
      %v2381 = vadd.f32 %v442, %v2380
      %v2382 = vpop.f32.mrb[0].mxu0
      %2383 = vmatprep.mubr.bf16.mxu0 0
      %2384 = vmatmul.mubr.bf16.gmra.mrb[0].mxu0 %v1428
      %v2385 = vpop.f32.mrb[0].mxu0
      %v2386 = vadd.f32 %v442, %v2385
      %v2387 = vpop.f32.mrb[0].mxu0
      %v2388 = vpop.f32.mrb[0].mxu0
      %v2389 = vadd.f32 %v442, %v2388
      %v2390 = vpop.f32.mrb[0].mxu0
      %2391 = vmatprep.mubr.bf16.mxu0 0
      %2392 = vmatmul.mubr.bf16.gmra.mrb[0].mxu0 %v1431
      %v2393 = vpop.f32.mrb[0].mxu0
      %v2394 = vadd.f32 %v442, %v2393
      %v2395 = vpop.f32.mrb[0].mxu0
      %v2396 = vpop.f32.mrb[0].mxu0
      %v2397 = vadd.f32 %v442, %v2396
      %v2398 = vpop.f32.mrb[0].mxu0
      %2399 = vmatprep.mubr.bf16.mxu0 0
      %2400 = vmatmul.mubr.bf16.gmra.mrb[0].mxu0 %v1434
      %v2401 = vpop.f32.mrb[0].mxu0
      %v2402 = vadd.f32 %v442, %v2401
      %v2403 = vpop.f32.mrb[0].mxu0
      %v2404 = vpop.f32.mrb[0].mxu0
      %v2405 = vadd.f32 %v442, %v2404
      %v2406 = vpop.f32.mrb[0].mxu0
      %2407 = vmatprep.mubr.bf16.mxu0 0
      %2408 = vmatmul.mubr.bf16.gmra.mrb[0].mxu0 %v1437
      %v2409 = vpop.f32.mrb[0].mxu0
      %v2410 = vadd.f32 %v442, %v2409
      %v2411 = vpop.f32.mrb[0].mxu0
      %v2412 = vpop.f32.mrb[0].mxu0
      %v2413 = vadd.f32 %v442, %v2412
      %v2414 = vpop.f32.mrb[0].mxu0
      %2415 = vmatprep.mubr.bf16.mxu0 0
      %2416 = vmatmul.mubr.bf16.gmra.mrb[0].mxu0 %v1440
      %v2417 = vpop.f32.mrb[0].mxu0
      %v2418 = vadd.f32 %v442, %v2417
      %v2419 = vpop.f32.mrb[0].mxu0
      %v2420 = vpop.f32.mrb[0].mxu0
      %v2421 = vadd.f32 %v442, %v2420
      %v2422 = vpop.f32.mrb[0].mxu0
      %2423 = vmatprep.mubr.bf16.mxu0 0
      %2424 = vmatmul.mubr.bf16.gmra.mrb[0].mxu0 %v1443
      %v2425 = vpop.f32.mrb[0].mxu0
      %v2426 = vadd.f32 %v442, %v2425
      %v2427 = vpop.f32.mrb[0].mxu0
      %v2428 = vpop.f32.mrb[0].mxu0
      %v2429 = vadd.f32 %v442, %v2428
      %v2430 = vpop.f32.mrb[0].mxu0
      %2431 = vmatprep.mubr.bf16.mxu0 0
      %2432 = vmatmul.mubr.bf16.gmra.mrb[0].mxu0 %v1446
      %v2433 = vpop.f32.mrb[0].mxu0
      %v2434 = vadd.f32 %v442, %v2433
      %v2435 = vpop.f32.mrb[0].mxu0
      %v2436 = vpop.f32.mrb[0].mxu0
      %v2437 = vadd.f32 %v442, %v2436
      %v2438 = vpop.f32.mrb[0].mxu0
      %2439 = vmatprep.mubr.bf16.mxu0 0
      %2440 = vmatmul.mubr.bf16.gmra.mrb[0].mxu0 %v1449
      %v2441 = vpop.f32.mrb[0].mxu0
      %v2442 = vadd.f32 %v442, %v2441
      %v2443 = vpop.f32.mrb[0].mxu0
      %v2444 = vpop.f32.mrb[0].mxu0
      %v2445 = vadd.f32 %v442, %v2444
      %v2446 = vpop.f32.mrb[0].mxu0
      %2447 = vmatprep.mubr.bf16.mxu0 0
      %2448 = vmatmul.mubr.bf16.gmra.mrb[0].mxu0 %v1452
      %v2449 = vpop.f32.mrb[0].mxu0
      %v2450 = vadd.f32 %v442, %v2449
      %v2451 = vpop.f32.mrb[0].mxu0
      %v2452 = vpop.f32.mrb[0].mxu0
      %v2453 = vadd.f32 %v442, %v2452
      %v2454 = vpop.f32.mrb[0].mxu0
      %2455 = vmatprep.mubr.bf16.mxu0 0
      %2456 = vmatmul.mubr.bf16.gmra.mrb[0].mxu0 %v1455
      %v2457 = vpop.f32.mrb[0].mxu0
      %v2458 = vadd.f32 %v442, %v2457
      %v2459 = vpop.f32.mrb[0].mxu0
      %v2460 = vpop.f32.mrb[0].mxu0
      %v2461 = vadd.f32 %v442, %v2460
      %v2462 = vpop.f32.mrb[0].mxu0
      %2463 = vmatprep.mubr.bf16.mxu0 0
      %2464 = vmatmul.mubr.bf16.gmra.mrb[0].mxu0 %v1458
      %v2465 = vpop.f32.mrb[0].mxu0
      %v2466 = vadd.f32 %v442, %v2465
      %v2467 = vpop.f32.mrb[0].mxu0
      %v2468 = vpop.f32.mrb[0].mxu0
      %v2469 = vadd.f32 %v442, %v2468
      %v2470 = vpop.f32.mrb[0].mxu0
      %2471 = vmatprep.mubr.bf16.mxu0 0
      %2472 = vmatmul.mubr.bf16.gmra.mrb[0].mxu0 %v1461
      %v2473 = vpop.f32.mrb[0].mxu0
      %v2474 = vadd.f32 %v442, %v2473
      %v2475 = vpop.f32.mrb[0].mxu0
      %v2476 = vpop.f32.mrb[0].mxu0
      %v2477 = vadd.f32 %v442, %v2476
      %v2478 = vpop.f32.mrb[0].mxu0
      %2479 = vmatprep.mubr.bf16.mxu0 0
      %2480 = vmatmul.mubr.bf16.gmra.mrb[0].mxu0 %v1464
      %v2481 = vpop.f32.mrb[0].mxu0
      %v2482 = vadd.f32 %v442, %v2481
      %v2483 = vpop.f32.mrb[0].mxu0
      %v2484 = vpop.f32.mrb[0].mxu0
      %v2485 = vadd.f32 %v442, %v2484
      %v2486 = vpop.f32.mrb[0].mxu0
      %2487 = vmatprep.mubr.bf16.mxu0 0
      %2488 = vmatmul.mubr.bf16.gmra.mrb[0].mxu0 %v1467
      %v2489 = vpop.f32.mrb[0].mxu0
      %v2490 = vadd.f32 %v442, %v2489
      %v2491 = vpop.f32.mrb[0].mxu0
      %v2492 = vpop.f32.mrb[0].mxu0
      %v2493 = vadd.f32 %v442, %v2492
      %v2494 = vpop.f32.mrb[0].mxu0
      %2495 = vmatprep.mubr.bf16.mxu0 0
      %2496 = vmatmul.mubr.bf16.gmra.mrb[0].mxu0 %v1470
      %v2497 = vpop.f32.mrb[0].mxu0
      %v2498 = vadd.f32 %v442, %v2497
      %v2499 = vpop.f32.mrb[0].mxu0
      %v2500 = vpop.f32.mrb[0].mxu0
      %v2501 = vadd.f32 %v442, %v2500
      %v2502 = vpop.f32.mrb[0].mxu0
      %2503 = vmatprep.mubr.bf16.mxu0 0
      %2504 = vmatmul.mubr.bf16.gmra.mrb[0].mxu0 %v1473
      %v2505 = vpop.f32.mrb[0].mxu0
      %v2506 = vadd.f32 %v442, %v2505
      %v2507 = vpop.f32.mrb[0].mxu0
      %v2508 = vpop.f32.mrb[0].mxu0
      %v2509 = vadd.f32 %v442, %v2508
      %v2510 = vpop.f32.mrb[0].mxu0
      %2511 = vmatprep.mubr.bf16.mxu0 0
      %2512 = vmatmul.mubr.bf16.gmra.mrb[0].mxu0 %v1476
      %v2513 = vpop.f32.mrb[0].mxu0
      %v2514 = vadd.f32 %v442, %v2513
      %v2515 = vpop.f32.mrb[0].mxu0
      %v2516 = vpop.f32.mrb[0].mxu0
      %v2517 = vadd.f32 %v442, %v2516
      %v2518 = vpop.f32.mrb[0].mxu0
      %2519 = vmatprep.mubr.bf16.mxu0 0
      %2520 = vmatmul.mubr.bf16.gmra.mrb[0].mxu0 %v1479
      %v2521 = vpop.f32.mrb[0].mxu0
      %v2522 = vadd.f32 %v442, %v2521
      %v2523 = vpop.f32.mrb[0].mxu0
      %v2524 = vpop.f32.mrb[0].mxu0
      %v2525 = vadd.f32 %v442, %v2524
      %v2526 = vpop.f32.mrb[0].mxu0
      %2527 = vmatprep.mubr.bf16.mxu0 0
      %2528 = vmatmul.mubr.bf16.gmra.mrb[0].mxu0 %v1482
      %v2529 = vpop.f32.mrb[0].mxu0
      %v2530 = vadd.f32 %v442, %v2529
      %v2531 = vpop.f32.mrb[0].mxu0
      %v2532 = vpop.f32.mrb[0].mxu0
      %v2533 = vadd.f32 %v442, %v2532
      %v2534 = vpop.f32.mrb[0].mxu0
      %2535 = vmatprep.mubr.bf16.mxu0 0
      %2536 = vmatmul.mubr.bf16.gmra.mrb[0].mxu0 %v1485
      %v2537 = vpop.f32.mrb[0].mxu0
      %v2538 = vadd.f32 %v442, %v2537
      %v2539 = vpop.f32.mrb[0].mxu0
      %v2540 = vpop.f32.mrb[0].mxu0
      %v2541 = vadd.f32 %v442, %v2540
      %v2542 = vpop.f32.mrb[0].mxu0
      %2543 = vdwg.mxu0
      %v2544 = vmax.f32 %v1522, 0.0
      %v2545 = vmax.f32 %v1525, 0.0
      %v2546 = vmax.f32 %v1530, 0.0
      %v2547 = vmax.f32 %v1533, 0.0
      %v2548 = vmax.f32 %v1538, 0.0
      %v2549 = vmax.f32 %v1541, 0.0
      %v2550 = vmax.f32 %v1546, 0.0
      %v2551 = vmax.f32 %v1549, 0.0
      %v2552 = vmax.f32 %v1554, 0.0
      %v2553 = vmax.f32 %v1557, 0.0
      %v2554 = vmax.f32 %v1562, 0.0
      %v2555 = vmax.f32 %v1565, 0.0
      %v2556 = vmax.f32 %v1570, 0.0
      %v2557 = vmax.f32 %v1573, 0.0
      %v2558 = vmax.f32 %v1578, 0.0
      %v2559 = vmax.f32 %v1581, 0.0
      %v2560 = vmax.f32 %v1586, 0.0
      %v2561 = vmax.f32 %v1589, 0.0
      %v2562 = vmax.f32 %v1594, 0.0
      %v2563 = vmax.f32 %v1597, 0.0
      %v2564 = vmax.f32 %v1602, 0.0
      %v2565 = vmax.f32 %v1605, 0.0
      %v2566 = vmax.f32 %v1610, 0.0
      %v2567 = vmax.f32 %v1613, 0.0
      %v2568 = vmax.f32 %v1618, 0.0
      %v2569 = vmax.f32 %v1621, 0.0
      %v2570 = vmax.f32 %v1626, 0.0
      %v2571 = vmax.f32 %v1629, 0.0
      %v2572 = vmax.f32 %v1634, 0.0
      %v2573 = vmax.f32 %v1637, 0.0
      %v2574 = vmax.f32 %v1642, 0.0
      %v2575 = vmax.f32 %v1645, 0.0
      %v2576 = vmax.f32 %v1650, 0.0
      %v2577 = vmax.f32 %v1653, 0.0
      %v2578 = vmax.f32 %v1658, 0.0
      %v2579 = vmax.f32 %v1661, 0.0
      %v2580 = vmax.f32 %v1666, 0.0
      %v2581 = vmax.f32 %v1669, 0.0
      %v2582 = vmax.f32 %v1674, 0.0
      %v2583 = vmax.f32 %v1677, 0.0
      %v2584 = vmax.f32 %v1682, 0.0
      %v2585 = vmax.f32 %v1685, 0.0
      %v2586 = vmax.f32 %v1690, 0.0
      %v2587 = vmax.f32 %v1693, 0.0
      %v2588 = vmax.f32 %v1698, 0.0
      %v2589 = vmax.f32 %v1701, 0.0
      %v2590 = vmax.f32 %v1706, 0.0
      %v2591 = vmax.f32 %v1709, 0.0
      %v2592 = vmax.f32 %v1714, 0.0
      %v2593 = vmax.f32 %v1717, 0.0
      %v2594 = vmax.f32 %v1722, 0.0
      %v2595 = vmax.f32 %v1725, 0.0
      %v2596 = vmax.f32 %v1730, 0.0
      %v2597 = vmax.f32 %v1733, 0.0
      %v2598 = vmax.f32 %v1738, 0.0
      %v2599 = vmax.f32 %v1741, 0.0
      %v2600 = vmax.f32 %v1746, 0.0
      %v2601 = vmax.f32 %v1749, 0.0
      %v2602 = vmax.f32 %v1754, 0.0
      %v2603 = vmax.f32 %v1757, 0.0
      %v2604 = vmax.f32 %v1762, 0.0
      %v2605 = vmax.f32 %v1765, 0.0
      %v2606 = vmax.f32 %v1770, 0.0
      %v2607 = vmax.f32 %v1773, 0.0
      %v2608 = vmax.f32 %v1778, 0.0
      %v2609 = vmax.f32 %v1781, 0.0
      %v2610 = vmax.f32 %v1786, 0.0
      %v2611 = vmax.f32 %v1789, 0.0
      %v2612 = vmax.f32 %v1794, 0.0
      %v2613 = vmax.f32 %v1797, 0.0
      %v2614 = vmax.f32 %v1802, 0.0
      %v2615 = vmax.f32 %v1805, 0.0
      %v2616 = vmax.f32 %v1810, 0.0
      %v2617 = vmax.f32 %v1813, 0.0
      %v2618 = vmax.f32 %v1818, 0.0
      %v2619 = vmax.f32 %v1821, 0.0
      %v2620 = vmax.f32 %v1826, 0.0
      %v2621 = vmax.f32 %v1829, 0.0
      %v2622 = vmax.f32 %v1834, 0.0
      %v2623 = vmax.f32 %v1837, 0.0
      %v2624 = vmax.f32 %v1842, 0.0
      %v2625 = vmax.f32 %v1845, 0.0
      %v2626 = vmax.f32 %v1850, 0.0
      %v2627 = vmax.f32 %v1853, 0.0
      %v2628 = vmax.f32 %v1858, 0.0
      %v2629 = vmax.f32 %v1861, 0.0
      %v2630 = vmax.f32 %v1866, 0.0
      %v2631 = vmax.f32 %v1869, 0.0
      %v2632 = vmax.f32 %v1874, 0.0
      %v2633 = vmax.f32 %v1877, 0.0
      %v2634 = vmax.f32 %v1882, 0.0
      %v2635 = vmax.f32 %v1885, 0.0
      %v2636 = vmax.f32 %v1890, 0.0
      %v2637 = vmax.f32 %v1893, 0.0
      %v2638 = vmax.f32 %v1898, 0.0
      %v2639 = vmax.f32 %v1901, 0.0
      %v2640 = vmax.f32 %v1906, 0.0
      %v2641 = vmax.f32 %v1909, 0.0
      %v2642 = vmax.f32 %v1914, 0.0
      %v2643 = vmax.f32 %v1917, 0.0
      %v2644 = vmax.f32 %v1922, 0.0
      %v2645 = vmax.f32 %v1925, 0.0
      %v2646 = vmax.f32 %v1930, 0.0
      %v2647 = vmax.f32 %v1933, 0.0
      %v2648 = vmax.f32 %v1938, 0.0
      %v2649 = vmax.f32 %v1941, 0.0
      %v2650 = vmax.f32 %v1946, 0.0
      %v2651 = vmax.f32 %v1949, 0.0
      %v2652 = vmax.f32 %v1954, 0.0
      %v2653 = vmax.f32 %v1957, 0.0
      %v2654 = vmax.f32 %v1962, 0.0
      %v2655 = vmax.f32 %v1965, 0.0
      %v2656 = vmax.f32 %v1970, 0.0
      %v2657 = vmax.f32 %v1973, 0.0
      %v2658 = vmax.f32 %v1978, 0.0
      %v2659 = vmax.f32 %v1981, 0.0
      %v2660 = vmax.f32 %v1986, 0.0
      %v2661 = vmax.f32 %v1989, 0.0
      %v2662 = vmax.f32 %v1994, 0.0
      %v2663 = vmax.f32 %v1997, 0.0
      %v2664 = vmax.f32 %v2002, 0.0
      %v2665 = vmax.f32 %v2005, 0.0
      %v2666 = vmax.f32 %v2010, 0.0
      %v2667 = vmax.f32 %v2013, 0.0
      %v2668 = vmax.f32 %v2018, 0.0
      %v2669 = vmax.f32 %v2021, 0.0
      %v2670 = vmax.f32 %v2026, 0.0
      %v2671 = vmax.f32 %v2029, 0.0
      %v2672 = vmax.f32 %v2034, 0.0
      %v2673 = vmax.f32 %v2037, 0.0
      %v2674 = vmax.f32 %v2042, 0.0
      %v2675 = vmax.f32 %v2045, 0.0
      %v2676 = vmax.f32 %v2050, 0.0
      %v2677 = vmax.f32 %v2053, 0.0
      %v2678 = vmax.f32 %v2058, 0.0
      %v2679 = vmax.f32 %v2061, 0.0
      %v2680 = vmax.f32 %v2066, 0.0
      %v2681 = vmax.f32 %v2069, 0.0
      %v2682 = vmax.f32 %v2074, 0.0
      %v2683 = vmax.f32 %v2077, 0.0
      %v2684 = vmax.f32 %v2082, 0.0
      %v2685 = vmax.f32 %v2085, 0.0
      %v2686 = vmax.f32 %v2090, 0.0
      %v2687 = vmax.f32 %v2093, 0.0
      %v2688 = vmax.f32 %v2098, 0.0
      %v2689 = vmax.f32 %v2101, 0.0
      %v2690 = vmax.f32 %v2106, 0.0
      %v2691 = vmax.f32 %v2109, 0.0
      %v2692 = vmax.f32 %v2114, 0.0
      %v2693 = vmax.f32 %v2117, 0.0
      %v2694 = vmax.f32 %v2122, 0.0
      %v2695 = vmax.f32 %v2125, 0.0
      %v2696 = vmax.f32 %v2130, 0.0
      %v2697 = vmax.f32 %v2133, 0.0
      %v2698 = vmax.f32 %v2138, 0.0
      %v2699 = vmax.f32 %v2141, 0.0
      %v2700 = vmax.f32 %v2146, 0.0
      %v2701 = vmax.f32 %v2149, 0.0
      %v2702 = vmax.f32 %v2154, 0.0
      %v2703 = vmax.f32 %v2157, 0.0
      %v2704 = vmax.f32 %v2162, 0.0
      %v2705 = vmax.f32 %v2165, 0.0
      %v2706 = vmax.f32 %v2170, 0.0
      %v2707 = vmax.f32 %v2173, 0.0
      %v2708 = vmax.f32 %v2178, 0.0
      %v2709 = vmax.f32 %v2181, 0.0
      %v2710 = vmax.f32 %v2186, 0.0
      %v2711 = vmax.f32 %v2189, 0.0
      %v2712 = vmax.f32 %v2194, 0.0
      %v2713 = vmax.f32 %v2197, 0.0
      %v2714 = vmax.f32 %v2202, 0.0
      %v2715 = vmax.f32 %v2205, 0.0
      %v2716 = vmax.f32 %v2210, 0.0
      %v2717 = vmax.f32 %v2213, 0.0
      %v2718 = vmax.f32 %v2218, 0.0
      %v2719 = vmax.f32 %v2221, 0.0
      %v2720 = vmax.f32 %v2226, 0.0
      %v2721 = vmax.f32 %v2229, 0.0
      %v2722 = vmax.f32 %v2234, 0.0
      %v2723 = vmax.f32 %v2237, 0.0
      %v2724 = vmax.f32 %v2242, 0.0
      %v2725 = vmax.f32 %v2245, 0.0
      %v2726 = vmax.f32 %v2250, 0.0
      %v2727 = vmax.f32 %v2253, 0.0
      %v2728 = vmax.f32 %v2258, 0.0
      %v2729 = vmax.f32 %v2261, 0.0
      %v2730 = vmax.f32 %v2266, 0.0
      %v2731 = vmax.f32 %v2269, 0.0
      %v2732 = vmax.f32 %v2274, 0.0
      %v2733 = vmax.f32 %v2277, 0.0
      %v2734 = vmax.f32 %v2282, 0.0
      %v2735 = vmax.f32 %v2285, 0.0
      %v2736 = vmax.f32 %v2290, 0.0
      %v2737 = vmax.f32 %v2293, 0.0
      %v2738 = vmax.f32 %v2298, 0.0
      %v2739 = vmax.f32 %v2301, 0.0
      %v2740 = vmax.f32 %v2306, 0.0
      %v2741 = vmax.f32 %v2309, 0.0
      %v2742 = vmax.f32 %v2314, 0.0
      %v2743 = vmax.f32 %v2317, 0.0
      %v2744 = vmax.f32 %v2322, 0.0
      %v2745 = vmax.f32 %v2325, 0.0
      %v2746 = vmax.f32 %v2330, 0.0
      %v2747 = vmax.f32 %v2333, 0.0
      %v2748 = vmax.f32 %v2338, 0.0
      %v2749 = vmax.f32 %v2341, 0.0
      %v2750 = vmax.f32 %v2346, 0.0
      %v2751 = vmax.f32 %v2349, 0.0
      %v2752 = vmax.f32 %v2354, 0.0
      %v2753 = vmax.f32 %v2357, 0.0
      %v2754 = vmax.f32 %v2362, 0.0
      %v2755 = vmax.f32 %v2365, 0.0
      %v2756 = vmax.f32 %v2370, 0.0
      %v2757 = vmax.f32 %v2373, 0.0
      %v2758 = vmax.f32 %v2378, 0.0
      %v2759 = vmax.f32 %v2381, 0.0
      %v2760 = vmax.f32 %v2386, 0.0
      %v2761 = vmax.f32 %v2389, 0.0
      %v2762 = vmax.f32 %v2394, 0.0
      %v2763 = vmax.f32 %v2397, 0.0
      %v2764 = vmax.f32 %v2402, 0.0
      %v2765 = vmax.f32 %v2405, 0.0
      %v2766 = vmax.f32 %v2410, 0.0
      %v2767 = vmax.f32 %v2413, 0.0
      %v2768 = vmax.f32 %v2418, 0.0
      %v2769 = vmax.f32 %v2421, 0.0
      %v2770 = vmax.f32 %v2426, 0.0
      %v2771 = vmax.f32 %v2429, 0.0
      %v2772 = vmax.f32 %v2434, 0.0
      %v2773 = vmax.f32 %v2437, 0.0
      %v2774 = vmax.f32 %v2442, 0.0
      %v2775 = vmax.f32 %v2445, 0.0
      %v2776 = vmax.f32 %v2450, 0.0
      %v2777 = vmax.f32 %v2453, 0.0
      %v2778 = vmax.f32 %v2458, 0.0
      %v2779 = vmax.f32 %v2461, 0.0
      %v2780 = vmax.f32 %v2466, 0.0
      %v2781 = vmax.f32 %v2469, 0.0
      %v2782 = vmax.f32 %v2474, 0.0
      %v2783 = vmax.f32 %v2477, 0.0
      %v2784 = vmax.f32 %v2482, 0.0
      %v2785 = vmax.f32 %v2485, 0.0
      %v2786 = vmax.f32 %v2490, 0.0
      %v2787 = vmax.f32 %v2493, 0.0
      %v2788 = vmax.f32 %v2498, 0.0
      %v2789 = vmax.f32 %v2501, 0.0
      %v2790 = vmax.f32 %v2506, 0.0
      %v2791 = vmax.f32 %v2509, 0.0
      %v2792 = vmax.f32 %v2514, 0.0
      %v2793 = vmax.f32 %v2517, 0.0
      %v2794 = vmax.f32 %v2522, 0.0
      %v2795 = vmax.f32 %v2525, 0.0
      %v2796 = vmax.f32 %v2530, 0.0
      %v2797 = vmax.f32 %v2533, 0.0
      %v2798 = vmax.f32 %v2538, 0.0
      %v2799 = vmax.f32 %v2541, 0.0
      %v2800 = vpack.c.bf16 %v2545, %v2544
      %v2801 = vpack.c.bf16 %v2547, %v2546
      %v2802 = vpack.c.bf16 %v2549, %v2548
      %v2803 = vpack.c.bf16 %v2551, %v2550
      %v2804 = vpack.c.bf16 %v2553, %v2552
      %v2805 = vpack.c.bf16 %v2555, %v2554
      %v2806 = vpack.c.bf16 %v2557, %v2556
      %v2807 = vpack.c.bf16 %v2559, %v2558
      %v2808 = vpack.c.bf16 %v2561, %v2560
      %v2809 = vpack.c.bf16 %v2563, %v2562
      %v2810 = vpack.c.bf16 %v2565, %v2564
      %v2811 = vpack.c.bf16 %v2567, %v2566
      %v2812 = vpack.c.bf16 %v2569, %v2568
      %v2813 = vpack.c.bf16 %v2571, %v2570
      %v2814 = vpack.c.bf16 %v2573, %v2572
      %v2815 = vpack.c.bf16 %v2575, %v2574
      %v2816 = vpack.c.bf16 %v2577, %v2576
      %v2817 = vpack.c.bf16 %v2579, %v2578
      %v2818 = vpack.c.bf16 %v2581, %v2580
      %v2819 = vpack.c.bf16 %v2583, %v2582
      %v2820 = vpack.c.bf16 %v2585, %v2584
      %v2821 = vpack.c.bf16 %v2587, %v2586
      %v2822 = vpack.c.bf16 %v2589, %v2588
      %v2823 = vpack.c.bf16 %v2591, %v2590
      %v2824 = vpack.c.bf16 %v2593, %v2592
      %v2825 = vpack.c.bf16 %v2595, %v2594
      %v2826 = vpack.c.bf16 %v2597, %v2596
      %v2827 = vpack.c.bf16 %v2599, %v2598
      %v2828 = vpack.c.bf16 %v2601, %v2600
      %v2829 = vpack.c.bf16 %v2603, %v2602
      %v2830 = vpack.c.bf16 %v2605, %v2604
      %v2831 = vpack.c.bf16 %v2607, %v2606
      %v2832 = vpack.c.bf16 %v2609, %v2608
      %v2833 = vpack.c.bf16 %v2611, %v2610
      %v2834 = vpack.c.bf16 %v2613, %v2612
      %v2835 = vpack.c.bf16 %v2615, %v2614
      %v2836 = vpack.c.bf16 %v2617, %v2616
      %v2837 = vpack.c.bf16 %v2619, %v2618
      %v2838 = vpack.c.bf16 %v2621, %v2620
      %v2839 = vpack.c.bf16 %v2623, %v2622
      %v2840 = vpack.c.bf16 %v2625, %v2624
      %v2841 = vpack.c.bf16 %v2627, %v2626
      %v2842 = vpack.c.bf16 %v2629, %v2628
      %v2843 = vpack.c.bf16 %v2631, %v2630
      %v2844 = vpack.c.bf16 %v2633, %v2632
      %v2845 = vpack.c.bf16 %v2635, %v2634
      %v2846 = vpack.c.bf16 %v2637, %v2636
      %v2847 = vpack.c.bf16 %v2639, %v2638
      %v2848 = vpack.c.bf16 %v2641, %v2640
      %v2849 = vpack.c.bf16 %v2643, %v2642
      %v2850 = vpack.c.bf16 %v2645, %v2644
      %v2851 = vpack.c.bf16 %v2647, %v2646
      %v2852 = vpack.c.bf16 %v2649, %v2648
      %v2853 = vpack.c.bf16 %v2651, %v2650
      %v2854 = vpack.c.bf16 %v2653, %v2652
      %v2855 = vpack.c.bf16 %v2655, %v2654
      %v2856 = vpack.c.bf16 %v2657, %v2656
      %v2857 = vpack.c.bf16 %v2659, %v2658
      %v2858 = vpack.c.bf16 %v2661, %v2660
      %v2859 = vpack.c.bf16 %v2663, %v2662
      %v2860 = vpack.c.bf16 %v2665, %v2664
      %v2861 = vpack.c.bf16 %v2667, %v2666
      %v2862 = vpack.c.bf16 %v2669, %v2668
      %v2863 = vpack.c.bf16 %v2671, %v2670
      %v2864 = vpack.c.bf16 %v2673, %v2672
      %v2865 = vpack.c.bf16 %v2675, %v2674
      %v2866 = vpack.c.bf16 %v2677, %v2676
      %v2867 = vpack.c.bf16 %v2679, %v2678
      %v2868 = vpack.c.bf16 %v2681, %v2680
      %v2869 = vpack.c.bf16 %v2683, %v2682
      %v2870 = vpack.c.bf16 %v2685, %v2684
      %v2871 = vpack.c.bf16 %v2687, %v2686
      %v2872 = vpack.c.bf16 %v2689, %v2688
      %v2873 = vpack.c.bf16 %v2691, %v2690
      %v2874 = vpack.c.bf16 %v2693, %v2692
      %v2875 = vpack.c.bf16 %v2695, %v2694
      %v2876 = vpack.c.bf16 %v2697, %v2696
      %v2877 = vpack.c.bf16 %v2699, %v2698
      %v2878 = vpack.c.bf16 %v2701, %v2700
      %v2879 = vpack.c.bf16 %v2703, %v2702
      %v2880 = vpack.c.bf16 %v2705, %v2704
      %v2881 = vpack.c.bf16 %v2707, %v2706
      %v2882 = vpack.c.bf16 %v2709, %v2708
      %v2883 = vpack.c.bf16 %v2711, %v2710
      %v2884 = vpack.c.bf16 %v2713, %v2712
      %v2885 = vpack.c.bf16 %v2715, %v2714
      %v2886 = vpack.c.bf16 %v2717, %v2716
      %v2887 = vpack.c.bf16 %v2719, %v2718
      %v2888 = vpack.c.bf16 %v2721, %v2720
      %v2889 = vpack.c.bf16 %v2723, %v2722
      %v2890 = vpack.c.bf16 %v2725, %v2724
      %v2891 = vpack.c.bf16 %v2727, %v2726
      %v2892 = vpack.c.bf16 %v2729, %v2728
      %v2893 = vpack.c.bf16 %v2731, %v2730
      %v2894 = vpack.c.bf16 %v2733, %v2732
      %v2895 = vpack.c.bf16 %v2735, %v2734
      %v2896 = vpack.c.bf16 %v2737, %v2736
      %v2897 = vpack.c.bf16 %v2739, %v2738
      %v2898 = vpack.c.bf16 %v2741, %v2740
      %v2899 = vpack.c.bf16 %v2743, %v2742
      %v2900 = vpack.c.bf16 %v2745, %v2744
      %v2901 = vpack.c.bf16 %v2747, %v2746
      %v2902 = vpack.c.bf16 %v2749, %v2748
      %v2903 = vpack.c.bf16 %v2751, %v2750
      %v2904 = vpack.c.bf16 %v2753, %v2752
      %v2905 = vpack.c.bf16 %v2755, %v2754
      %v2906 = vpack.c.bf16 %v2757, %v2756
      %v2907 = vpack.c.bf16 %v2759, %v2758
      %v2908 = vpack.c.bf16 %v2761, %v2760
      %v2909 = vpack.c.bf16 %v2763, %v2762
      %v2910 = vpack.c.bf16 %v2765, %v2764
      %v2911 = vpack.c.bf16 %v2767, %v2766
      %v2912 = vpack.c.bf16 %v2769, %v2768
      %v2913 = vpack.c.bf16 %v2771, %v2770
      %v2914 = vpack.c.bf16 %v2773, %v2772
      %v2915 = vpack.c.bf16 %v2775, %v2774
      %v2916 = vpack.c.bf16 %v2777, %v2776
      %v2917 = vpack.c.bf16 %v2779, %v2778
      %v2918 = vpack.c.bf16 %v2781, %v2780
      %v2919 = vpack.c.bf16 %v2783, %v2782
      %v2920 = vpack.c.bf16 %v2785, %v2784
      %v2921 = vpack.c.bf16 %v2787, %v2786
      %v2922 = vpack.c.bf16 %v2789, %v2788
      %v2923 = vpack.c.bf16 %v2791, %v2790
      %v2924 = vpack.c.bf16 %v2793, %v2792
      %v2925 = vpack.c.bf16 %v2795, %v2794
      %v2926 = vpack.c.bf16 %v2797, %v2796
      %v2927 = vpack.c.bf16 %v2799, %v2798
      %v3056 = vunpack.c.l.b16 %v2800
      %v3057 = vunpack.c.h.b16 %v2800
      %v3058 = vunpack.c.l.b16 %v2801
      %v3059 = vunpack.c.h.b16 %v2801
      %v3060 = vunpack.c.l.b16 %v2802
      %v3061 = vunpack.c.h.b16 %v2802
      %v3062 = vunpack.c.l.b16 %v2803
      %v3063 = vunpack.c.h.b16 %v2803
      %v3064 = vunpack.c.l.b16 %v2804
      %v3065 = vunpack.c.h.b16 %v2804
      %v3066 = vunpack.c.l.b16 %v2805
      %v3067 = vunpack.c.h.b16 %v2805
      %v3068 = vunpack.c.l.b16 %v2806
      %v3069 = vunpack.c.h.b16 %v2806
      %v3070 = vunpack.c.l.b16 %v2807
      %v3071 = vunpack.c.h.b16 %v2807
      %v3072 = vunpack.c.l.b16 %v2808
      %v3073 = vunpack.c.h.b16 %v2808
      %v3074 = vunpack.c.l.b16 %v2809
      %v3075 = vunpack.c.h.b16 %v2809
      %v3076 = vunpack.c.l.b16 %v2810
      %v3077 = vunpack.c.h.b16 %v2810
      %v3078 = vunpack.c.l.b16 %v2811
      %v3079 = vunpack.c.h.b16 %v2811
      %v3080 = vunpack.c.l.b16 %v2812
      %v3081 = vunpack.c.h.b16 %v2812
      %v3082 = vunpack.c.l.b16 %v2813
      %v3083 = vunpack.c.h.b16 %v2813
      %v3084 = vunpack.c.l.b16 %v2814
      %v3085 = vunpack.c.h.b16 %v2814
      %v3086 = vunpack.c.l.b16 %v2815
      %v3087 = vunpack.c.h.b16 %v2815
      %v3088 = vunpack.c.l.b16 %v2816
      %v3089 = vunpack.c.h.b16 %v2816
      %v3090 = vunpack.c.l.b16 %v2817
      %v3091 = vunpack.c.h.b16 %v2817
      %v3092 = vunpack.c.l.b16 %v2818
      %v3093 = vunpack.c.h.b16 %v2818
      %v3094 = vunpack.c.l.b16 %v2819
      %v3095 = vunpack.c.h.b16 %v2819
      %v3096 = vunpack.c.l.b16 %v2820
      %v3097 = vunpack.c.h.b16 %v2820
      %v3098 = vunpack.c.l.b16 %v2821
      %v3099 = vunpack.c.h.b16 %v2821
      %v3100 = vunpack.c.l.b16 %v2822
      %v3101 = vunpack.c.h.b16 %v2822
      %v3102 = vunpack.c.l.b16 %v2823
      %v3103 = vunpack.c.h.b16 %v2823
      %v3104 = vunpack.c.l.b16 %v2824
      %v3105 = vunpack.c.h.b16 %v2824
      %v3106 = vunpack.c.l.b16 %v2825
      %v3107 = vunpack.c.h.b16 %v2825
      %v3108 = vunpack.c.l.b16 %v2826
      %v3109 = vunpack.c.h.b16 %v2826
      %v3110 = vunpack.c.l.b16 %v2827
      %v3111 = vunpack.c.h.b16 %v2827
      %v3112 = vunpack.c.l.b16 %v2828
      %v3113 = vunpack.c.h.b16 %v2828
      %v3114 = vunpack.c.l.b16 %v2829
      %v3115 = vunpack.c.h.b16 %v2829
      %v3116 = vunpack.c.l.b16 %v2830
      %v3117 = vunpack.c.h.b16 %v2830
      %v3118 = vunpack.c.l.b16 %v2831
      %v3119 = vunpack.c.h.b16 %v2831
      %v3120 = vunpack.c.l.b16 %v2832
      %v3121 = vunpack.c.h.b16 %v2832
      %v3122 = vunpack.c.l.b16 %v2833
      %v3123 = vunpack.c.h.b16 %v2833
      %v3124 = vunpack.c.l.b16 %v2834
      %v3125 = vunpack.c.h.b16 %v2834
      %v3126 = vunpack.c.l.b16 %v2835
      %v3127 = vunpack.c.h.b16 %v2835
      %v3128 = vunpack.c.l.b16 %v2836
      %v3129 = vunpack.c.h.b16 %v2836
      %v3130 = vunpack.c.l.b16 %v2837
      %v3131 = vunpack.c.h.b16 %v2837
      %v3132 = vunpack.c.l.b16 %v2838
      %v3133 = vunpack.c.h.b16 %v2838
      %v3134 = vunpack.c.l.b16 %v2839
      %v3135 = vunpack.c.h.b16 %v2839
      %v3136 = vunpack.c.l.b16 %v2840
      %v3137 = vunpack.c.h.b16 %v2840
      %v3138 = vunpack.c.l.b16 %v2841
      %v3139 = vunpack.c.h.b16 %v2841
      %v3140 = vunpack.c.l.b16 %v2842
      %v3141 = vunpack.c.h.b16 %v2842
      %v3142 = vunpack.c.l.b16 %v2843
      %v3143 = vunpack.c.h.b16 %v2843
      %v3144 = vunpack.c.l.b16 %v2844
      %v3145 = vunpack.c.h.b16 %v2844
      %v3146 = vunpack.c.l.b16 %v2845
      %v3147 = vunpack.c.h.b16 %v2845
      %v3148 = vunpack.c.l.b16 %v2846
      %v3149 = vunpack.c.h.b16 %v2846
      %v3150 = vunpack.c.l.b16 %v2847
      %v3151 = vunpack.c.h.b16 %v2847
      %v3152 = vunpack.c.l.b16 %v2848
      %v3153 = vunpack.c.h.b16 %v2848
      %v3154 = vunpack.c.l.b16 %v2849
      %v3155 = vunpack.c.h.b16 %v2849
      %v3156 = vunpack.c.l.b16 %v2850
      %v3157 = vunpack.c.h.b16 %v2850
      %v3158 = vunpack.c.l.b16 %v2851
      %v3159 = vunpack.c.h.b16 %v2851
      %v3160 = vunpack.c.l.b16 %v2852
      %v3161 = vunpack.c.h.b16 %v2852
      %v3162 = vunpack.c.l.b16 %v2853
      %v3163 = vunpack.c.h.b16 %v2853
      %v3164 = vunpack.c.l.b16 %v2854
      %v3165 = vunpack.c.h.b16 %v2854
      %v3166 = vunpack.c.l.b16 %v2855
      %v3167 = vunpack.c.h.b16 %v2855
      %v3168 = vunpack.c.l.b16 %v2856
      %v3169 = vunpack.c.h.b16 %v2856
      %v3170 = vunpack.c.l.b16 %v2857
      %v3171 = vunpack.c.h.b16 %v2857
      %v3172 = vunpack.c.l.b16 %v2858
      %v3173 = vunpack.c.h.b16 %v2858
      %v3174 = vunpack.c.l.b16 %v2859
      %v3175 = vunpack.c.h.b16 %v2859
      %v3176 = vunpack.c.l.b16 %v2860
      %v3177 = vunpack.c.h.b16 %v2860
      %v3178 = vunpack.c.l.b16 %v2861
      %v3179 = vunpack.c.h.b16 %v2861
      %v3180 = vunpack.c.l.b16 %v2862
      %v3181 = vunpack.c.h.b16 %v2862
      %v3182 = vunpack.c.l.b16 %v2863
      %v3183 = vunpack.c.h.b16 %v2863
      %v3184 = vunpack.c.l.b16 %v2864
      %v3185 = vunpack.c.h.b16 %v2864
      %v3186 = vunpack.c.l.b16 %v2865
      %v3187 = vunpack.c.h.b16 %v2865
      %v3188 = vunpack.c.l.b16 %v2866
      %v3189 = vunpack.c.h.b16 %v2866
      %v3190 = vunpack.c.l.b16 %v2867
      %v3191 = vunpack.c.h.b16 %v2867
      %v3192 = vunpack.c.l.b16 %v2868
      %v3193 = vunpack.c.h.b16 %v2868
      %v3194 = vunpack.c.l.b16 %v2869
      %v3195 = vunpack.c.h.b16 %v2869
      %v3196 = vunpack.c.l.b16 %v2870
      %v3197 = vunpack.c.h.b16 %v2870
      %v3198 = vunpack.c.l.b16 %v2871
      %v3199 = vunpack.c.h.b16 %v2871
      %v3200 = vunpack.c.l.b16 %v2872
      %v3201 = vunpack.c.h.b16 %v2872
      %v3202 = vunpack.c.l.b16 %v2873
      %v3203 = vunpack.c.h.b16 %v2873
      %v3204 = vunpack.c.l.b16 %v2874
      %v3205 = vunpack.c.h.b16 %v2874
      %v3206 = vunpack.c.l.b16 %v2875
      %v3207 = vunpack.c.h.b16 %v2875
      %v3208 = vunpack.c.l.b16 %v2876
      %v3209 = vunpack.c.h.b16 %v2876
      %v3210 = vunpack.c.l.b16 %v2877
      %v3211 = vunpack.c.h.b16 %v2877
      %v3212 = vunpack.c.l.b16 %v2878
      %v3213 = vunpack.c.h.b16 %v2878
      %v3214 = vunpack.c.l.b16 %v2879
      %v3215 = vunpack.c.h.b16 %v2879
      %v3216 = vunpack.c.l.b16 %v2880
      %v3217 = vunpack.c.h.b16 %v2880
      %v3218 = vunpack.c.l.b16 %v2881
      %v3219 = vunpack.c.h.b16 %v2881
      %v3220 = vunpack.c.l.b16 %v2882
      %v3221 = vunpack.c.h.b16 %v2882
      %v3222 = vunpack.c.l.b16 %v2883
      %v3223 = vunpack.c.h.b16 %v2883
      %v3224 = vunpack.c.l.b16 %v2884
      %v3225 = vunpack.c.h.b16 %v2884
      %v3226 = vunpack.c.l.b16 %v2885
      %v3227 = vunpack.c.h.b16 %v2885
      %v3228 = vunpack.c.l.b16 %v2886
      %v3229 = vunpack.c.h.b16 %v2886
      %v3230 = vunpack.c.l.b16 %v2887
      %v3231 = vunpack.c.h.b16 %v2887
      %v3232 = vunpack.c.l.b16 %v2888
      %v3233 = vunpack.c.h.b16 %v2888
      %v3234 = vunpack.c.l.b16 %v2889
      %v3235 = vunpack.c.h.b16 %v2889
      %v3236 = vunpack.c.l.b16 %v2890
      %v3237 = vunpack.c.h.b16 %v2890
      %v3238 = vunpack.c.l.b16 %v2891
      %v3239 = vunpack.c.h.b16 %v2891
      %v3240 = vunpack.c.l.b16 %v2892
      %v3241 = vunpack.c.h.b16 %v2892
      %v3242 = vunpack.c.l.b16 %v2893
      %v3243 = vunpack.c.h.b16 %v2893
      %v3244 = vunpack.c.l.b16 %v2894
      %v3245 = vunpack.c.h.b16 %v2894
      %v3246 = vunpack.c.l.b16 %v2895
      %v3247 = vunpack.c.h.b16 %v2895
      %v3248 = vunpack.c.l.b16 %v2896
      %v3249 = vunpack.c.h.b16 %v2896
      %v3250 = vunpack.c.l.b16 %v2897
      %v3251 = vunpack.c.h.b16 %v2897
      %v3252 = vunpack.c.l.b16 %v2898
      %v3253 = vunpack.c.h.b16 %v2898
      %v3254 = vunpack.c.l.b16 %v2899
      %v3255 = vunpack.c.h.b16 %v2899
      %v3256 = vunpack.c.l.b16 %v2900
      %v3257 = vunpack.c.h.b16 %v2900
      %v3258 = vunpack.c.l.b16 %v2901
      %v3259 = vunpack.c.h.b16 %v2901
      %v3260 = vunpack.c.l.b16 %v2902
      %v3261 = vunpack.c.h.b16 %v2902
      %v3262 = vunpack.c.l.b16 %v2903
      %v3263 = vunpack.c.h.b16 %v2903
      %v3264 = vunpack.c.l.b16 %v2904
      %v3265 = vunpack.c.h.b16 %v2904
      %v3266 = vunpack.c.l.b16 %v2905
      %v3267 = vunpack.c.h.b16 %v2905
      %v3268 = vunpack.c.l.b16 %v2906
      %v3269 = vunpack.c.h.b16 %v2906
      %v3270 = vunpack.c.l.b16 %v2907
      %v3271 = vunpack.c.h.b16 %v2907
      %v3272 = vunpack.c.l.b16 %v2908
      %v3273 = vunpack.c.h.b16 %v2908
      %v3274 = vunpack.c.l.b16 %v2909
      %v3275 = vunpack.c.h.b16 %v2909
      %v3276 = vunpack.c.l.b16 %v2910
      %v3277 = vunpack.c.h.b16 %v2910
      %v3278 = vunpack.c.l.b16 %v2911
      %v3279 = vunpack.c.h.b16 %v2911
      %v3280 = vunpack.c.l.b16 %v2912
      %v3281 = vunpack.c.h.b16 %v2912
      %v3282 = vunpack.c.l.b16 %v2913
      %v3283 = vunpack.c.h.b16 %v2913
      %v3284 = vunpack.c.l.b16 %v2914
      %v3285 = vunpack.c.h.b16 %v2914
      %v3286 = vunpack.c.l.b16 %v2915
      %v3287 = vunpack.c.h.b16 %v2915
      %v3288 = vunpack.c.l.b16 %v2916
      %v3289 = vunpack.c.h.b16 %v2916
      %v3290 = vunpack.c.l.b16 %v2917
      %v3291 = vunpack.c.h.b16 %v2917
      %v3292 = vunpack.c.l.b16 %v2918
      %v3293 = vunpack.c.h.b16 %v2918
      %v3294 = vunpack.c.l.b16 %v2919
      %v3295 = vunpack.c.h.b16 %v2919
      %v3296 = vunpack.c.l.b16 %v2920
      %v3297 = vunpack.c.h.b16 %v2920
      %v3298 = vunpack.c.l.b16 %v2921
      %v3299 = vunpack.c.h.b16 %v2921
      %v3300 = vunpack.c.l.b16 %v2922
      %v3301 = vunpack.c.h.b16 %v2922
      %v3302 = vunpack.c.l.b16 %v2923
      %v3303 = vunpack.c.h.b16 %v2923
      %v3304 = vunpack.c.l.b16 %v2924
      %v3305 = vunpack.c.h.b16 %v2924
      %v3306 = vunpack.c.l.b16 %v2925
      %v3307 = vunpack.c.h.b16 %v2925
      %v3308 = vunpack.c.l.b16 %v2926
      %v3309 = vunpack.c.h.b16 %v2926
      %v3310 = vunpack.c.l.b16 %v2927
      %v3311 = vunpack.c.h.b16 %v2927
      %v3312 = vpack.c.b16 %v3056, %v3056
      %v3313 = vpack.c.b16 %v3057, %v3057
      %v3314 = vpack.c.b16 %v3058, %v3058
      %v3315 = vpack.c.b16 %v3059, %v3059
      %v3316 = vpack.c.b16 %v3060, %v3060
      %v3317 = vpack.c.b16 %v3061, %v3061
      %v3318 = vpack.c.b16 %v3062, %v3062
      %v3319 = vpack.c.b16 %v3063, %v3063
      %v3320 = vpack.c.b16 %v3064, %v3064
      %v3321 = vpack.c.b16 %v3065, %v3065
      %v3322 = vpack.c.b16 %v3066, %v3066
      %v3323 = vpack.c.b16 %v3067, %v3067
      %v3324 = vpack.c.b16 %v3068, %v3068
      %v3325 = vpack.c.b16 %v3069, %v3069
      %v3326 = vpack.c.b16 %v3070, %v3070
      %v3327 = vpack.c.b16 %v3071, %v3071
      %v3328 = vpack.c.b16 %v3072, %v3072
      %v3329 = vpack.c.b16 %v3073, %v3073
      %v3330 = vpack.c.b16 %v3074, %v3074
      %v3331 = vpack.c.b16 %v3075, %v3075
      %v3332 = vpack.c.b16 %v3076, %v3076
      %v3333 = vpack.c.b16 %v3077, %v3077
      %v3334 = vpack.c.b16 %v3078, %v3078
      %v3335 = vpack.c.b16 %v3079, %v3079
      %v3336 = vpack.c.b16 %v3080, %v3080
      %v3337 = vpack.c.b16 %v3081, %v3081
      %v3338 = vpack.c.b16 %v3082, %v3082
      %v3339 = vpack.c.b16 %v3083, %v3083
      %v3340 = vpack.c.b16 %v3084, %v3084
      %v3341 = vpack.c.b16 %v3085, %v3085
      %v3342 = vpack.c.b16 %v3086, %v3086
      %v3343 = vpack.c.b16 %v3087, %v3087
      %v3344 = vpack.c.b16 %v3088, %v3088
      %v3345 = vpack.c.b16 %v3089, %v3089
      %v3346 = vpack.c.b16 %v3090, %v3090
      %v3347 = vpack.c.b16 %v3091, %v3091
      %v3348 = vpack.c.b16 %v3092, %v3092
      %v3349 = vpack.c.b16 %v3093, %v3093
      %v3350 = vpack.c.b16 %v3094, %v3094
      %v3351 = vpack.c.b16 %v3095, %v3095
      %v3352 = vpack.c.b16 %v3096, %v3096
      %v3353 = vpack.c.b16 %v3097, %v3097
      %v3354 = vpack.c.b16 %v3098, %v3098
      %v3355 = vpack.c.b16 %v3099, %v3099
      %v3356 = vpack.c.b16 %v3100, %v3100
      %v3357 = vpack.c.b16 %v3101, %v3101
      %v3358 = vpack.c.b16 %v3102, %v3102
      %v3359 = vpack.c.b16 %v3103, %v3103
      %v3360 = vpack.c.b16 %v3104, %v3104
      %v3361 = vpack.c.b16 %v3105, %v3105
      %v3362 = vpack.c.b16 %v3106, %v3106
      %v3363 = vpack.c.b16 %v3107, %v3107
      %v3364 = vpack.c.b16 %v3108, %v3108
      %v3365 = vpack.c.b16 %v3109, %v3109
      %v3366 = vpack.c.b16 %v3110, %v3110
      %v3367 = vpack.c.b16 %v3111, %v3111
      %v3368 = vpack.c.b16 %v3112, %v3112
      %v3369 = vpack.c.b16 %v3113, %v3113
      %v3370 = vpack.c.b16 %v3114, %v3114
      %v3371 = vpack.c.b16 %v3115, %v3115
      %v3372 = vpack.c.b16 %v3116, %v3116
      %v3373 = vpack.c.b16 %v3117, %v3117
      %v3374 = vpack.c.b16 %v3118, %v3118
      %v3375 = vpack.c.b16 %v3119, %v3119
      %v3376 = vpack.c.b16 %v3120, %v3120
      %v3377 = vpack.c.b16 %v3121, %v3121
      %v3378 = vpack.c.b16 %v3122, %v3122
      %v3379 = vpack.c.b16 %v3123, %v3123
      %v3380 = vpack.c.b16 %v3124, %v3124
      %v3381 = vpack.c.b16 %v3125, %v3125
      %v3382 = vpack.c.b16 %v3126, %v3126
      %v3383 = vpack.c.b16 %v3127, %v3127
      %v3384 = vpack.c.b16 %v3128, %v3128
      %v3385 = vpack.c.b16 %v3129, %v3129
      %v3386 = vpack.c.b16 %v3130, %v3130
      %v3387 = vpack.c.b16 %v3131, %v3131
      %v3388 = vpack.c.b16 %v3132, %v3132
      %v3389 = vpack.c.b16 %v3133, %v3133
      %v3390 = vpack.c.b16 %v3134, %v3134
      %v3391 = vpack.c.b16 %v3135, %v3135
      %v3392 = vpack.c.b16 %v3136, %v3136
      %v3393 = vpack.c.b16 %v3137, %v3137
      %v3394 = vpack.c.b16 %v3138, %v3138
      %v3395 = vpack.c.b16 %v3139, %v3139
      %v3396 = vpack.c.b16 %v3140, %v3140
      %v3397 = vpack.c.b16 %v3141, %v3141
      %v3398 = vpack.c.b16 %v3142, %v3142
      %v3399 = vpack.c.b16 %v3143, %v3143
      %v3400 = vpack.c.b16 %v3144, %v3144
      %v3401 = vpack.c.b16 %v3145, %v3145
      %v3402 = vpack.c.b16 %v3146, %v3146
      %v3403 = vpack.c.b16 %v3147, %v3147
      %v3404 = vpack.c.b16 %v3148, %v3148
      %v3405 = vpack.c.b16 %v3149, %v3149
      %v3406 = vpack.c.b16 %v3150, %v3150
      %v3407 = vpack.c.b16 %v3151, %v3151
      %v3408 = vpack.c.b16 %v3152, %v3152
      %v3409 = vpack.c.b16 %v3153, %v3153
      %v3410 = vpack.c.b16 %v3154, %v3154
      %v3411 = vpack.c.b16 %v3155, %v3155
      %v3412 = vpack.c.b16 %v3156, %v3156
      %v3413 = vpack.c.b16 %v3157, %v3157
      %v3414 = vpack.c.b16 %v3158, %v3158
      %v3415 = vpack.c.b16 %v3159, %v3159
      %v3416 = vpack.c.b16 %v3160, %v3160
      %v3417 = vpack.c.b16 %v3161, %v3161
      %v3418 = vpack.c.b16 %v3162, %v3162
      %v3419 = vpack.c.b16 %v3163, %v3163
      %v3420 = vpack.c.b16 %v3164, %v3164
      %v3421 = vpack.c.b16 %v3165, %v3165
      %v3422 = vpack.c.b16 %v3166, %v3166
      %v3423 = vpack.c.b16 %v3167, %v3167
      %v3424 = vpack.c.b16 %v3168, %v3168
      %v3425 = vpack.c.b16 %v3169, %v3169
      %v3426 = vpack.c.b16 %v3170, %v3170
      %v3427 = vpack.c.b16 %v3171, %v3171
      %v3428 = vpack.c.b16 %v3172, %v3172
      %v3429 = vpack.c.b16 %v3173, %v3173
      %v3430 = vpack.c.b16 %v3174, %v3174
      %v3431 = vpack.c.b16 %v3175, %v3175
      %v3432 = vpack.c.b16 %v3176, %v3176
      %v3433 = vpack.c.b16 %v3177, %v3177
      %v3434 = vpack.c.b16 %v3178, %v3178
      %v3435 = vpack.c.b16 %v3179, %v3179
      %v3436 = vpack.c.b16 %v3180, %v3180
      %v3437 = vpack.c.b16 %v3181, %v3181
      %v3438 = vpack.c.b16 %v3182, %v3182
      %v3439 = vpack.c.b16 %v3183, %v3183
      %v3440 = vpack.c.b16 %v3184, %v3184
      %v3441 = vpack.c.b16 %v3185, %v3185
      %v3442 = vpack.c.b16 %v3186, %v3186
      %v3443 = vpack.c.b16 %v3187, %v3187
      %v3444 = vpack.c.b16 %v3188, %v3188
      %v3445 = vpack.c.b16 %v3189, %v3189
      %v3446 = vpack.c.b16 %v3190, %v3190
      %v3447 = vpack.c.b16 %v3191, %v3191
      %v3448 = vpack.c.b16 %v3192, %v3192
      %v3449 = vpack.c.b16 %v3193, %v3193
      %v3450 = vpack.c.b16 %v3194, %v3194
      %v3451 = vpack.c.b16 %v3195, %v3195
      %v3452 = vpack.c.b16 %v3196, %v3196
      %v3453 = vpack.c.b16 %v3197, %v3197
      %v3454 = vpack.c.b16 %v3198, %v3198
      %v3455 = vpack.c.b16 %v3199, %v3199
      %v3456 = vpack.c.b16 %v3200, %v3200
      %v3457 = vpack.c.b16 %v3201, %v3201
      %v3458 = vpack.c.b16 %v3202, %v3202
      %v3459 = vpack.c.b16 %v3203, %v3203
      %v3460 = vpack.c.b16 %v3204, %v3204
      %v3461 = vpack.c.b16 %v3205, %v3205
      %v3462 = vpack.c.b16 %v3206, %v3206
      %v3463 = vpack.c.b16 %v3207, %v3207
      %v3464 = vpack.c.b16 %v3208, %v3208
      %v3465 = vpack.c.b16 %v3209, %v3209
      %v3466 = vpack.c.b16 %v3210, %v3210
      %v3467 = vpack.c.b16 %v3211, %v3211
      %v3468 = vpack.c.b16 %v3212, %v3212
      %v3469 = vpack.c.b16 %v3213, %v3213
      %v3470 = vpack.c.b16 %v3214, %v3214
      %v3471 = vpack.c.b16 %v3215, %v3215
      %v3472 = vpack.c.b16 %v3216, %v3216
      %v3473 = vpack.c.b16 %v3217, %v3217
      %v3474 = vpack.c.b16 %v3218, %v3218
      %v3475 = vpack.c.b16 %v3219, %v3219
      %v3476 = vpack.c.b16 %v3220, %v3220
      %v3477 = vpack.c.b16 %v3221, %v3221
      %v3478 = vpack.c.b16 %v3222, %v3222
      %v3479 = vpack.c.b16 %v3223, %v3223
      %v3480 = vpack.c.b16 %v3224, %v3224
      %v3481 = vpack.c.b16 %v3225, %v3225
      %v3482 = vpack.c.b16 %v3226, %v3226
      %v3483 = vpack.c.b16 %v3227, %v3227
      %v3484 = vpack.c.b16 %v3228, %v3228
      %v3485 = vpack.c.b16 %v3229, %v3229
      %v3486 = vpack.c.b16 %v3230, %v3230
      %v3487 = vpack.c.b16 %v3231, %v3231
      %v3488 = vpack.c.b16 %v3232, %v3232
      %v3489 = vpack.c.b16 %v3233, %v3233
      %v3490 = vpack.c.b16 %v3234, %v3234
      %v3491 = vpack.c.b16 %v3235, %v3235
      %v3492 = vpack.c.b16 %v3236, %v3236
      %v3493 = vpack.c.b16 %v3237, %v3237
      %v3494 = vpack.c.b16 %v3238, %v3238
      %v3495 = vpack.c.b16 %v3239, %v3239
      %v3496 = vpack.c.b16 %v3240, %v3240
      %v3497 = vpack.c.b16 %v3241, %v3241
      %v3498 = vpack.c.b16 %v3242, %v3242
      %v3499 = vpack.c.b16 %v3243, %v3243
      %v3500 = vpack.c.b16 %v3244, %v3244
      %v3501 = vpack.c.b16 %v3245, %v3245
      %v3502 = vpack.c.b16 %v3246, %v3246
      %v3503 = vpack.c.b16 %v3247, %v3247
      %v3504 = vpack.c.b16 %v3248, %v3248
      %v3505 = vpack.c.b16 %v3249, %v3249
      %v3506 = vpack.c.b16 %v3250, %v3250
      %v3507 = vpack.c.b16 %v3251, %v3251
      %v3508 = vpack.c.b16 %v3252, %v3252
      %v3509 = vpack.c.b16 %v3253, %v3253
      %v3510 = vpack.c.b16 %v3254, %v3254
      %v3511 = vpack.c.b16 %v3255, %v3255
      %v3512 = vpack.c.b16 %v3256, %v3256
      %v3513 = vpack.c.b16 %v3257, %v3257
      %v3514 = vpack.c.b16 %v3258, %v3258
      %v3515 = vpack.c.b16 %v3259, %v3259
      %v3516 = vpack.c.b16 %v3260, %v3260
      %v3517 = vpack.c.b16 %v3261, %v3261
      %v3518 = vpack.c.b16 %v3262, %v3262
      %v3519 = vpack.c.b16 %v3263, %v3263
      %v3520 = vpack.c.b16 %v3264, %v3264
      %v3521 = vpack.c.b16 %v3265, %v3265
      %v3522 = vpack.c.b16 %v3266, %v3266
      %v3523 = vpack.c.b16 %v3267, %v3267
      %v3524 = vpack.c.b16 %v3268, %v3268
      %v3525 = vpack.c.b16 %v3269, %v3269
      %v3526 = vpack.c.b16 %v3270, %v3270
      %v3527 = vpack.c.b16 %v3271, %v3271
      %v3528 = vpack.c.b16 %v3272, %v3272
      %v3529 = vpack.c.b16 %v3273, %v3273
      %v3530 = vpack.c.b16 %v3274, %v3274
      %v3531 = vpack.c.b16 %v3275, %v3275
      %v3532 = vpack.c.b16 %v3276, %v3276
      %v3533 = vpack.c.b16 %v3277, %v3277
      %v3534 = vpack.c.b16 %v3278, %v3278
      %v3535 = vpack.c.b16 %v3279, %v3279
      %v3536 = vpack.c.b16 %v3280, %v3280
      %v3537 = vpack.c.b16 %v3281, %v3281
      %v3538 = vpack.c.b16 %v3282, %v3282
      %v3539 = vpack.c.b16 %v3283, %v3283
      %v3540 = vpack.c.b16 %v3284, %v3284
      %v3541 = vpack.c.b16 %v3285, %v3285
      %v3542 = vpack.c.b16 %v3286, %v3286
      %v3543 = vpack.c.b16 %v3287, %v3287
      %v3544 = vpack.c.b16 %v3288, %v3288
      %v3545 = vpack.c.b16 %v3289, %v3289
      %v3546 = vpack.c.b16 %v3290, %v3290
      %v3547 = vpack.c.b16 %v3291, %v3291
      %v3548 = vpack.c.b16 %v3292, %v3292
      %v3549 = vpack.c.b16 %v3293, %v3293
      %v3550 = vpack.c.b16 %v3294, %v3294
      %v3551 = vpack.c.b16 %v3295, %v3295
      %v3552 = vpack.c.b16 %v3296, %v3296
      %v3553 = vpack.c.b16 %v3297, %v3297
      %v3554 = vpack.c.b16 %v3298, %v3298
      %v3555 = vpack.c.b16 %v3299, %v3299
      %v3556 = vpack.c.b16 %v3300, %v3300
      %v3557 = vpack.c.b16 %v3301, %v3301
      %v3558 = vpack.c.b16 %v3302, %v3302
      %v3559 = vpack.c.b16 %v3303, %v3303
      %v3560 = vpack.c.b16 %v3304, %v3304
      %v3561 = vpack.c.b16 %v3305, %v3305
      %v3562 = vpack.c.b16 %v3306, %v3306
      %v3563 = vpack.c.b16 %v3307, %v3307
      %v3564 = vpack.c.b16 %v3308, %v3308
      %v3565 = vpack.c.b16 %v3309, %v3309
      %v3566 = vpack.c.b16 %v3310, %v3310
      %v3567 = vpack.c.b16 %v3311, %v3311
      %vm3824 = vcmask 60416
      %3825 = vst.msk [vmem:[%s172] sm:$0xf] %vm3824, %v3312
      %3826 = vst.msk [vmem:[%s172 + $0x4] sm:$0xf] %vm3824, %v3313
      %3827 = vst.msk [vmem:[%s172 + $0x8] sm:$0xf] %vm3824, %v3314
      %3828 = vst.msk [vmem:[%s172 + $0xc] sm:$0xf] %vm3824, %v3315
      %3829 = vst.msk [vmem:[%s172 + $0x10] sm:$0xf] %vm3824, %v3316
      %3830 = vst.msk [vmem:[%s172 + $0x14] sm:$0xf] %vm3824, %v3317
      %3831 = vst.msk [vmem:[%s172 + $0x18] sm:$0xf] %vm3824, %v3318
      %3832 = vst.msk [vmem:[%s172 + $0x1c] sm:$0xf] %vm3824, %v3319
      %3833 = vst.msk [vmem:[%s172 + $0x20] sm:$0xf] %vm3824, %v3320
      %3834 = vst.msk [vmem:[%s172 + $0x24] sm:$0xf] %vm3824, %v3321
      %3835 = vst.msk [vmem:[%s172 + $0x28] sm:$0xf] %vm3824, %v3322
      %3836 = vst.msk [vmem:[%s172 + $0x2c] sm:$0xf] %vm3824, %v3323
      %3837 = vst.msk [vmem:[%s172 + $0x30] sm:$0xf] %vm3824, %v3324
      %3838 = vst.msk [vmem:[%s172 + $0x34] sm:$0xf] %vm3824, %v3325
      %3839 = vst.msk [vmem:[%s172 + $0x38] sm:$0xf] %vm3824, %v3326
      %3840 = vst.msk [vmem:[%s172 + $0x3c] sm:$0xf] %vm3824, %v3327
      %3841 = vst.msk [vmem:[%s172 + $0x40] sm:$0xf] %vm3824, %v3328
      %3842 = vst.msk [vmem:[%s172 + $0x44] sm:$0xf] %vm3824, %v3329
      %3843 = vst.msk [vmem:[%s172 + $0x48] sm:$0xf] %vm3824, %v3330
      %3844 = vst.msk [vmem:[%s172 + $0x4c] sm:$0xf] %vm3824, %v3331
      %3845 = vst.msk [vmem:[%s172 + $0x50] sm:$0xf] %vm3824, %v3332
      %3846 = vst.msk [vmem:[%s172 + $0x54] sm:$0xf] %vm3824, %v3333
      %3847 = vst.msk [vmem:[%s172 + $0x58] sm:$0xf] %vm3824, %v3334
      %3848 = vst.msk [vmem:[%s172 + $0x5c] sm:$0xf] %vm3824, %v3335
      %3849 = vst.msk [vmem:[%s172 + $0x60] sm:$0xf] %vm3824, %v3336
      %3850 = vst.msk [vmem:[%s172 + $0x64] sm:$0xf] %vm3824, %v3337
      %3851 = vst.msk [vmem:[%s172 + $0x68] sm:$0xf] %vm3824, %v3338
      %3852 = vst.msk [vmem:[%s172 + $0x6c] sm:$0xf] %vm3824, %v3339
      %3853 = vst.msk [vmem:[%s172 + $0x70] sm:$0xf] %vm3824, %v3340
      %3854 = vst.msk [vmem:[%s172 + $0x74] sm:$0xf] %vm3824, %v3341
      %3855 = vst.msk [vmem:[%s172 + $0x78] sm:$0xf] %vm3824, %v3342
      %3856 = vst.msk [vmem:[%s172 + $0x7c] sm:$0xf] %vm3824, %v3343
      %3857 = vst.msk [vmem:[%s172 + $0x80] sm:$0xf] %vm3824, %v3344
      %3858 = vst.msk [vmem:[%s172 + $0x84] sm:$0xf] %vm3824, %v3345
      %3859 = vst.msk [vmem:[%s172 + $0x88] sm:$0xf] %vm3824, %v3346
      %3860 = vst.msk [vmem:[%s172 + $0x8c] sm:$0xf] %vm3824, %v3347
      %3861 = vst.msk [vmem:[%s172 + $0x90] sm:$0xf] %vm3824, %v3348
      %3862 = vst.msk [vmem:[%s172 + $0x94] sm:$0xf] %vm3824, %v3349
      %3863 = vst.msk [vmem:[%s172 + $0x98] sm:$0xf] %vm3824, %v3350
      %3864 = vst.msk [vmem:[%s172 + $0x9c] sm:$0xf] %vm3824, %v3351
      %3865 = vst.msk [vmem:[%s172 + $0xa0] sm:$0xf] %vm3824, %v3352
      %3866 = vst.msk [vmem:[%s172 + $0xa4] sm:$0xf] %vm3824, %v3353
      %3867 = vst.msk [vmem:[%s172 + $0xa8] sm:$0xf] %vm3824, %v3354
      %3868 = vst.msk [vmem:[%s172 + $0xac] sm:$0xf] %vm3824, %v3355
      %3869 = vst.msk [vmem:[%s172 + $0xb0] sm:$0xf] %vm3824, %v3356
      %3870 = vst.msk [vmem:[%s172 + $0xb4] sm:$0xf] %vm3824, %v3357
      %3871 = vst.msk [vmem:[%s172 + $0xb8] sm:$0xf] %vm3824, %v3358
      %3872 = vst.msk [vmem:[%s172 + $0xbc] sm:$0xf] %vm3824, %v3359
      %3873 = vst.msk [vmem:[%s172 + $0xc0] sm:$0xf] %vm3824, %v3360
      %3874 = vst.msk [vmem:[%s172 + $0xc4] sm:$0xf] %vm3824, %v3361
      %3875 = vst.msk [vmem:[%s172 + $0xc8] sm:$0xf] %vm3824, %v3362
      %3876 = vst.msk [vmem:[%s172 + $0xcc] sm:$0xf] %vm3824, %v3363
      %3877 = vst.msk [vmem:[%s172 + $0xd0] sm:$0xf] %vm3824, %v3364
      %3878 = vst.msk [vmem:[%s172 + $0xd4] sm:$0xf] %vm3824, %v3365
      %3879 = vst.msk [vmem:[%s172 + $0xd8] sm:$0xf] %vm3824, %v3366
      %3880 = vst.msk [vmem:[%s172 + $0xdc] sm:$0xf] %vm3824, %v3367
      %3881 = vst.msk [vmem:[%s172 + $0xe0] sm:$0xf] %vm3824, %v3368
      %3882 = vst.msk [vmem:[%s172 + $0xe4] sm:$0xf] %vm3824, %v3369
      %3883 = vst.msk [vmem:[%s172 + $0xe8] sm:$0xf] %vm3824, %v3370
      %3884 = vst.msk [vmem:[%s172 + $0xec] sm:$0xf] %vm3824, %v3371
      %3885 = vst.msk [vmem:[%s172 + $0xf0] sm:$0xf] %vm3824, %v3372
      %3886 = vst.msk [vmem:[%s172 + $0xf4] sm:$0xf] %vm3824, %v3373
      %3887 = vst.msk [vmem:[%s172 + $0xf8] sm:$0xf] %vm3824, %v3374
      %3888 = vst.msk [vmem:[%s172 + $0xfc] sm:$0xf] %vm3824, %v3375
      %3889 = vst.msk [vmem:[%s172 + $0x100] sm:$0xf] %vm3824, %v3376
      %3890 = vst.msk [vmem:[%s172 + $0x104] sm:$0xf] %vm3824, %v3377
      %3891 = vst.msk [vmem:[%s172 + $0x108] sm:$0xf] %vm3824, %v3378
      %3892 = vst.msk [vmem:[%s172 + $0x10c] sm:$0xf] %vm3824, %v3379
      %3893 = vst.msk [vmem:[%s172 + $0x110] sm:$0xf] %vm3824, %v3380
      %3894 = vst.msk [vmem:[%s172 + $0x114] sm:$0xf] %vm3824, %v3381
      %3895 = vst.msk [vmem:[%s172 + $0x118] sm:$0xf] %vm3824, %v3382
      %3896 = vst.msk [vmem:[%s172 + $0x11c] sm:$0xf] %vm3824, %v3383
      %3897 = vst.msk [vmem:[%s172 + $0x120] sm:$0xf] %vm3824, %v3384
      %3898 = vst.msk [vmem:[%s172 + $0x124] sm:$0xf] %vm3824, %v3385
      %3899 = vst.msk [vmem:[%s172 + $0x128] sm:$0xf] %vm3824, %v3386
      %3900 = vst.msk [vmem:[%s172 + $0x12c] sm:$0xf] %vm3824, %v3387
      %3901 = vst.msk [vmem:[%s172 + $0x130] sm:$0xf] %vm3824, %v3388
      %3902 = vst.msk [vmem:[%s172 + $0x134] sm:$0xf] %vm3824, %v3389
      %3903 = vst.msk [vmem:[%s172 + $0x138] sm:$0xf] %vm3824, %v3390
      %3904 = vst.msk [vmem:[%s172 + $0x13c] sm:$0xf] %vm3824, %v3391
      %3905 = vst.msk [vmem:[%s172 + $0x140] sm:$0xf] %vm3824, %v3392
      %3906 = vst.msk [vmem:[%s172 + $0x144] sm:$0xf] %vm3824, %v3393
      %3907 = vst.msk [vmem:[%s172 + $0x148] sm:$0xf] %vm3824, %v3394
      %3908 = vst.msk [vmem:[%s172 + $0x14c] sm:$0xf] %vm3824, %v3395
      %3909 = vst.msk [vmem:[%s172 + $0x150] sm:$0xf] %vm3824, %v3396
      %3910 = vst.msk [vmem:[%s172 + $0x154] sm:$0xf] %vm3824, %v3397
      %3911 = vst.msk [vmem:[%s172 + $0x158] sm:$0xf] %vm3824, %v3398
      %3912 = vst.msk [vmem:[%s172 + $0x15c] sm:$0xf] %vm3824, %v3399
      %3913 = vst.msk [vmem:[%s172 + $0x160] sm:$0xf] %vm3824, %v3400
      %3914 = vst.msk [vmem:[%s172 + $0x164] sm:$0xf] %vm3824, %v3401
      %3915 = vst.msk [vmem:[%s172 + $0x168] sm:$0xf] %vm3824, %v3402
      %3916 = vst.msk [vmem:[%s172 + $0x16c] sm:$0xf] %vm3824, %v3403
      %3917 = vst.msk [vmem:[%s172 + $0x170] sm:$0xf] %vm3824, %v3404
      %3918 = vst.msk [vmem:[%s172 + $0x174] sm:$0xf] %vm3824, %v3405
      %3919 = vst.msk [vmem:[%s172 + $0x178] sm:$0xf] %vm3824, %v3406
      %3920 = vst.msk [vmem:[%s172 + $0x17c] sm:$0xf] %vm3824, %v3407
      %3921 = vst.msk [vmem:[%s172 + $0x180] sm:$0xf] %vm3824, %v3408
      %3922 = vst.msk [vmem:[%s172 + $0x184] sm:$0xf] %vm3824, %v3409
      %3923 = vst.msk [vmem:[%s172 + $0x188] sm:$0xf] %vm3824, %v3410
      %3924 = vst.msk [vmem:[%s172 + $0x18c] sm:$0xf] %vm3824, %v3411
      %3925 = vst.msk [vmem:[%s172 + $0x190] sm:$0xf] %vm3824, %v3412
      %3926 = vst.msk [vmem:[%s172 + $0x194] sm:$0xf] %vm3824, %v3413
      %3927 = vst.msk [vmem:[%s172 + $0x198] sm:$0xf] %vm3824, %v3414
      %3928 = vst.msk [vmem:[%s172 + $0x19c] sm:$0xf] %vm3824, %v3415
      %3929 = vst.msk [vmem:[%s172 + $0x1a0] sm:$0xf] %vm3824, %v3416
      %3930 = vst.msk [vmem:[%s172 + $0x1a4] sm:$0xf] %vm3824, %v3417
      %3931 = vst.msk [vmem:[%s172 + $0x1a8] sm:$0xf] %vm3824, %v3418
      %3932 = vst.msk [vmem:[%s172 + $0x1ac] sm:$0xf] %vm3824, %v3419
      %3933 = vst.msk [vmem:[%s172 + $0x1b0] sm:$0xf] %vm3824, %v3420
      %3934 = vst.msk [vmem:[%s172 + $0x1b4] sm:$0xf] %vm3824, %v3421
      %3935 = vst.msk [vmem:[%s172 + $0x1b8] sm:$0xf] %vm3824, %v3422
      %3936 = vst.msk [vmem:[%s172 + $0x1bc] sm:$0xf] %vm3824, %v3423
      %3937 = vst.msk [vmem:[%s172 + $0x1c0] sm:$0xf] %vm3824, %v3424
      %3938 = vst.msk [vmem:[%s172 + $0x1c4] sm:$0xf] %vm3824, %v3425
      %3939 = vst.msk [vmem:[%s172 + $0x1c8] sm:$0xf] %vm3824, %v3426
      %3940 = vst.msk [vmem:[%s172 + $0x1cc] sm:$0xf] %vm3824, %v3427
      %3941 = vst.msk [vmem:[%s172 + $0x1d0] sm:$0xf] %vm3824, %v3428
      %3942 = vst.msk [vmem:[%s172 + $0x1d4] sm:$0xf] %vm3824, %v3429
      %3943 = vst.msk [vmem:[%s172 + $0x1d8] sm:$0xf] %vm3824, %v3430
      %3944 = vst.msk [vmem:[%s172 + $0x1dc] sm:$0xf] %vm3824, %v3431
      %3945 = vst.msk [vmem:[%s172 + $0x1e0] sm:$0xf] %vm3824, %v3432
      %3946 = vst.msk [vmem:[%s172 + $0x1e4] sm:$0xf] %vm3824, %v3433
      %3947 = vst.msk [vmem:[%s172 + $0x1e8] sm:$0xf] %vm3824, %v3434
      %3948 = vst.msk [vmem:[%s172 + $0x1ec] sm:$0xf] %vm3824, %v3435
      %3949 = vst.msk [vmem:[%s172 + $0x1f0] sm:$0xf] %vm3824, %v3436
      %3950 = vst.msk [vmem:[%s172 + $0x1f4] sm:$0xf] %vm3824, %v3437
      %3951 = vst.msk [vmem:[%s172 + $0x1f8] sm:$0xf] %vm3824, %v3438
      %3952 = vst.msk [vmem:[%s172 + $0x1fc] sm:$0xf] %vm3824, %v3439
      %3953 = vst.msk [vmem:[%s172 + $0x200] sm:$0xf] %vm3824, %v3440
      %3954 = vst.msk [vmem:[%s172 + $0x204] sm:$0xf] %vm3824, %v3441
      %3955 = vst.msk [vmem:[%s172 + $0x208] sm:$0xf] %vm3824, %v3442
      %3956 = vst.msk [vmem:[%s172 + $0x20c] sm:$0xf] %vm3824, %v3443
      %3957 = vst.msk [vmem:[%s172 + $0x210] sm:$0xf] %vm3824, %v3444
      %3958 = vst.msk [vmem:[%s172 + $0x214] sm:$0xf] %vm3824, %v3445
      %3959 = vst.msk [vmem:[%s172 + $0x218] sm:$0xf] %vm3824, %v3446
      %3960 = vst.msk [vmem:[%s172 + $0x21c] sm:$0xf] %vm3824, %v3447
      %3961 = vst.msk [vmem:[%s172 + $0x220] sm:$0xf] %vm3824, %v3448
      %3962 = vst.msk [vmem:[%s172 + $0x224] sm:$0xf] %vm3824, %v3449
      %3963 = vst.msk [vmem:[%s172 + $0x228] sm:$0xf] %vm3824, %v3450
      %3964 = vst.msk [vmem:[%s172 + $0x22c] sm:$0xf] %vm3824, %v3451
      %3965 = vst.msk [vmem:[%s172 + $0x230] sm:$0xf] %vm3824, %v3452
      %3966 = vst.msk [vmem:[%s172 + $0x234] sm:$0xf] %vm3824, %v3453
      %3967 = vst.msk [vmem:[%s172 + $0x238] sm:$0xf] %vm3824, %v3454
      %3968 = vst.msk [vmem:[%s172 + $0x23c] sm:$0xf] %vm3824, %v3455
      %3969 = vst.msk [vmem:[%s172 + $0x240] sm:$0xf] %vm3824, %v3456
      %3970 = vst.msk [vmem:[%s172 + $0x244] sm:$0xf] %vm3824, %v3457
      %3971 = vst.msk [vmem:[%s172 + $0x248] sm:$0xf] %vm3824, %v3458
      %3972 = vst.msk [vmem:[%s172 + $0x24c] sm:$0xf] %vm3824, %v3459
      %3973 = vst.msk [vmem:[%s172 + $0x250] sm:$0xf] %vm3824, %v3460
      %3974 = vst.msk [vmem:[%s172 + $0x254] sm:$0xf] %vm3824, %v3461
      %3975 = vst.msk [vmem:[%s172 + $0x258] sm:$0xf] %vm3824, %v3462
      %3976 = vst.msk [vmem:[%s172 + $0x25c] sm:$0xf] %vm3824, %v3463
      %3977 = vst.msk [vmem:[%s172 + $0x260] sm:$0xf] %vm3824, %v3464
      %3978 = vst.msk [vmem:[%s172 + $0x264] sm:$0xf] %vm3824, %v3465
      %3979 = vst.msk [vmem:[%s172 + $0x268] sm:$0xf] %vm3824, %v3466
      %3980 = vst.msk [vmem:[%s172 + $0x26c] sm:$0xf] %vm3824, %v3467
      %3981 = vst.msk [vmem:[%s172 + $0x270] sm:$0xf] %vm3824, %v3468
      %3982 = vst.msk [vmem:[%s172 + $0x274] sm:$0xf] %vm3824, %v3469
      %3983 = vst.msk [vmem:[%s172 + $0x278] sm:$0xf] %vm3824, %v3470
      %3984 = vst.msk [vmem:[%s172 + $0x27c] sm:$0xf] %vm3824, %v3471
      %3985 = vst.msk [vmem:[%s172 + $0x280] sm:$0xf] %vm3824, %v3472
      %3986 = vst.msk [vmem:[%s172 + $0x284] sm:$0xf] %vm3824, %v3473
      %3987 = vst.msk [vmem:[%s172 + $0x288] sm:$0xf] %vm3824, %v3474
      %3988 = vst.msk [vmem:[%s172 + $0x28c] sm:$0xf] %vm3824, %v3475
      %3989 = vst.msk [vmem:[%s172 + $0x290] sm:$0xf] %vm3824, %v3476
      %3990 = vst.msk [vmem:[%s172 + $0x294] sm:$0xf] %vm3824, %v3477
      %3991 = vst.msk [vmem:[%s172 + $0x298] sm:$0xf] %vm3824, %v3478
      %3992 = vst.msk [vmem:[%s172 + $0x29c] sm:$0xf] %vm3824, %v3479
      %3993 = vst.msk [vmem:[%s172 + $0x2a0] sm:$0xf] %vm3824, %v3480
      %3994 = vst.msk [vmem:[%s172 + $0x2a4] sm:$0xf] %vm3824, %v3481
      %3995 = vst.msk [vmem:[%s172 + $0x2a8] sm:$0xf] %vm3824, %v3482
      %3996 = vst.msk [vmem:[%s172 + $0x2ac] sm:$0xf] %vm3824, %v3483
      %3997 = vst.msk [vmem:[%s172 + $0x2b0] sm:$0xf] %vm3824, %v3484
      %3998 = vst.msk [vmem:[%s172 + $0x2b4] sm:$0xf] %vm3824, %v3485
      %3999 = vst.msk [vmem:[%s172 + $0x2b8] sm:$0xf] %vm3824, %v3486
      %4000 = vst.msk [vmem:[%s172 + $0x2bc] sm:$0xf] %vm3824, %v3487
      %4001 = vst.msk [vmem:[%s172 + $0x2c0] sm:$0xf] %vm3824, %v3488
      %4002 = vst.msk [vmem:[%s172 + $0x2c4] sm:$0xf] %vm3824, %v3489
      %4003 = vst.msk [vmem:[%s172 + $0x2c8] sm:$0xf] %vm3824, %v3490
      %4004 = vst.msk [vmem:[%s172 + $0x2cc] sm:$0xf] %vm3824, %v3491
      %4005 = vst.msk [vmem:[%s172 + $0x2d0] sm:$0xf] %vm3824, %v3492
      %4006 = vst.msk [vmem:[%s172 + $0x2d4] sm:$0xf] %vm3824, %v3493
      %4007 = vst.msk [vmem:[%s172 + $0x2d8] sm:$0xf] %vm3824, %v3494
      %4008 = vst.msk [vmem:[%s172 + $0x2dc] sm:$0xf] %vm3824, %v3495
      %4009 = vst.msk [vmem:[%s172 + $0x2e0] sm:$0xf] %vm3824, %v3496
      %4010 = vst.msk [vmem:[%s172 + $0x2e4] sm:$0xf] %vm3824, %v3497
      %4011 = vst.msk [vmem:[%s172 + $0x2e8] sm:$0xf] %vm3824, %v3498
      %4012 = vst.msk [vmem:[%s172 + $0x2ec] sm:$0xf] %vm3824, %v3499
      %4013 = vst.msk [vmem:[%s172 + $0x2f0] sm:$0xf] %vm3824, %v3500
      %4014 = vst.msk [vmem:[%s172 + $0x2f4] sm:$0xf] %vm3824, %v3501
      %4015 = vst.msk [vmem:[%s172 + $0x2f8] sm:$0xf] %vm3824, %v3502
      %4016 = vst.msk [vmem:[%s172 + $0x2fc] sm:$0xf] %vm3824, %v3503
      %4017 = vst.msk [vmem:[%s172 + $0x300] sm:$0xf] %vm3824, %v3504
      %4018 = vst.msk [vmem:[%s172 + $0x304] sm:$0xf] %vm3824, %v3505
      %4019 = vst.msk [vmem:[%s172 + $0x308] sm:$0xf] %vm3824, %v3506
      %4020 = vst.msk [vmem:[%s172 + $0x30c] sm:$0xf] %vm3824, %v3507
      %4021 = vst.msk [vmem:[%s172 + $0x310] sm:$0xf] %vm3824, %v3508
      %4022 = vst.msk [vmem:[%s172 + $0x314] sm:$0xf] %vm3824, %v3509
      %4023 = vst.msk [vmem:[%s172 + $0x318] sm:$0xf] %vm3824, %v3510
      %4024 = vst.msk [vmem:[%s172 + $0x31c] sm:$0xf] %vm3824, %v3511
      %4025 = vst.msk [vmem:[%s172 + $0x320] sm:$0xf] %vm3824, %v3512
      %4026 = vst.msk [vmem:[%s172 + $0x324] sm:$0xf] %vm3824, %v3513
      %4027 = vst.msk [vmem:[%s172 + $0x328] sm:$0xf] %vm3824, %v3514
      %4028 = vst.msk [vmem:[%s172 + $0x32c] sm:$0xf] %vm3824, %v3515
      %4029 = vst.msk [vmem:[%s172 + $0x330] sm:$0xf] %vm3824, %v3516
      %4030 = vst.msk [vmem:[%s172 + $0x334] sm:$0xf] %vm3824, %v3517
      %4031 = vst.msk [vmem:[%s172 + $0x338] sm:$0xf] %vm3824, %v3518
      %4032 = vst.msk [vmem:[%s172 + $0x33c] sm:$0xf] %vm3824, %v3519
      %4033 = vst.msk [vmem:[%s172 + $0x340] sm:$0xf] %vm3824, %v3520
      %4034 = vst.msk [vmem:[%s172 + $0x344] sm:$0xf] %vm3824, %v3521
      %4035 = vst.msk [vmem:[%s172 + $0x348] sm:$0xf] %vm3824, %v3522
      %4036 = vst.msk [vmem:[%s172 + $0x34c] sm:$0xf] %vm3824, %v3523
      %4037 = vst.msk [vmem:[%s172 + $0x350] sm:$0xf] %vm3824, %v3524
      %4038 = vst.msk [vmem:[%s172 + $0x354] sm:$0xf] %vm3824, %v3525
      %4039 = vst.msk [vmem:[%s172 + $0x358] sm:$0xf] %vm3824, %v3526
      %4040 = vst.msk [vmem:[%s172 + $0x35c] sm:$0xf] %vm3824, %v3527
      %4041 = vst.msk [vmem:[%s172 + $0x360] sm:$0xf] %vm3824, %v3528
      %4042 = vst.msk [vmem:[%s172 + $0x364] sm:$0xf] %vm3824, %v3529
      %4043 = vst.msk [vmem:[%s172 + $0x368] sm:$0xf] %vm3824, %v3530
      %4044 = vst.msk [vmem:[%s172 + $0x36c] sm:$0xf] %vm3824, %v3531
      %4045 = vst.msk [vmem:[%s172 + $0x370] sm:$0xf] %vm3824, %v3532
      %4046 = vst.msk [vmem:[%s172 + $0x374] sm:$0xf] %vm3824, %v3533
      %4047 = vst.msk [vmem:[%s172 + $0x378] sm:$0xf] %vm3824, %v3534
      %4048 = vst.msk [vmem:[%s172 + $0x37c] sm:$0xf] %vm3824, %v3535
      %4049 = vst.msk [vmem:[%s172 + $0x380] sm:$0xf] %vm3824, %v3536
      %4050 = vst.msk [vmem:[%s172 + $0x384] sm:$0xf] %vm3824, %v3537
      %4051 = vst.msk [vmem:[%s172 + $0x388] sm:$0xf] %vm3824, %v3538
      %4052 = vst.msk [vmem:[%s172 + $0x38c] sm:$0xf] %vm3824, %v3539
      %4053 = vst.msk [vmem:[%s172 + $0x390] sm:$0xf] %vm3824, %v3540
      %4054 = vst.msk [vmem:[%s172 + $0x394] sm:$0xf] %vm3824, %v3541
      %4055 = vst.msk [vmem:[%s172 + $0x398] sm:$0xf] %vm3824, %v3542
      %4056 = vst.msk [vmem:[%s172 + $0x39c] sm:$0xf] %vm3824, %v3543
      %4057 = vst.msk [vmem:[%s172 + $0x3a0] sm:$0xf] %vm3824, %v3544
      %4058 = vst.msk [vmem:[%s172 + $0x3a4] sm:$0xf] %vm3824, %v3545
      %4059 = vst.msk [vmem:[%s172 + $0x3a8] sm:$0xf] %vm3824, %v3546
      %4060 = vst.msk [vmem:[%s172 + $0x3ac] sm:$0xf] %vm3824, %v3547
      %4061 = vst.msk [vmem:[%s172 + $0x3b0] sm:$0xf] %vm3824, %v3548
      %4062 = vst.msk [vmem:[%s172 + $0x3b4] sm:$0xf] %vm3824, %v3549
      %4063 = vst.msk [vmem:[%s172 + $0x3b8] sm:$0xf] %vm3824, %v3550
      %4064 = vst.msk [vmem:[%s172 + $0x3bc] sm:$0xf] %vm3824, %v3551
      %4065 = vst.msk [vmem:[%s172 + $0x3c0] sm:$0xf] %vm3824, %v3552
      %4066 = vst.msk [vmem:[%s172 + $0x3c4] sm:$0xf] %vm3824, %v3553
      %4067 = vst.msk [vmem:[%s172 + $0x3c8] sm:$0xf] %vm3824, %v3554
      %4068 = vst.msk [vmem:[%s172 + $0x3cc] sm:$0xf] %vm3824, %v3555
      %4069 = vst.msk [vmem:[%s172 + $0x3d0] sm:$0xf] %vm3824, %v3556
      %4070 = vst.msk [vmem:[%s172 + $0x3d4] sm:$0xf] %vm3824, %v3557
      %4071 = vst.msk [vmem:[%s172 + $0x3d8] sm:$0xf] %vm3824, %v3558
      %4072 = vst.msk [vmem:[%s172 + $0x3dc] sm:$0xf] %vm3824, %v3559
      %4073 = vst.msk [vmem:[%s172 + $0x3e0] sm:$0xf] %vm3824, %v3560
      %4074 = vst.msk [vmem:[%s172 + $0x3e4] sm:$0xf] %vm3824, %v3561
      %4075 = vst.msk [vmem:[%s172 + $0x3e8] sm:$0xf] %vm3824, %v3562
      %4076 = vst.msk [vmem:[%s172 + $0x3ec] sm:$0xf] %vm3824, %v3563
      %4077 = vst.msk [vmem:[%s172 + $0x3f0] sm:$0xf] %vm3824, %v3564
      %4078 = vst.msk [vmem:[%s172 + $0x3f4] sm:$0xf] %vm3824, %v3565
      %4079 = vst.msk [vmem:[%s172 + $0x3f8] sm:$0xf] %vm3824, %v3566
      %4080 = vst.msk [vmem:[%s172 + $0x3fc] sm:$0xf] %vm3824, %v3567
      %s4081 = smul.u32 256, %s14
      %p4082 = scmp.lt.s32.totalorder %s4081, 1023
      %s4083 = scalar_select %p4082, %s4081, 1023
      %s4084 = smul.addr %s4083, 4
      %s4085 = scalar_lea.vmem %s3, %s4084
      // Predicated region
      $region33: #{encoder_d_forward.2} parent=31 // pred_check
        %p4086 = pneg %p100
      $region34: #{encoder_d_forward.2} parent=31 // pred_check_branch
        %4088 = sbr.rel (%p4086) target = $region36
      $region35: #{encoder_d_forward.2} parent=31 // pred_region
        %s4089 = smul.u32 256, %s14
      $region36: #{encoder_d_forward.2} parent=31 // pred_fallthru
        _
    $region32: #{encoder_d_forward.2} parent=5 // pred_fallthru
      _
    %p4090 = scmp.le.s32.totalorder 2, %s9
    // Predicated region
    $region37: #{encoder_d_forward.2} parent=5 // pred_check
      %p4091 = pneg %p4090
    $region38: #{encoder_d_forward.2} parent=5 // pred_check_branch
      %4093 = sbr.rel (%p4091) target = $region40
    $region39: #{encoder_d_forward.2} parent=5 // pred_region
      %s4094 = ssub.s32 %s9, 2
      // Predicated region
      $region41: #{encoder_d_forward.2} parent=39 // pred_check
        %p4095 = pneg %p106
      $region42: #{encoder_d_forward.2} parent=39 // pred_check_branch
        %4097 = sbr.rel (%p4095) target = $region44
      $region43: #{encoder_d_forward.2} parent=39 // pred_region
        %s4098 = smul.u32 256, %s15
        %p4099 = scmp.lt.s32.totalorder %s4098, 1023
        %s4100 = scalar_select %p4099, %s4098, 1023
        %s4101 = smul.addr %s4100, 4
        %s4102 = scalar_lea.vmem %s3, %s4101
      $region44: #{encoder_d_forward.2} parent=39 // pred_fallthru
        _
    $region40: #{encoder_d_forward.2} parent=5 // pred_fallthru
      _
  $region6: #{encoder_d_forward.2} parent=0 // loop_footer
    %s13 = sadd.s32 1, %s9
  $region7: #{encoder_d_forward.2} parent=0 // loop_footer_branch
    %8 = sbr.rel target = $region3
  $region8: #{encoder_d_forward.2} parent=0 // loop_exit
    _

// kernel: encoder_d_forward.3
$region0: #{encoder_d_forward.3}
  #allocation0 [shape = 'u32[]', space=smem, size = 0x4, offset = 0x4, fixed_abs, tag = 'smem constant byte address 0x4 - core index']
  #allocation1 [shape = 'u32[144,128]{1,0:T(1,128)}', space=vmem, size = 0x12000, scoped, tag = 'internal scratch']
  %s0 = inlined_call_operand.vmem [shape: bf16[2048,128], index: 0, kind: input, shape index: {}]
  %s1 = inlined_call_operand.vmem [shape: bf16[128,16], index: 1, kind: input, shape index: {}]
  %s2 = inlined_call_operand.vmem [shape: f32[1,16], index: 2, kind: input, shape index: {}]
  %s3 = inlined_call_operand.vmem [shape: bf16[2048,16], index: 3, kind: output, shape index: {}]
  %s4 = sld [smem:[#allocation0]]
  $region45: #{encoder_d_forward.3} parent=0
    _
  %s6 = ssub.s32 1, %s4
  %s7 = scalar_select 0, %s6, %s4
  loop: start=0, step=1, limit=4
  $region2: #{encoder_d_forward.3} parent=0 // loop_pre_header
    _
  $region3: #{encoder_d_forward.3} parent=0 // loop_header
    %s9 = sphi 0, %s13
    %p10 = scmp.ge.s32.totalorder %s9, 4
    %s19 = sphi 0, %s21
    %s22 = sphi 0, %s19
    %s23 = sphi 0, %s22
    %s39 = sphi 0, %s23
    %s43 = sphi 0, %s43
    %s45 = sphi 0, %s43
    %s46 = sphi 0, %s45
    %s60 = sphi 0, %s46
    %s64 = sphi 0, %s64
    %s66 = sphi 0, %s64
    %s67 = sphi 0, %s66
    %s81 = sphi 0, %s67
    %s87 = sphi 0, %s89
    %s90 = sphi 0, %s87
    %s91 = sphi 0, %s90
    %s107 = sphi 0, %s91
  $region4: #{encoder_d_forward.3} parent=0 // loop_header_branch
    %12 = sbr.rel (%p10) target = $region8
  $region5: #{encoder_d_forward.3} parent=0 // loop_body
    %s14 = ssub.s32 %s9, 1
    %s15 = ssub.s32 %s9, 2
    %s16 = sadd.s32 %s9, 1
    %s17 = ssub.s32 %s9, %s16
    %p18 = scmp.eq.s32.totalorder %s17, 0
    %s20 = sadd.s32 %s19, 1
    %s21 = scalar_select %p18, %s19, %s20
    %p24 = pneg %p18
    %p25 = scmp.eq.s32.totalorder %s9, 1
    %p26 = por %p24, %p25
    %p27 = scmp.ne.s32.totalorder %s19, %s22
    %p28 = scmp.eq.s32.totalorder %s9, 0
    %p29 = por %p27, %p28
    %p30 = scmp.ne.s32.totalorder %s19, %s22
    %p31 = scmp.eq.s32.totalorder %s14, 1
    %p32 = por %p30, %p31
    %p33 = scmp.ne.s32.totalorder %s22, %s23
    %p34 = scmp.eq.s32.totalorder %s14, 0
    %p35 = por %p33, %p34
    %p36 = scmp.ne.s32.totalorder %s22, %s23
    %p37 = scmp.eq.s32.totalorder %s15, 1
    %p38 = por %p36, %p37
    %p40 = scmp.ne.s32.totalorder %s23, %s39
    %p41 = scmp.eq.s32.totalorder %s15, 0
    %p42 = por %p40, %p41
    %s44 = sadd.s32 %s43, 1
    %p47 = scmp.eq.s32.totalorder %s9, 1
    %p48 = scmp.ne.s32.totalorder %s43, %s45
    %p49 = scmp.eq.s32.totalorder %s9, 0
    %p50 = por %p48, %p49
    %p51 = scmp.ne.s32.totalorder %s43, %s45
    %p52 = scmp.eq.s32.totalorder %s14, 1
    %p53 = por %p51, %p52
    %p54 = scmp.ne.s32.totalorder %s45, %s46
    %p55 = scmp.eq.s32.totalorder %s14, 0
    %p56 = por %p54, %p55
    %p57 = scmp.ne.s32.totalorder %s45, %s46
    %p58 = scmp.eq.s32.totalorder %s15, 1
    %p59 = por %p57, %p58
    %p61 = scmp.ne.s32.totalorder %s46, %s60
    %p62 = scmp.eq.s32.totalorder %s15, 0
    %p63 = por %p61, %p62
    %s65 = sadd.s32 %s64, 1
    %p68 = scmp.eq.s32.totalorder %s9, 1
    %p69 = scmp.ne.s32.totalorder %s64, %s66
    %p70 = scmp.eq.s32.totalorder %s9, 0
    %p71 = por %p69, %p70
    %p72 = scmp.ne.s32.totalorder %s64, %s66
    %p73 = scmp.eq.s32.totalorder %s14, 1
    %p74 = por %p72, %p73
    %p75 = scmp.ne.s32.totalorder %s66, %s67
    %p76 = scmp.eq.s32.totalorder %s14, 0
    %p77 = por %p75, %p76
    %p78 = scmp.ne.s32.totalorder %s66, %s67
    %p79 = scmp.eq.s32.totalorder %s15, 1
    %p80 = por %p78, %p79
    %p82 = scmp.ne.s32.totalorder %s67, %s81
    %p83 = scmp.eq.s32.totalorder %s15, 0
    %p84 = por %p82, %p83
    %s85 = ssub.s32 %s9, %s16
    %p86 = scmp.eq.s32.totalorder %s85, 0
    %s88 = sadd.s32 %s87, 1
    %s89 = scalar_select %p86, %s87, %s88
    %p92 = pneg %p86
    %p93 = scmp.eq.s32.totalorder %s9, 1
    %p94 = por %p92, %p93
    %p95 = scmp.ne.s32.totalorder %s87, %s90
    %p96 = scmp.eq.s32.totalorder %s9, 0
    %p97 = por %p95, %p96
    %p98 = scmp.ne.s32.totalorder %s87, %s90
    %p99 = scmp.eq.s32.totalorder %s14, 1
    %p100 = por %p98, %p99
    %p101 = scmp.ne.s32.totalorder %s90, %s91
    %p102 = scmp.eq.s32.totalorder %s14, 0
    %p103 = por %p101, %p102
    %p104 = scmp.ne.s32.totalorder %s90, %s91
    %p105 = scmp.eq.s32.totalorder %s15, 1
    %p106 = por %p104, %p105
    %p108 = scmp.ne.s32.totalorder %s91, %s107
    %p109 = scmp.eq.s32.totalorder %s15, 0
    %p110 = por %p108, %p109
    %p111 = scmp.le.s32.totalorder 1, %s9
    %p112 = scmp.lt.s32.totalorder %s9, 3
    %p113 = pnand %p111, %p112
    %p114 = pneg %p113
    // Predicated region
    $region9: #{encoder_d_forward.3} parent=5 // pred_check
      _
    $region10: #{encoder_d_forward.3} parent=5 // pred_check_branch
      %116 = sbr.rel (%p113) target = $region12
    $region11: #{encoder_d_forward.3} parent=5 // pred_region
      %s117 = ssub.s32 %s9, 1
      // Predicated region
      $region13: #{encoder_d_forward.3} parent=11 // pred_check
        %p118 = pneg %p56
      $region14: #{encoder_d_forward.3} parent=11 // pred_check_branch
        %120 = sbr.rel (%p118) target = $region16
      $region15: #{encoder_d_forward.3} parent=11 // pred_region
        _
      $region16: #{encoder_d_forward.3} parent=11 // pred_fallthru
        _
      // Predicated region
      $region17: #{encoder_d_forward.3} parent=11 // pred_check
        %p121 = pneg %p77
      $region18: #{encoder_d_forward.3} parent=11 // pred_check_branch
        %123 = sbr.rel (%p121) target = $region20
      $region19: #{encoder_d_forward.3} parent=11 // pred_region
        _
      $region20: #{encoder_d_forward.3} parent=11 // pred_fallthru
        _
    $region12: #{encoder_d_forward.3} parent=5 // pred_fallthru
      _
    %p124 = scmp.lt.s32.totalorder %s9, 2
    // Predicated region
    $region21: #{encoder_d_forward.3} parent=5 // pred_check
      %p125 = pneg %p124
    $region22: #{encoder_d_forward.3} parent=5 // pred_check_branch
      %127 = sbr.rel (%p125) target = $region24
    $region23: #{encoder_d_forward.3} parent=5 // pred_region
      // Predicated region
      $region25: #{encoder_d_forward.3} parent=23 // pred_check
        %p128 = pneg %p29
      $region26: #{encoder_d_forward.3} parent=23 // pred_check_branch
        %130 = sbr.rel (%p128) target = $region28
      $region27: #{encoder_d_forward.3} parent=23 // pred_region
        %s131 = smul.u32 128, %s9
        %p132 = scmp.lt.s32.totalorder %s131, 255
        %s133 = scalar_select %p132, %s131, 255
        %s134 = smul.addr %s133, 4
        %s135 = scalar_lea.vmem %s0, %s134
        %s136 = smul.u32 128, %s9
      $region28: #{encoder_d_forward.3} parent=23 // pred_fallthru
        _
    $region24: #{encoder_d_forward.3} parent=5 // pred_fallthru
      _
    %p137 = scmp.le.s32.totalorder 1, %s9
    %p138 = scmp.lt.s32.totalorder %s9, 3
    %p139 = pnand %p137, %p138
    %p140 = pneg %p139
    // Predicated region
    $region29: #{encoder_d_forward.3} parent=5 // pred_check
      _
    $region30: #{encoder_d_forward.3} parent=5 // pred_check_branch
      %142 = sbr.rel (%p139) target = $region32
    $region31: #{encoder_d_forward.3} parent=5 // pred_region
      %s143 = ssub.s32 %s9, 1
      %s144 = smul.u32 128, %s14
      %p145 = scmp.lt.s32.totalorder %s144, 255
      %s146 = scalar_select %p145, %s144, 255
      %s147 = smul.addr %s146, 4
      %s148 = scalar_lea.vmem %s0, %s147
      %p149 = pneg %p35
      %p150 = pneg %p32
      %p151 = pneg %p56
      %p152 = pneg %p53
      %p153 = pneg %p77
      %p154 = pneg %p74
      %p155 = pneg %p103
      %p156 = pneg %p100
      %s157 = smul.u32 128, %s14
      %p158 = scmp.lt.s32.totalorder %s157, 255
      %s159 = scalar_select %p158, %s157, 255
      %s160 = smul.addr %s159, 4
      %s161 = scalar_lea.vmem %s3, %s160
      %s162 = smul.u32 128, %s14
      %p163 = scmp.lt.s32.totalorder %s162, 255
      %s164 = scalar_select %p163, %s162, 255
      %s165 = smul.addr %s164, 4
      %s166 = scalar_lea.vmem %s0, %s165
      %s167 = smul.u32 128, %s14
      %s168 = smul.u32 128, %s14
      %p169 = scmp.lt.s32.totalorder %s168, 255
      %s170 = scalar_select %p169, %s168, 255
      %s171 = smul.addr %s170, 4
      %s172 = scalar_lea.vmem %s3, %s171
      %s173 = smul.u32 128, %s14
      %v175 = vld [vmem:[%s166] sm:$0xf]
      %v176 = vld [vmem:[%s166 + $0x4] sm:$0xf]
      %v177 = vld [vmem:[%s166 + $0x8] sm:$0xf]
      %v178 = vld [vmem:[%s166 + $0xc] sm:$0xf]
      %v179 = vld [vmem:[%s166 + $0x10] sm:$0xf]
      %v180 = vld [vmem:[%s166 + $0x14] sm:$0xf]
      %v181 = vld [vmem:[%s166 + $0x18] sm:$0xf]
      %v182 = vld [vmem:[%s166 + $0x1c] sm:$0xf]
      %v183 = vld [vmem:[%s166 + $0x20] sm:$0xf]
      %v184 = vld [vmem:[%s166 + $0x24] sm:$0xf]
      %v185 = vld [vmem:[%s166 + $0x28] sm:$0xf]
      %v186 = vld [vmem:[%s166 + $0x2c] sm:$0xf]
      %v187 = vld [vmem:[%s166 + $0x30] sm:$0xf]
      %v188 = vld [vmem:[%s166 + $0x34] sm:$0xf]
      %v189 = vld [vmem:[%s166 + $0x38] sm:$0xf]
      %v190 = vld [vmem:[%s166 + $0x3c] sm:$0xf]
      %v191 = vld [vmem:[%s166 + $0x40] sm:$0xf]
      %v192 = vld [vmem:[%s166 + $0x44] sm:$0xf]
      %v193 = vld [vmem:[%s166 + $0x48] sm:$0xf]
      %v194 = vld [vmem:[%s166 + $0x4c] sm:$0xf]
      %v195 = vld [vmem:[%s166 + $0x50] sm:$0xf]
      %v196 = vld [vmem:[%s166 + $0x54] sm:$0xf]
      %v197 = vld [vmem:[%s166 + $0x58] sm:$0xf]
      %v198 = vld [vmem:[%s166 + $0x5c] sm:$0xf]
      %v199 = vld [vmem:[%s166 + $0x60] sm:$0xf]
      %v200 = vld [vmem:[%s166 + $0x64] sm:$0xf]
      %v201 = vld [vmem:[%s166 + $0x68] sm:$0xf]
      %v202 = vld [vmem:[%s166 + $0x6c] sm:$0xf]
      %v203 = vld [vmem:[%s166 + $0x70] sm:$0xf]
      %v204 = vld [vmem:[%s166 + $0x74] sm:$0xf]
      %v205 = vld [vmem:[%s166 + $0x78] sm:$0xf]
      %v206 = vld [vmem:[%s166 + $0x7c] sm:$0xf]
      %v207 = vld [vmem:[%s166 + $0x80] sm:$0xf]
      %v208 = vld [vmem:[%s166 + $0x84] sm:$0xf]
      %v209 = vld [vmem:[%s166 + $0x88] sm:$0xf]
      %v210 = vld [vmem:[%s166 + $0x8c] sm:$0xf]
      %v211 = vld [vmem:[%s166 + $0x90] sm:$0xf]
      %v212 = vld [vmem:[%s166 + $0x94] sm:$0xf]
      %v213 = vld [vmem:[%s166 + $0x98] sm:$0xf]
      %v214 = vld [vmem:[%s166 + $0x9c] sm:$0xf]
      %v215 = vld [vmem:[%s166 + $0xa0] sm:$0xf]
      %v216 = vld [vmem:[%s166 + $0xa4] sm:$0xf]
      %v217 = vld [vmem:[%s166 + $0xa8] sm:$0xf]
      %v218 = vld [vmem:[%s166 + $0xac] sm:$0xf]
      %v219 = vld [vmem:[%s166 + $0xb0] sm:$0xf]
      %v220 = vld [vmem:[%s166 + $0xb4] sm:$0xf]
      %v221 = vld [vmem:[%s166 + $0xb8] sm:$0xf]
      %v222 = vld [vmem:[%s166 + $0xbc] sm:$0xf]
      %v223 = vld [vmem:[%s166 + $0xc0] sm:$0xf]
      %v224 = vld [vmem:[%s166 + $0xc4] sm:$0xf]
      %v225 = vld [vmem:[%s166 + $0xc8] sm:$0xf]
      %v226 = vld [vmem:[%s166 + $0xcc] sm:$0xf]
      %v227 = vld [vmem:[%s166 + $0xd0] sm:$0xf]
      %v228 = vld [vmem:[%s166 + $0xd4] sm:$0xf]
      %v229 = vld [vmem:[%s166 + $0xd8] sm:$0xf]
      %v230 = vld [vmem:[%s166 + $0xdc] sm:$0xf]
      %v231 = vld [vmem:[%s166 + $0xe0] sm:$0xf]
      %v232 = vld [vmem:[%s166 + $0xe4] sm:$0xf]
      %v233 = vld [vmem:[%s166 + $0xe8] sm:$0xf]
      %v234 = vld [vmem:[%s166 + $0xec] sm:$0xf]
      %v235 = vld [vmem:[%s166 + $0xf0] sm:$0xf]
      %v236 = vld [vmem:[%s166 + $0xf4] sm:$0xf]
      %v237 = vld [vmem:[%s166 + $0xf8] sm:$0xf]
      %v238 = vld [vmem:[%s166 + $0xfc] sm:$0xf]
      %v239 = vld [vmem:[%s166 + $0x100] sm:$0xf]
      %v240 = vld [vmem:[%s166 + $0x104] sm:$0xf]
      %v241 = vld [vmem:[%s166 + $0x108] sm:$0xf]
      %v242 = vld [vmem:[%s166 + $0x10c] sm:$0xf]
      %v243 = vld [vmem:[%s166 + $0x110] sm:$0xf]
      %v244 = vld [vmem:[%s166 + $0x114] sm:$0xf]
      %v245 = vld [vmem:[%s166 + $0x118] sm:$0xf]
      %v246 = vld [vmem:[%s166 + $0x11c] sm:$0xf]
      %v247 = vld [vmem:[%s166 + $0x120] sm:$0xf]
      %v248 = vld [vmem:[%s166 + $0x124] sm:$0xf]
      %v249 = vld [vmem:[%s166 + $0x128] sm:$0xf]
      %v250 = vld [vmem:[%s166 + $0x12c] sm:$0xf]
      %v251 = vld [vmem:[%s166 + $0x130] sm:$0xf]
      %v252 = vld [vmem:[%s166 + $0x134] sm:$0xf]
      %v253 = vld [vmem:[%s166 + $0x138] sm:$0xf]
      %v254 = vld [vmem:[%s166 + $0x13c] sm:$0xf]
      %v255 = vld [vmem:[%s166 + $0x140] sm:$0xf]
      %v256 = vld [vmem:[%s166 + $0x144] sm:$0xf]
      %v257 = vld [vmem:[%s166 + $0x148] sm:$0xf]
      %v258 = vld [vmem:[%s166 + $0x14c] sm:$0xf]
      %v259 = vld [vmem:[%s166 + $0x150] sm:$0xf]
      %v260 = vld [vmem:[%s166 + $0x154] sm:$0xf]
      %v261 = vld [vmem:[%s166 + $0x158] sm:$0xf]
      %v262 = vld [vmem:[%s166 + $0x15c] sm:$0xf]
      %v263 = vld [vmem:[%s166 + $0x160] sm:$0xf]
      %v264 = vld [vmem:[%s166 + $0x164] sm:$0xf]
      %v265 = vld [vmem:[%s166 + $0x168] sm:$0xf]
      %v266 = vld [vmem:[%s166 + $0x16c] sm:$0xf]
      %v267 = vld [vmem:[%s166 + $0x170] sm:$0xf]
      %v268 = vld [vmem:[%s166 + $0x174] sm:$0xf]
      %v269 = vld [vmem:[%s166 + $0x178] sm:$0xf]
      %v270 = vld [vmem:[%s166 + $0x17c] sm:$0xf]
      %v271 = vld [vmem:[%s166 + $0x180] sm:$0xf]
      %v272 = vld [vmem:[%s166 + $0x184] sm:$0xf]
      %v273 = vld [vmem:[%s166 + $0x188] sm:$0xf]
      %v274 = vld [vmem:[%s166 + $0x18c] sm:$0xf]
      %v275 = vld [vmem:[%s166 + $0x190] sm:$0xf]
      %v276 = vld [vmem:[%s166 + $0x194] sm:$0xf]
      %v277 = vld [vmem:[%s166 + $0x198] sm:$0xf]
      %v278 = vld [vmem:[%s166 + $0x19c] sm:$0xf]
      %v279 = vld [vmem:[%s166 + $0x1a0] sm:$0xf]
      %v280 = vld [vmem:[%s166 + $0x1a4] sm:$0xf]
      %v281 = vld [vmem:[%s166 + $0x1a8] sm:$0xf]
      %v282 = vld [vmem:[%s166 + $0x1ac] sm:$0xf]
      %v283 = vld [vmem:[%s166 + $0x1b0] sm:$0xf]
      %v284 = vld [vmem:[%s166 + $0x1b4] sm:$0xf]
      %v285 = vld [vmem:[%s166 + $0x1b8] sm:$0xf]
      %v286 = vld [vmem:[%s166 + $0x1bc] sm:$0xf]
      %v287 = vld [vmem:[%s166 + $0x1c0] sm:$0xf]
      %v288 = vld [vmem:[%s166 + $0x1c4] sm:$0xf]
      %v289 = vld [vmem:[%s166 + $0x1c8] sm:$0xf]
      %v290 = vld [vmem:[%s166 + $0x1cc] sm:$0xf]
      %v291 = vld [vmem:[%s166 + $0x1d0] sm:$0xf]
      %v292 = vld [vmem:[%s166 + $0x1d4] sm:$0xf]
      %v293 = vld [vmem:[%s166 + $0x1d8] sm:$0xf]
      %v294 = vld [vmem:[%s166 + $0x1dc] sm:$0xf]
      %v295 = vld [vmem:[%s166 + $0x1e0] sm:$0xf]
      %v296 = vld [vmem:[%s166 + $0x1e4] sm:$0xf]
      %v297 = vld [vmem:[%s166 + $0x1e8] sm:$0xf]
      %v298 = vld [vmem:[%s166 + $0x1ec] sm:$0xf]
      %v299 = vld [vmem:[%s166 + $0x1f0] sm:$0xf]
      %v300 = vld [vmem:[%s166 + $0x1f4] sm:$0xf]
      %v301 = vld [vmem:[%s166 + $0x1f8] sm:$0xf]
      %v302 = vld [vmem:[%s166 + $0x1fc] sm:$0xf]
      %v303 = vld [vmem:[%s1] sm:$0xf]
      %v304 = vld [vmem:[%s1 + $0x4] sm:$0xf]
      %v305 = vld [vmem:[%s1 + $0x8] sm:$0xf]
      %v306 = vld [vmem:[%s1 + $0xc] sm:$0xf]
      %v307 = vld [vmem:[%s1 + $0x10] sm:$0xf]
      %v308 = vld [vmem:[%s1 + $0x14] sm:$0xf]
      %v309 = vld [vmem:[%s1 + $0x18] sm:$0xf]
      %v310 = vld [vmem:[%s1 + $0x1c] sm:$0xf]
      %v311 = vld [vmem:[%s1 + $0x20] sm:$0xf]
      %v312 = vld [vmem:[%s1 + $0x24] sm:$0xf]
      %v313 = vld [vmem:[%s1 + $0x28] sm:$0xf]
      %v314 = vld [vmem:[%s1 + $0x2c] sm:$0xf]
      %v315 = vld [vmem:[%s1 + $0x30] sm:$0xf]
      %v316 = vld [vmem:[%s1 + $0x34] sm:$0xf]
      %v317 = vld [vmem:[%s1 + $0x38] sm:$0xf]
      %v318 = vld [vmem:[%s1 + $0x3c] sm:$0xf]
      %v319 = vld [vmem:[%s2] sm:$0x1]
      %v321 = vlaneseq
      %v322 = vshrl.u32 %v321, 7
      %v323 = vsub.s32 0, %v322
      %v324 = vrot.slane %v319, %v323
      %v454 = vunpack.c.l.b16 %v175
      %v455 = vunpack.c.l.b16 %v176
      %v456 = vunpack.c.l.b16 %v177
      %v457 = vunpack.c.l.b16 %v178
      %v458 = vunpack.c.l.b16 %v179
      %v459 = vunpack.c.l.b16 %v180
      %v460 = vunpack.c.l.b16 %v181
      %v461 = vunpack.c.l.b16 %v182
      %v462 = vunpack.c.l.b16 %v183
      %v463 = vunpack.c.l.b16 %v184
      %v464 = vunpack.c.l.b16 %v185
      %v465 = vunpack.c.l.b16 %v186
      %v466 = vunpack.c.l.b16 %v187
      %v467 = vunpack.c.l.b16 %v188
      %v468 = vunpack.c.l.b16 %v189
      %v469 = vunpack.c.l.b16 %v190
      %v470 = vunpack.c.l.b16 %v191
      %v471 = vunpack.c.l.b16 %v192
      %v472 = vunpack.c.l.b16 %v193
      %v473 = vunpack.c.l.b16 %v194
      %v474 = vunpack.c.l.b16 %v195
      %v475 = vunpack.c.l.b16 %v196
      %v476 = vunpack.c.l.b16 %v197
      %v477 = vunpack.c.l.b16 %v198
      %v478 = vunpack.c.l.b16 %v199
      %v479 = vunpack.c.l.b16 %v200
      %v480 = vunpack.c.l.b16 %v201
      %v481 = vunpack.c.l.b16 %v202
      %v482 = vunpack.c.l.b16 %v203
      %v483 = vunpack.c.l.b16 %v204
      %v484 = vunpack.c.l.b16 %v205
      %v485 = vunpack.c.l.b16 %v206
      %v486 = vunpack.c.l.b16 %v207
      %v487 = vunpack.c.l.b16 %v208
      %v488 = vunpack.c.l.b16 %v209
      %v489 = vunpack.c.l.b16 %v210
      %v490 = vunpack.c.l.b16 %v211
      %v491 = vunpack.c.l.b16 %v212
      %v492 = vunpack.c.l.b16 %v213
      %v493 = vunpack.c.l.b16 %v214
      %v494 = vunpack.c.l.b16 %v215
      %v495 = vunpack.c.l.b16 %v216
      %v496 = vunpack.c.l.b16 %v217
      %v497 = vunpack.c.l.b16 %v218
      %v498 = vunpack.c.l.b16 %v219
      %v499 = vunpack.c.l.b16 %v220
      %v500 = vunpack.c.l.b16 %v221
      %v501 = vunpack.c.l.b16 %v222
      %v502 = vunpack.c.l.b16 %v223
      %v503 = vunpack.c.l.b16 %v224
      %v504 = vunpack.c.l.b16 %v225
      %v505 = vunpack.c.l.b16 %v226
      %v506 = vunpack.c.l.b16 %v227
      %v507 = vunpack.c.l.b16 %v228
      %v508 = vunpack.c.l.b16 %v229
      %v509 = vunpack.c.l.b16 %v230
      %v510 = vunpack.c.l.b16 %v231
      %v511 = vunpack.c.l.b16 %v232
      %v512 = vunpack.c.l.b16 %v233
      %v513 = vunpack.c.l.b16 %v234
      %v514 = vunpack.c.l.b16 %v235
      %v515 = vunpack.c.l.b16 %v236
      %v516 = vunpack.c.l.b16 %v237
      %v517 = vunpack.c.l.b16 %v238
      %v518 = vunpack.c.l.b16 %v239
      %v519 = vunpack.c.l.b16 %v240
      %v520 = vunpack.c.l.b16 %v241
      %v521 = vunpack.c.l.b16 %v242
      %v522 = vunpack.c.l.b16 %v243
      %v523 = vunpack.c.l.b16 %v244
      %v524 = vunpack.c.l.b16 %v245
      %v525 = vunpack.c.l.b16 %v246
      %v526 = vunpack.c.l.b16 %v247
      %v527 = vunpack.c.l.b16 %v248
      %v528 = vunpack.c.l.b16 %v249
      %v529 = vunpack.c.l.b16 %v250
      %v530 = vunpack.c.l.b16 %v251
      %v531 = vunpack.c.l.b16 %v252
      %v532 = vunpack.c.l.b16 %v253
      %v533 = vunpack.c.l.b16 %v254
      %v534 = vunpack.c.l.b16 %v255
      %v535 = vunpack.c.l.b16 %v256
      %v536 = vunpack.c.l.b16 %v257
      %v537 = vunpack.c.l.b16 %v258
      %v538 = vunpack.c.l.b16 %v259
      %v539 = vunpack.c.l.b16 %v260
      %v540 = vunpack.c.l.b16 %v261
      %v541 = vunpack.c.l.b16 %v262
      %v542 = vunpack.c.l.b16 %v263
      %v543 = vunpack.c.l.b16 %v264
      %v544 = vunpack.c.l.b16 %v265
      %v545 = vunpack.c.l.b16 %v266
      %v546 = vunpack.c.l.b16 %v267
      %v547 = vunpack.c.l.b16 %v268
      %v548 = vunpack.c.l.b16 %v269
      %v549 = vunpack.c.l.b16 %v270
      %v550 = vunpack.c.l.b16 %v271
      %v551 = vunpack.c.l.b16 %v272
      %v552 = vunpack.c.l.b16 %v273
      %v553 = vunpack.c.l.b16 %v274
      %v554 = vunpack.c.l.b16 %v275
      %v555 = vunpack.c.l.b16 %v276
      %v556 = vunpack.c.l.b16 %v277
      %v557 = vunpack.c.l.b16 %v278
      %v558 = vunpack.c.l.b16 %v279
      %v559 = vunpack.c.l.b16 %v280
      %v560 = vunpack.c.l.b16 %v281
      %v561 = vunpack.c.l.b16 %v282
      %v562 = vunpack.c.l.b16 %v283
      %v563 = vunpack.c.l.b16 %v284
      %v564 = vunpack.c.l.b16 %v285
      %v565 = vunpack.c.l.b16 %v286
      %v566 = vunpack.c.l.b16 %v287
      %v567 = vunpack.c.l.b16 %v288
      %v568 = vunpack.c.l.b16 %v289
      %v569 = vunpack.c.l.b16 %v290
      %v570 = vunpack.c.l.b16 %v291
      %v571 = vunpack.c.l.b16 %v292
      %v572 = vunpack.c.l.b16 %v293
      %v573 = vunpack.c.l.b16 %v294
      %v574 = vunpack.c.l.b16 %v295
      %v575 = vunpack.c.l.b16 %v296
      %v576 = vunpack.c.l.b16 %v297
      %v577 = vunpack.c.l.b16 %v298
      %v578 = vunpack.c.l.b16 %v299
      %v579 = vunpack.c.l.b16 %v300
      %v580 = vunpack.c.l.b16 %v301
      %v581 = vunpack.c.l.b16 %v302
      %v582 = vpack.c.b16 %v455, %v454
      %v583 = vpack.c.b16 %v457, %v456
      %v584 = vpack.c.b16 %v459, %v458
      %v585 = vpack.c.b16 %v461, %v460
      %v586 = vpack.c.b16 %v463, %v462
      %v587 = vpack.c.b16 %v465, %v464
      %v588 = vpack.c.b16 %v467, %v466
      %v589 = vpack.c.b16 %v469, %v468
      %v590 = vpack.c.b16 %v471, %v470
      %v591 = vpack.c.b16 %v473, %v472
      %v592 = vpack.c.b16 %v475, %v474
      %v593 = vpack.c.b16 %v477, %v476
      %v594 = vpack.c.b16 %v479, %v478
      %v595 = vpack.c.b16 %v481, %v480
      %v596 = vpack.c.b16 %v483, %v482
      %v597 = vpack.c.b16 %v485, %v484
      %v598 = vpack.c.b16 %v487, %v486
      %v599 = vpack.c.b16 %v489, %v488
      %v600 = vpack.c.b16 %v491, %v490
      %v601 = vpack.c.b16 %v493, %v492
      %v602 = vpack.c.b16 %v495, %v494
      %v603 = vpack.c.b16 %v497, %v496
      %v604 = vpack.c.b16 %v499, %v498
      %v605 = vpack.c.b16 %v501, %v500
      %v606 = vpack.c.b16 %v503, %v502
      %v607 = vpack.c.b16 %v505, %v504
      %v608 = vpack.c.b16 %v507, %v506
      %v609 = vpack.c.b16 %v509, %v508
      %v610 = vpack.c.b16 %v511, %v510
      %v611 = vpack.c.b16 %v513, %v512
      %v612 = vpack.c.b16 %v515, %v514
      %v613 = vpack.c.b16 %v517, %v516
      %v614 = vpack.c.b16 %v519, %v518
      %v615 = vpack.c.b16 %v521, %v520
      %v616 = vpack.c.b16 %v523, %v522
      %v617 = vpack.c.b16 %v525, %v524
      %v618 = vpack.c.b16 %v527, %v526
      %v619 = vpack.c.b16 %v529, %v528
      %v620 = vpack.c.b16 %v531, %v530
      %v621 = vpack.c.b16 %v533, %v532
      %v622 = vpack.c.b16 %v535, %v534
      %v623 = vpack.c.b16 %v537, %v536
      %v624 = vpack.c.b16 %v539, %v538
      %v625 = vpack.c.b16 %v541, %v540
      %v626 = vpack.c.b16 %v543, %v542
      %v627 = vpack.c.b16 %v545, %v544
      %v628 = vpack.c.b16 %v547, %v546
      %v629 = vpack.c.b16 %v549, %v548
      %v630 = vpack.c.b16 %v551, %v550
      %v631 = vpack.c.b16 %v553, %v552
      %v632 = vpack.c.b16 %v555, %v554
      %v633 = vpack.c.b16 %v557, %v556
      %v634 = vpack.c.b16 %v559, %v558
      %v635 = vpack.c.b16 %v561, %v560
      %v636 = vpack.c.b16 %v563, %v562
      %v637 = vpack.c.b16 %v565, %v564
      %v638 = vpack.c.b16 %v567, %v566
      %v639 = vpack.c.b16 %v569, %v568
      %v640 = vpack.c.b16 %v571, %v570
      %v641 = vpack.c.b16 %v573, %v572
      %v642 = vpack.c.b16 %v575, %v574
      %v643 = vpack.c.b16 %v577, %v576
      %v644 = vpack.c.b16 %v579, %v578
      %v645 = vpack.c.b16 %v581, %v580
      %v726 = vunpack.c.l.b16 %v303
      %v727 = vunpack.c.l.b16 %v304
      %v728 = vunpack.c.l.b16 %v305
      %v729 = vunpack.c.l.b16 %v306
      %v730 = vunpack.c.l.b16 %v307
      %v731 = vunpack.c.l.b16 %v308
      %v732 = vunpack.c.l.b16 %v309
      %v733 = vunpack.c.l.b16 %v310
      %v734 = vunpack.c.l.b16 %v311
      %v735 = vunpack.c.l.b16 %v312
      %v736 = vunpack.c.l.b16 %v313
      %v737 = vunpack.c.l.b16 %v314
      %v738 = vunpack.c.l.b16 %v315
      %v739 = vunpack.c.l.b16 %v316
      %v740 = vunpack.c.l.b16 %v317
      %v741 = vunpack.c.l.b16 %v318
      %v742 = vpack.c.b16 %v727, %v726
      %v743 = vpack.c.b16 %v729, %v728
      %v744 = vpack.c.b16 %v731, %v730
      %v745 = vpack.c.b16 %v733, %v732
      %v746 = vpack.c.b16 %v735, %v734
      %v747 = vpack.c.b16 %v737, %v736
      %v748 = vpack.c.b16 %v739, %v738
      %v749 = vpack.c.b16 %v741, %v740
      %758 = vmatprep.subr.bf16.mxu0 0
      %759 = vmatpush1.bf16.msra.mxu0 %v742
      %760 = vmatprep.subr.bf16.mxu0 0
      %761 = vmatpush1.bf16.msra.mxu0 %v743
      %762 = vmatprep.subr.bf16.mxu0 0
      %763 = vmatpush1.bf16.msra.mxu0 %v744
      %764 = vmatprep.subr.bf16.mxu0 0
      %765 = vmatpush1.bf16.msra.mxu0 %v745
      %766 = vmatprep.subr.bf16.mxu0 0
      %767 = vmatpush1.bf16.msra.mxu0 %v746
      %768 = vmatprep.subr.bf16.mxu0 0
      %769 = vmatpush1.bf16.msra.mxu0 %v747
      %770 = vmatprep.subr.bf16.mxu0 0
      %771 = vmatpush1.bf16.msra.mxu0 %v748
      %772 = vmatprep.subr.bf16.mxu0 0
      %773 = vmatpush1.bf16.msra.mxu0 %v749
      %774 = vmatprep.subr.bf16.mxu0 0
      %775 = vmatpush1.bf16.msra.mxu0 0
      %776 = vmatprep.subr.bf16.mxu0 0
      %777 = vmatpush1.bf16.msra.mxu0 0
      %778 = vmatprep.subr.bf16.mxu0 0
      %779 = vmatpush1.bf16.msra.mxu0 0
      %780 = vmatprep.subr.bf16.mxu0 0
      %781 = vmatpush1.bf16.msra.mxu0 0
      %782 = vmatprep.subr.bf16.mxu0 0
      %783 = vmatpush1.bf16.msra.mxu0 0
      %784 = vmatprep.subr.bf16.mxu0 0
      %785 = vmatpush1.bf16.msra.mxu0 0
      %786 = vmatprep.subr.bf16.mxu0 0
      %787 = vmatpush1.bf16.msra.mxu0 0
      %788 = vmatprep.subr.bf16.mxu0 0
      %789 = vmatpush1.bf16.msra.mxu0 0
      %790 = vmatprep.mubr.bf16.mxu0 0
      %791 = vmatmul.mubr.bf16.gmra.mrb[0].mxu0 %v582
      %v792 = vpop.f32.mrb[0].mxu0
      %v793 = vadd.f32 %v324, %v792
      %v794 = vpop.f32.mrb[0].mxu0
      %v795 = vpop.f32.mrb[0].mxu0
      %v796 = vadd.f32 %v324, %v795
      %v797 = vpop.f32.mrb[0].mxu0
      %798 = vmatprep.mubr.bf16.mxu0 0
      %799 = vmatmul.mubr.bf16.gmra.mrb[0].mxu0 %v583
      %v800 = vpop.f32.mrb[0].mxu0
      %v801 = vadd.f32 %v324, %v800
      %v802 = vpop.f32.mrb[0].mxu0
      %v803 = vpop.f32.mrb[0].mxu0
      %v804 = vadd.f32 %v324, %v803
      %v805 = vpop.f32.mrb[0].mxu0
      %806 = vmatprep.mubr.bf16.mxu0 0
      %807 = vmatmul.mubr.bf16.gmra.mrb[0].mxu0 %v584
      %v808 = vpop.f32.mrb[0].mxu0
      %v809 = vadd.f32 %v324, %v808
      %v810 = vpop.f32.mrb[0].mxu0
      %v811 = vpop.f32.mrb[0].mxu0
      %v812 = vadd.f32 %v324, %v811
      %v813 = vpop.f32.mrb[0].mxu0
      %814 = vmatprep.mubr.bf16.mxu0 0
      %815 = vmatmul.mubr.bf16.gmra.mrb[0].mxu0 %v585
      %v816 = vpop.f32.mrb[0].mxu0
      %v817 = vadd.f32 %v324, %v816
      %v818 = vpop.f32.mrb[0].mxu0
      %v819 = vpop.f32.mrb[0].mxu0
      %v820 = vadd.f32 %v324, %v819
      %v821 = vpop.f32.mrb[0].mxu0
      %822 = vmatprep.mubr.bf16.mxu0 0
      %823 = vmatmul.mubr.bf16.gmra.mrb[0].mxu0 %v586
      %v824 = vpop.f32.mrb[0].mxu0
      %v825 = vadd.f32 %v324, %v824
      %v826 = vpop.f32.mrb[0].mxu0
      %v827 = vpop.f32.mrb[0].mxu0
      %v828 = vadd.f32 %v324, %v827
      %v829 = vpop.f32.mrb[0].mxu0
      %830 = vmatprep.mubr.bf16.mxu0 0
      %831 = vmatmul.mubr.bf16.gmra.mrb[0].mxu0 %v587
      %v832 = vpop.f32.mrb[0].mxu0
      %v833 = vadd.f32 %v324, %v832
      %v834 = vpop.f32.mrb[0].mxu0
      %v835 = vpop.f32.mrb[0].mxu0
      %v836 = vadd.f32 %v324, %v835
      %v837 = vpop.f32.mrb[0].mxu0
      %838 = vmatprep.mubr.bf16.mxu0 0
      %839 = vmatmul.mubr.bf16.gmra.mrb[0].mxu0 %v588
      %v840 = vpop.f32.mrb[0].mxu0
      %v841 = vadd.f32 %v324, %v840
      %v842 = vpop.f32.mrb[0].mxu0
      %v843 = vpop.f32.mrb[0].mxu0
      %v844 = vadd.f32 %v324, %v843
      %v845 = vpop.f32.mrb[0].mxu0
      %846 = vmatprep.mubr.bf16.mxu0 0
      %847 = vmatmul.mubr.bf16.gmra.mrb[0].mxu0 %v589
      %v848 = vpop.f32.mrb[0].mxu0
      %v849 = vadd.f32 %v324, %v848
      %v850 = vpop.f32.mrb[0].mxu0
      %v851 = vpop.f32.mrb[0].mxu0
      %v852 = vadd.f32 %v324, %v851
      %v853 = vpop.f32.mrb[0].mxu0
      %854 = vmatprep.mubr.bf16.mxu0 0
      %855 = vmatmul.mubr.bf16.gmra.mrb[0].mxu0 %v590
      %v856 = vpop.f32.mrb[0].mxu0
      %v857 = vadd.f32 %v324, %v856
      %v858 = vpop.f32.mrb[0].mxu0
      %v859 = vpop.f32.mrb[0].mxu0
      %v860 = vadd.f32 %v324, %v859
      %v861 = vpop.f32.mrb[0].mxu0
      %862 = vmatprep.mubr.bf16.mxu0 0
      %863 = vmatmul.mubr.bf16.gmra.mrb[0].mxu0 %v591
      %v864 = vpop.f32.mrb[0].mxu0
      %v865 = vadd.f32 %v324, %v864
      %v866 = vpop.f32.mrb[0].mxu0
      %v867 = vpop.f32.mrb[0].mxu0
      %v868 = vadd.f32 %v324, %v867
      %v869 = vpop.f32.mrb[0].mxu0
      %870 = vmatprep.mubr.bf16.mxu0 0
      %871 = vmatmul.mubr.bf16.gmra.mrb[0].mxu0 %v592
      %v872 = vpop.f32.mrb[0].mxu0
      %v873 = vadd.f32 %v324, %v872
      %v874 = vpop.f32.mrb[0].mxu0
      %v875 = vpop.f32.mrb[0].mxu0
      %v876 = vadd.f32 %v324, %v875
      %v877 = vpop.f32.mrb[0].mxu0
      %878 = vmatprep.mubr.bf16.mxu0 0
      %879 = vmatmul.mubr.bf16.gmra.mrb[0].mxu0 %v593
      %v880 = vpop.f32.mrb[0].mxu0
      %v881 = vadd.f32 %v324, %v880
      %v882 = vpop.f32.mrb[0].mxu0
      %v883 = vpop.f32.mrb[0].mxu0
      %v884 = vadd.f32 %v324, %v883
      %v885 = vpop.f32.mrb[0].mxu0
      %886 = vmatprep.mubr.bf16.mxu0 0
      %887 = vmatmul.mubr.bf16.gmra.mrb[0].mxu0 %v594
      %v888 = vpop.f32.mrb[0].mxu0
      %v889 = vadd.f32 %v324, %v888
      %v890 = vpop.f32.mrb[0].mxu0
      %v891 = vpop.f32.mrb[0].mxu0
      %v892 = vadd.f32 %v324, %v891
      %v893 = vpop.f32.mrb[0].mxu0
      %894 = vmatprep.mubr.bf16.mxu0 0
      %895 = vmatmul.mubr.bf16.gmra.mrb[0].mxu0 %v595
      %v896 = vpop.f32.mrb[0].mxu0
      %v897 = vadd.f32 %v324, %v896
      %v898 = vpop.f32.mrb[0].mxu0
      %v899 = vpop.f32.mrb[0].mxu0
      %v900 = vadd.f32 %v324, %v899
      %v901 = vpop.f32.mrb[0].mxu0
      %902 = vmatprep.mubr.bf16.mxu0 0
      %903 = vmatmul.mubr.bf16.gmra.mrb[0].mxu0 %v596
      %v904 = vpop.f32.mrb[0].mxu0
      %v905 = vadd.f32 %v324, %v904
      %v906 = vpop.f32.mrb[0].mxu0
      %v907 = vpop.f32.mrb[0].mxu0
      %v908 = vadd.f32 %v324, %v907
      %v909 = vpop.f32.mrb[0].mxu0
      %910 = vmatprep.mubr.bf16.mxu0 0
      %911 = vmatmul.mubr.bf16.gmra.mrb[0].mxu0 %v597
      %v912 = vpop.f32.mrb[0].mxu0
      %v913 = vadd.f32 %v324, %v912
      %v914 = vpop.f32.mrb[0].mxu0
      %v915 = vpop.f32.mrb[0].mxu0
      %v916 = vadd.f32 %v324, %v915
      %v917 = vpop.f32.mrb[0].mxu0
      %918 = vmatprep.mubr.bf16.mxu0 0
      %919 = vmatmul.mubr.bf16.gmra.mrb[0].mxu0 %v598
      %v920 = vpop.f32.mrb[0].mxu0
      %v921 = vadd.f32 %v324, %v920
      %v922 = vpop.f32.mrb[0].mxu0
      %v923 = vpop.f32.mrb[0].mxu0
      %v924 = vadd.f32 %v324, %v923
      %v925 = vpop.f32.mrb[0].mxu0
      %926 = vmatprep.mubr.bf16.mxu0 0
      %927 = vmatmul.mubr.bf16.gmra.mrb[0].mxu0 %v599
      %v928 = vpop.f32.mrb[0].mxu0
      %v929 = vadd.f32 %v324, %v928
      %v930 = vpop.f32.mrb[0].mxu0
      %v931 = vpop.f32.mrb[0].mxu0
      %v932 = vadd.f32 %v324, %v931
      %v933 = vpop.f32.mrb[0].mxu0
      %934 = vmatprep.mubr.bf16.mxu0 0
      %935 = vmatmul.mubr.bf16.gmra.mrb[0].mxu0 %v600
      %v936 = vpop.f32.mrb[0].mxu0
      %v937 = vadd.f32 %v324, %v936
      %v938 = vpop.f32.mrb[0].mxu0
      %v939 = vpop.f32.mrb[0].mxu0
      %v940 = vadd.f32 %v324, %v939
      %v941 = vpop.f32.mrb[0].mxu0
      %942 = vmatprep.mubr.bf16.mxu0 0
      %943 = vmatmul.mubr.bf16.gmra.mrb[0].mxu0 %v601
      %v944 = vpop.f32.mrb[0].mxu0
      %v945 = vadd.f32 %v324, %v944
      %v946 = vpop.f32.mrb[0].mxu0
      %v947 = vpop.f32.mrb[0].mxu0
      %v948 = vadd.f32 %v324, %v947
      %v949 = vpop.f32.mrb[0].mxu0
      %950 = vmatprep.mubr.bf16.mxu0 0
      %951 = vmatmul.mubr.bf16.gmra.mrb[0].mxu0 %v602
      %v952 = vpop.f32.mrb[0].mxu0
      %v953 = vadd.f32 %v324, %v952
      %v954 = vpop.f32.mrb[0].mxu0
      %v955 = vpop.f32.mrb[0].mxu0
      %v956 = vadd.f32 %v324, %v955
      %v957 = vpop.f32.mrb[0].mxu0
      %958 = vmatprep.mubr.bf16.mxu0 0
      %959 = vmatmul.mubr.bf16.gmra.mrb[0].mxu0 %v603
      %v960 = vpop.f32.mrb[0].mxu0
      %v961 = vadd.f32 %v324, %v960
      %v962 = vpop.f32.mrb[0].mxu0
      %v963 = vpop.f32.mrb[0].mxu0
      %v964 = vadd.f32 %v324, %v963
      %v965 = vpop.f32.mrb[0].mxu0
      %966 = vmatprep.mubr.bf16.mxu0 0
      %967 = vmatmul.mubr.bf16.gmra.mrb[0].mxu0 %v604
      %v968 = vpop.f32.mrb[0].mxu0
      %v969 = vadd.f32 %v324, %v968
      %v970 = vpop.f32.mrb[0].mxu0
      %v971 = vpop.f32.mrb[0].mxu0
      %v972 = vadd.f32 %v324, %v971
      %v973 = vpop.f32.mrb[0].mxu0
      %974 = vmatprep.mubr.bf16.mxu0 0
      %975 = vmatmul.mubr.bf16.gmra.mrb[0].mxu0 %v605
      %v976 = vpop.f32.mrb[0].mxu0
      %v977 = vadd.f32 %v324, %v976
      %v978 = vpop.f32.mrb[0].mxu0
      %v979 = vpop.f32.mrb[0].mxu0
      %v980 = vadd.f32 %v324, %v979
      %v981 = vpop.f32.mrb[0].mxu0
      %982 = vmatprep.mubr.bf16.mxu0 0
      %983 = vmatmul.mubr.bf16.gmra.mrb[0].mxu0 %v606
      %v984 = vpop.f32.mrb[0].mxu0
      %v985 = vadd.f32 %v324, %v984
      %v986 = vpop.f32.mrb[0].mxu0
      %v987 = vpop.f32.mrb[0].mxu0
      %v988 = vadd.f32 %v324, %v987
      %v989 = vpop.f32.mrb[0].mxu0
      %990 = vmatprep.mubr.bf16.mxu0 0
      %991 = vmatmul.mubr.bf16.gmra.mrb[0].mxu0 %v607
      %v992 = vpop.f32.mrb[0].mxu0
      %v993 = vadd.f32 %v324, %v992
      %v994 = vpop.f32.mrb[0].mxu0
      %v995 = vpop.f32.mrb[0].mxu0
      %v996 = vadd.f32 %v324, %v995
      %v997 = vpop.f32.mrb[0].mxu0
      %998 = vmatprep.mubr.bf16.mxu0 0
      %999 = vmatmul.mubr.bf16.gmra.mrb[0].mxu0 %v608
      %v1000 = vpop.f32.mrb[0].mxu0
      %v1001 = vadd.f32 %v324, %v1000
      %v1002 = vpop.f32.mrb[0].mxu0
      %v1003 = vpop.f32.mrb[0].mxu0
      %v1004 = vadd.f32 %v324, %v1003
      %v1005 = vpop.f32.mrb[0].mxu0
      %1006 = vmatprep.mubr.bf16.mxu0 0
      %1007 = vmatmul.mubr.bf16.gmra.mrb[0].mxu0 %v609
      %v1008 = vpop.f32.mrb[0].mxu0
      %v1009 = vadd.f32 %v324, %v1008
      %v1010 = vpop.f32.mrb[0].mxu0
      %v1011 = vpop.f32.mrb[0].mxu0
      %v1012 = vadd.f32 %v324, %v1011
      %v1013 = vpop.f32.mrb[0].mxu0
      %1014 = vmatprep.mubr.bf16.mxu0 0
      %1015 = vmatmul.mubr.bf16.gmra.mrb[0].mxu0 %v610
      %v1016 = vpop.f32.mrb[0].mxu0
      %v1017 = vadd.f32 %v324, %v1016
      %v1018 = vpop.f32.mrb[0].mxu0
      %v1019 = vpop.f32.mrb[0].mxu0
      %v1020 = vadd.f32 %v324, %v1019
      %v1021 = vpop.f32.mrb[0].mxu0
      %1022 = vmatprep.mubr.bf16.mxu0 0
      %1023 = vmatmul.mubr.bf16.gmra.mrb[0].mxu0 %v611
      %v1024 = vpop.f32.mrb[0].mxu0
      %v1025 = vadd.f32 %v324, %v1024
      %v1026 = vpop.f32.mrb[0].mxu0
      %v1027 = vpop.f32.mrb[0].mxu0
      %v1028 = vadd.f32 %v324, %v1027
      %v1029 = vpop.f32.mrb[0].mxu0
      %1030 = vmatprep.mubr.bf16.mxu0 0
      %1031 = vmatmul.mubr.bf16.gmra.mrb[0].mxu0 %v612
      %v1032 = vpop.f32.mrb[0].mxu0
      %v1033 = vadd.f32 %v324, %v1032
      %v1034 = vpop.f32.mrb[0].mxu0
      %v1035 = vpop.f32.mrb[0].mxu0
      %v1036 = vadd.f32 %v324, %v1035
      %v1037 = vpop.f32.mrb[0].mxu0
      %1038 = vmatprep.mubr.bf16.mxu0 0
      %1039 = vmatmul.mubr.bf16.gmra.mrb[0].mxu0 %v613
      %v1040 = vpop.f32.mrb[0].mxu0
      %v1041 = vadd.f32 %v324, %v1040
      %v1042 = vpop.f32.mrb[0].mxu0
      %v1043 = vpop.f32.mrb[0].mxu0
      %v1044 = vadd.f32 %v324, %v1043
      %v1045 = vpop.f32.mrb[0].mxu0
      %1046 = vmatprep.mubr.bf16.mxu0 0
      %1047 = vmatmul.mubr.bf16.gmra.mrb[0].mxu0 %v614
      %v1048 = vpop.f32.mrb[0].mxu0
      %v1049 = vadd.f32 %v324, %v1048
      %v1050 = vpop.f32.mrb[0].mxu0
      %v1051 = vpop.f32.mrb[0].mxu0
      %v1052 = vadd.f32 %v324, %v1051
      %v1053 = vpop.f32.mrb[0].mxu0
      %1054 = vmatprep.mubr.bf16.mxu0 0
      %1055 = vmatmul.mubr.bf16.gmra.mrb[0].mxu0 %v615
      %v1056 = vpop.f32.mrb[0].mxu0
      %v1057 = vadd.f32 %v324, %v1056
      %v1058 = vpop.f32.mrb[0].mxu0
      %v1059 = vpop.f32.mrb[0].mxu0
      %v1060 = vadd.f32 %v324, %v1059
      %v1061 = vpop.f32.mrb[0].mxu0
      %1062 = vmatprep.mubr.bf16.mxu0 0
      %1063 = vmatmul.mubr.bf16.gmra.mrb[0].mxu0 %v616
      %v1064 = vpop.f32.mrb[0].mxu0
      %v1065 = vadd.f32 %v324, %v1064
      %v1066 = vpop.f32.mrb[0].mxu0
      %v1067 = vpop.f32.mrb[0].mxu0
      %v1068 = vadd.f32 %v324, %v1067
      %v1069 = vpop.f32.mrb[0].mxu0
      %1070 = vmatprep.mubr.bf16.mxu0 0
      %1071 = vmatmul.mubr.bf16.gmra.mrb[0].mxu0 %v617
      %v1072 = vpop.f32.mrb[0].mxu0
      %v1073 = vadd.f32 %v324, %v1072
      %v1074 = vpop.f32.mrb[0].mxu0
      %v1075 = vpop.f32.mrb[0].mxu0
      %v1076 = vadd.f32 %v324, %v1075
      %v1077 = vpop.f32.mrb[0].mxu0
      %1078 = vmatprep.mubr.bf16.mxu0 0
      %1079 = vmatmul.mubr.bf16.gmra.mrb[0].mxu0 %v618
      %v1080 = vpop.f32.mrb[0].mxu0
      %v1081 = vadd.f32 %v324, %v1080
      %v1082 = vpop.f32.mrb[0].mxu0
      %v1083 = vpop.f32.mrb[0].mxu0
      %v1084 = vadd.f32 %v324, %v1083
      %v1085 = vpop.f32.mrb[0].mxu0
      %1086 = vmatprep.mubr.bf16.mxu0 0
      %1087 = vmatmul.mubr.bf16.gmra.mrb[0].mxu0 %v619
      %v1088 = vpop.f32.mrb[0].mxu0
      %v1089 = vadd.f32 %v324, %v1088
      %v1090 = vpop.f32.mrb[0].mxu0
      %v1091 = vpop.f32.mrb[0].mxu0
      %v1092 = vadd.f32 %v324, %v1091
      %v1093 = vpop.f32.mrb[0].mxu0
      %1094 = vmatprep.mubr.bf16.mxu0 0
      %1095 = vmatmul.mubr.bf16.gmra.mrb[0].mxu0 %v620
      %v1096 = vpop.f32.mrb[0].mxu0
      %v1097 = vadd.f32 %v324, %v1096
      %v1098 = vpop.f32.mrb[0].mxu0
      %v1099 = vpop.f32.mrb[0].mxu0
      %v1100 = vadd.f32 %v324, %v1099
      %v1101 = vpop.f32.mrb[0].mxu0
      %1102 = vmatprep.mubr.bf16.mxu0 0
      %1103 = vmatmul.mubr.bf16.gmra.mrb[0].mxu0 %v621
      %v1104 = vpop.f32.mrb[0].mxu0
      %v1105 = vadd.f32 %v324, %v1104
      %v1106 = vpop.f32.mrb[0].mxu0
      %v1107 = vpop.f32.mrb[0].mxu0
      %v1108 = vadd.f32 %v324, %v1107
      %v1109 = vpop.f32.mrb[0].mxu0
      %1110 = vmatprep.mubr.bf16.mxu0 0
      %1111 = vmatmul.mubr.bf16.gmra.mrb[0].mxu0 %v622
      %v1112 = vpop.f32.mrb[0].mxu0
      %v1113 = vadd.f32 %v324, %v1112
      %v1114 = vpop.f32.mrb[0].mxu0
      %v1115 = vpop.f32.mrb[0].mxu0
      %v1116 = vadd.f32 %v324, %v1115
      %v1117 = vpop.f32.mrb[0].mxu0
      %1118 = vmatprep.mubr.bf16.mxu0 0
      %1119 = vmatmul.mubr.bf16.gmra.mrb[0].mxu0 %v623
      %v1120 = vpop.f32.mrb[0].mxu0
      %v1121 = vadd.f32 %v324, %v1120
      %v1122 = vpop.f32.mrb[0].mxu0
      %v1123 = vpop.f32.mrb[0].mxu0
      %v1124 = vadd.f32 %v324, %v1123
      %v1125 = vpop.f32.mrb[0].mxu0
      %1126 = vmatprep.mubr.bf16.mxu0 0
      %1127 = vmatmul.mubr.bf16.gmra.mrb[0].mxu0 %v624
      %v1128 = vpop.f32.mrb[0].mxu0
      %v1129 = vadd.f32 %v324, %v1128
      %v1130 = vpop.f32.mrb[0].mxu0
      %v1131 = vpop.f32.mrb[0].mxu0
      %v1132 = vadd.f32 %v324, %v1131
      %v1133 = vpop.f32.mrb[0].mxu0
      %1134 = vmatprep.mubr.bf16.mxu0 0
      %1135 = vmatmul.mubr.bf16.gmra.mrb[0].mxu0 %v625
      %v1136 = vpop.f32.mrb[0].mxu0
      %v1137 = vadd.f32 %v324, %v1136
      %v1138 = vpop.f32.mrb[0].mxu0
      %v1139 = vpop.f32.mrb[0].mxu0
      %v1140 = vadd.f32 %v324, %v1139
      %v1141 = vpop.f32.mrb[0].mxu0
      %1142 = vmatprep.mubr.bf16.mxu0 0
      %1143 = vmatmul.mubr.bf16.gmra.mrb[0].mxu0 %v626
      %v1144 = vpop.f32.mrb[0].mxu0
      %v1145 = vadd.f32 %v324, %v1144
      %v1146 = vpop.f32.mrb[0].mxu0
      %v1147 = vpop.f32.mrb[0].mxu0
      %v1148 = vadd.f32 %v324, %v1147
      %v1149 = vpop.f32.mrb[0].mxu0
      %1150 = vmatprep.mubr.bf16.mxu0 0
      %1151 = vmatmul.mubr.bf16.gmra.mrb[0].mxu0 %v627
      %v1152 = vpop.f32.mrb[0].mxu0
      %v1153 = vadd.f32 %v324, %v1152
      %v1154 = vpop.f32.mrb[0].mxu0
      %v1155 = vpop.f32.mrb[0].mxu0
      %v1156 = vadd.f32 %v324, %v1155
      %v1157 = vpop.f32.mrb[0].mxu0
      %1158 = vmatprep.mubr.bf16.mxu0 0
      %1159 = vmatmul.mubr.bf16.gmra.mrb[0].mxu0 %v628
      %v1160 = vpop.f32.mrb[0].mxu0
      %v1161 = vadd.f32 %v324, %v1160
      %v1162 = vpop.f32.mrb[0].mxu0
      %v1163 = vpop.f32.mrb[0].mxu0
      %v1164 = vadd.f32 %v324, %v1163
      %v1165 = vpop.f32.mrb[0].mxu0
      %1166 = vmatprep.mubr.bf16.mxu0 0
      %1167 = vmatmul.mubr.bf16.gmra.mrb[0].mxu0 %v629
      %v1168 = vpop.f32.mrb[0].mxu0
      %v1169 = vadd.f32 %v324, %v1168
      %v1170 = vpop.f32.mrb[0].mxu0
      %v1171 = vpop.f32.mrb[0].mxu0
      %v1172 = vadd.f32 %v324, %v1171
      %v1173 = vpop.f32.mrb[0].mxu0
      %1174 = vmatprep.mubr.bf16.mxu0 0
      %1175 = vmatmul.mubr.bf16.gmra.mrb[0].mxu0 %v630
      %v1176 = vpop.f32.mrb[0].mxu0
      %v1177 = vadd.f32 %v324, %v1176
      %v1178 = vpop.f32.mrb[0].mxu0
      %v1179 = vpop.f32.mrb[0].mxu0
      %v1180 = vadd.f32 %v324, %v1179
      %v1181 = vpop.f32.mrb[0].mxu0
      %1182 = vmatprep.mubr.bf16.mxu0 0
      %1183 = vmatmul.mubr.bf16.gmra.mrb[0].mxu0 %v631
      %v1184 = vpop.f32.mrb[0].mxu0
      %v1185 = vadd.f32 %v324, %v1184
      %v1186 = vpop.f32.mrb[0].mxu0
      %v1187 = vpop.f32.mrb[0].mxu0
      %v1188 = vadd.f32 %v324, %v1187
      %v1189 = vpop.f32.mrb[0].mxu0
      %1190 = vmatprep.mubr.bf16.mxu0 0
      %1191 = vmatmul.mubr.bf16.gmra.mrb[0].mxu0 %v632
      %v1192 = vpop.f32.mrb[0].mxu0
      %v1193 = vadd.f32 %v324, %v1192
      %v1194 = vpop.f32.mrb[0].mxu0
      %v1195 = vpop.f32.mrb[0].mxu0
      %v1196 = vadd.f32 %v324, %v1195
      %v1197 = vpop.f32.mrb[0].mxu0
      %1198 = vmatprep.mubr.bf16.mxu0 0
      %1199 = vmatmul.mubr.bf16.gmra.mrb[0].mxu0 %v633
      %v1200 = vpop.f32.mrb[0].mxu0
      %v1201 = vadd.f32 %v324, %v1200
      %v1202 = vpop.f32.mrb[0].mxu0
      %v1203 = vpop.f32.mrb[0].mxu0
      %v1204 = vadd.f32 %v324, %v1203
      %v1205 = vpop.f32.mrb[0].mxu0
      %1206 = vmatprep.mubr.bf16.mxu0 0
      %1207 = vmatmul.mubr.bf16.gmra.mrb[0].mxu0 %v634
      %v1208 = vpop.f32.mrb[0].mxu0
      %v1209 = vadd.f32 %v324, %v1208
      %v1210 = vpop.f32.mrb[0].mxu0
      %v1211 = vpop.f32.mrb[0].mxu0
      %v1212 = vadd.f32 %v324, %v1211
      %v1213 = vpop.f32.mrb[0].mxu0
      %1214 = vmatprep.mubr.bf16.mxu0 0
      %1215 = vmatmul.mubr.bf16.gmra.mrb[0].mxu0 %v635
      %v1216 = vpop.f32.mrb[0].mxu0
      %v1217 = vadd.f32 %v324, %v1216
      %v1218 = vpop.f32.mrb[0].mxu0
      %v1219 = vpop.f32.mrb[0].mxu0
      %v1220 = vadd.f32 %v324, %v1219
      %v1221 = vpop.f32.mrb[0].mxu0
      %1222 = vmatprep.mubr.bf16.mxu0 0
      %1223 = vmatmul.mubr.bf16.gmra.mrb[0].mxu0 %v636
      %v1224 = vpop.f32.mrb[0].mxu0
      %v1225 = vadd.f32 %v324, %v1224
      %v1226 = vpop.f32.mrb[0].mxu0
      %v1227 = vpop.f32.mrb[0].mxu0
      %v1228 = vadd.f32 %v324, %v1227
      %v1229 = vpop.f32.mrb[0].mxu0
      %1230 = vmatprep.mubr.bf16.mxu0 0
      %1231 = vmatmul.mubr.bf16.gmra.mrb[0].mxu0 %v637
      %v1232 = vpop.f32.mrb[0].mxu0
      %v1233 = vadd.f32 %v324, %v1232
      %v1234 = vpop.f32.mrb[0].mxu0
      %v1235 = vpop.f32.mrb[0].mxu0
      %v1236 = vadd.f32 %v324, %v1235
      %v1237 = vpop.f32.mrb[0].mxu0
      %1238 = vmatprep.mubr.bf16.mxu0 0
      %1239 = vmatmul.mubr.bf16.gmra.mrb[0].mxu0 %v638
      %v1240 = vpop.f32.mrb[0].mxu0
      %v1241 = vadd.f32 %v324, %v1240
      %v1242 = vpop.f32.mrb[0].mxu0
      %v1243 = vpop.f32.mrb[0].mxu0
      %v1244 = vadd.f32 %v324, %v1243
      %v1245 = vpop.f32.mrb[0].mxu0
      %1246 = vmatprep.mubr.bf16.mxu0 0
      %1247 = vmatmul.mubr.bf16.gmra.mrb[0].mxu0 %v639
      %v1248 = vpop.f32.mrb[0].mxu0
      %v1249 = vadd.f32 %v324, %v1248
      %v1250 = vpop.f32.mrb[0].mxu0
      %v1251 = vpop.f32.mrb[0].mxu0
      %v1252 = vadd.f32 %v324, %v1251
      %v1253 = vpop.f32.mrb[0].mxu0
      %1254 = vmatprep.mubr.bf16.mxu0 0
      %1255 = vmatmul.mubr.bf16.gmra.mrb[0].mxu0 %v640
      %v1256 = vpop.f32.mrb[0].mxu0
      %v1257 = vadd.f32 %v324, %v1256
      %v1258 = vpop.f32.mrb[0].mxu0
      %v1259 = vpop.f32.mrb[0].mxu0
      %v1260 = vadd.f32 %v324, %v1259
      %v1261 = vpop.f32.mrb[0].mxu0
      %1262 = vmatprep.mubr.bf16.mxu0 0
      %1263 = vmatmul.mubr.bf16.gmra.mrb[0].mxu0 %v641
      %v1264 = vpop.f32.mrb[0].mxu0
      %v1265 = vadd.f32 %v324, %v1264
      %v1266 = vpop.f32.mrb[0].mxu0
      %v1267 = vpop.f32.mrb[0].mxu0
      %v1268 = vadd.f32 %v324, %v1267
      %v1269 = vpop.f32.mrb[0].mxu0
      %1270 = vmatprep.mubr.bf16.mxu0 0
      %1271 = vmatmul.mubr.bf16.gmra.mrb[0].mxu0 %v642
      %v1272 = vpop.f32.mrb[0].mxu0
      %v1273 = vadd.f32 %v324, %v1272
      %v1274 = vpop.f32.mrb[0].mxu0
      %v1275 = vpop.f32.mrb[0].mxu0
      %v1276 = vadd.f32 %v324, %v1275
      %v1277 = vpop.f32.mrb[0].mxu0
      %1278 = vmatprep.mubr.bf16.mxu0 0
      %1279 = vmatmul.mubr.bf16.gmra.mrb[0].mxu0 %v643
      %v1280 = vpop.f32.mrb[0].mxu0
      %v1281 = vadd.f32 %v324, %v1280
      %v1282 = vpop.f32.mrb[0].mxu0
      %v1283 = vpop.f32.mrb[0].mxu0
      %v1284 = vadd.f32 %v324, %v1283
      %v1285 = vpop.f32.mrb[0].mxu0
      %1286 = vmatprep.mubr.bf16.mxu0 0
      %1287 = vmatmul.mubr.bf16.gmra.mrb[0].mxu0 %v644
      %v1288 = vpop.f32.mrb[0].mxu0
      %v1289 = vadd.f32 %v324, %v1288
      %v1290 = vpop.f32.mrb[0].mxu0
      %v1291 = vpop.f32.mrb[0].mxu0
      %v1292 = vadd.f32 %v324, %v1291
      %v1293 = vpop.f32.mrb[0].mxu0
      %1294 = vmatprep.mubr.bf16.mxu0 0
      %1295 = vmatmul.mubr.bf16.gmra.mrb[0].mxu0 %v645
      %v1296 = vpop.f32.mrb[0].mxu0
      %v1297 = vadd.f32 %v324, %v1296
      %v1298 = vpop.f32.mrb[0].mxu0
      %v1299 = vpop.f32.mrb[0].mxu0
      %v1300 = vadd.f32 %v324, %v1299
      %v1301 = vpop.f32.mrb[0].mxu0
      %1302 = vdwg.mxu0
      %vm1303 = vcmp.gt.f32.partialorder %v793, 0.0
      %vm1304 = vcmp.gt.f32.partialorder %v796, 0.0
      %vm1305 = vcmp.gt.f32.partialorder %v801, 0.0
      %vm1306 = vcmp.gt.f32.partialorder %v804, 0.0
      %vm1307 = vcmp.gt.f32.partialorder %v809, 0.0
      %vm1308 = vcmp.gt.f32.partialorder %v812, 0.0
      %vm1309 = vcmp.gt.f32.partialorder %v817, 0.0
      %vm1310 = vcmp.gt.f32.partialorder %v820, 0.0
      %vm1311 = vcmp.gt.f32.partialorder %v825, 0.0
      %vm1312 = vcmp.gt.f32.partialorder %v828, 0.0
      %vm1313 = vcmp.gt.f32.partialorder %v833, 0.0
      %vm1314 = vcmp.gt.f32.partialorder %v836, 0.0
      %vm1315 = vcmp.gt.f32.partialorder %v841, 0.0
      %vm1316 = vcmp.gt.f32.partialorder %v844, 0.0
      %vm1317 = vcmp.gt.f32.partialorder %v849, 0.0
      %vm1318 = vcmp.gt.f32.partialorder %v852, 0.0
      %vm1319 = vcmp.gt.f32.partialorder %v857, 0.0
      %vm1320 = vcmp.gt.f32.partialorder %v860, 0.0
      %vm1321 = vcmp.gt.f32.partialorder %v865, 0.0
      %vm1322 = vcmp.gt.f32.partialorder %v868, 0.0
      %vm1323 = vcmp.gt.f32.partialorder %v873, 0.0
      %vm1324 = vcmp.gt.f32.partialorder %v876, 0.0
      %vm1325 = vcmp.gt.f32.partialorder %v881, 0.0
      %vm1326 = vcmp.gt.f32.partialorder %v884, 0.0
      %vm1327 = vcmp.gt.f32.partialorder %v889, 0.0
      %vm1328 = vcmp.gt.f32.partialorder %v892, 0.0
      %vm1329 = vcmp.gt.f32.partialorder %v897, 0.0
      %vm1330 = vcmp.gt.f32.partialorder %v900, 0.0
      %vm1331 = vcmp.gt.f32.partialorder %v905, 0.0
      %vm1332 = vcmp.gt.f32.partialorder %v908, 0.0
      %vm1333 = vcmp.gt.f32.partialorder %v913, 0.0
      %vm1334 = vcmp.gt.f32.partialorder %v916, 0.0
      %vm1335 = vcmp.gt.f32.partialorder %v921, 0.0
      %vm1336 = vcmp.gt.f32.partialorder %v924, 0.0
      %vm1337 = vcmp.gt.f32.partialorder %v929, 0.0
      %vm1338 = vcmp.gt.f32.partialorder %v932, 0.0
      %vm1339 = vcmp.gt.f32.partialorder %v937, 0.0
      %vm1340 = vcmp.gt.f32.partialorder %v940, 0.0
      %vm1341 = vcmp.gt.f32.partialorder %v945, 0.0
      %vm1342 = vcmp.gt.f32.partialorder %v948, 0.0
      %vm1343 = vcmp.gt.f32.partialorder %v953, 0.0
      %vm1344 = vcmp.gt.f32.partialorder %v956, 0.0
      %vm1345 = vcmp.gt.f32.partialorder %v961, 0.0
      %vm1346 = vcmp.gt.f32.partialorder %v964, 0.0
      %vm1347 = vcmp.gt.f32.partialorder %v969, 0.0
      %vm1348 = vcmp.gt.f32.partialorder %v972, 0.0
      %vm1349 = vcmp.gt.f32.partialorder %v977, 0.0
      %vm1350 = vcmp.gt.f32.partialorder %v980, 0.0
      %vm1351 = vcmp.gt.f32.partialorder %v985, 0.0
      %vm1352 = vcmp.gt.f32.partialorder %v988, 0.0
      %vm1353 = vcmp.gt.f32.partialorder %v993, 0.0
      %vm1354 = vcmp.gt.f32.partialorder %v996, 0.0
      %vm1355 = vcmp.gt.f32.partialorder %v1001, 0.0
      %vm1356 = vcmp.gt.f32.partialorder %v1004, 0.0
      %vm1357 = vcmp.gt.f32.partialorder %v1009, 0.0
      %vm1358 = vcmp.gt.f32.partialorder %v1012, 0.0
      %vm1359 = vcmp.gt.f32.partialorder %v1017, 0.0
      %vm1360 = vcmp.gt.f32.partialorder %v1020, 0.0
      %vm1361 = vcmp.gt.f32.partialorder %v1025, 0.0
      %vm1362 = vcmp.gt.f32.partialorder %v1028, 0.0
      %vm1363 = vcmp.gt.f32.partialorder %v1033, 0.0
      %vm1364 = vcmp.gt.f32.partialorder %v1036, 0.0
      %vm1365 = vcmp.gt.f32.partialorder %v1041, 0.0
      %vm1366 = vcmp.gt.f32.partialorder %v1044, 0.0
      %vm1367 = vcmp.gt.f32.partialorder %v1049, 0.0
      %vm1368 = vcmp.gt.f32.partialorder %v1052, 0.0
      %vm1369 = vcmp.gt.f32.partialorder %v1057, 0.0
      %vm1370 = vcmp.gt.f32.partialorder %v1060, 0.0
      %vm1371 = vcmp.gt.f32.partialorder %v1065, 0.0
      %vm1372 = vcmp.gt.f32.partialorder %v1068, 0.0
      %vm1373 = vcmp.gt.f32.partialorder %v1073, 0.0
      %vm1374 = vcmp.gt.f32.partialorder %v1076, 0.0
      %vm1375 = vcmp.gt.f32.partialorder %v1081, 0.0
      %vm1376 = vcmp.gt.f32.partialorder %v1084, 0.0
      %vm1377 = vcmp.gt.f32.partialorder %v1089, 0.0
      %vm1378 = vcmp.gt.f32.partialorder %v1092, 0.0
      %vm1379 = vcmp.gt.f32.partialorder %v1097, 0.0
      %vm1380 = vcmp.gt.f32.partialorder %v1100, 0.0
      %vm1381 = vcmp.gt.f32.partialorder %v1105, 0.0
      %vm1382 = vcmp.gt.f32.partialorder %v1108, 0.0
      %vm1383 = vcmp.gt.f32.partialorder %v1113, 0.0
      %vm1384 = vcmp.gt.f32.partialorder %v1116, 0.0
      %vm1385 = vcmp.gt.f32.partialorder %v1121, 0.0
      %vm1386 = vcmp.gt.f32.partialorder %v1124, 0.0
      %vm1387 = vcmp.gt.f32.partialorder %v1129, 0.0
      %vm1388 = vcmp.gt.f32.partialorder %v1132, 0.0
      %vm1389 = vcmp.gt.f32.partialorder %v1137, 0.0
      %vm1390 = vcmp.gt.f32.partialorder %v1140, 0.0
      %vm1391 = vcmp.gt.f32.partialorder %v1145, 0.0
      %vm1392 = vcmp.gt.f32.partialorder %v1148, 0.0
      %vm1393 = vcmp.gt.f32.partialorder %v1153, 0.0
      %vm1394 = vcmp.gt.f32.partialorder %v1156, 0.0
      %vm1395 = vcmp.gt.f32.partialorder %v1161, 0.0
      %vm1396 = vcmp.gt.f32.partialorder %v1164, 0.0
      %vm1397 = vcmp.gt.f32.partialorder %v1169, 0.0
      %vm1398 = vcmp.gt.f32.partialorder %v1172, 0.0
      %vm1399 = vcmp.gt.f32.partialorder %v1177, 0.0
      %vm1400 = vcmp.gt.f32.partialorder %v1180, 0.0
      %vm1401 = vcmp.gt.f32.partialorder %v1185, 0.0
      %vm1402 = vcmp.gt.f32.partialorder %v1188, 0.0
      %vm1403 = vcmp.gt.f32.partialorder %v1193, 0.0
      %vm1404 = vcmp.gt.f32.partialorder %v1196, 0.0
      %vm1405 = vcmp.gt.f32.partialorder %v1201, 0.0
      %vm1406 = vcmp.gt.f32.partialorder %v1204, 0.0
      %vm1407 = vcmp.gt.f32.partialorder %v1209, 0.0
      %vm1408 = vcmp.gt.f32.partialorder %v1212, 0.0
      %vm1409 = vcmp.gt.f32.partialorder %v1217, 0.0
      %vm1410 = vcmp.gt.f32.partialorder %v1220, 0.0
      %vm1411 = vcmp.gt.f32.partialorder %v1225, 0.0
      %vm1412 = vcmp.gt.f32.partialorder %v1228, 0.0
      %vm1413 = vcmp.gt.f32.partialorder %v1233, 0.0
      %vm1414 = vcmp.gt.f32.partialorder %v1236, 0.0
      %vm1415 = vcmp.gt.f32.partialorder %v1241, 0.0
      %vm1416 = vcmp.gt.f32.partialorder %v1244, 0.0
      %vm1417 = vcmp.gt.f32.partialorder %v1249, 0.0
      %vm1418 = vcmp.gt.f32.partialorder %v1252, 0.0
      %vm1419 = vcmp.gt.f32.partialorder %v1257, 0.0
      %vm1420 = vcmp.gt.f32.partialorder %v1260, 0.0
      %vm1421 = vcmp.gt.f32.partialorder %v1265, 0.0
      %vm1422 = vcmp.gt.f32.partialorder %v1268, 0.0
      %vm1423 = vcmp.gt.f32.partialorder %v1273, 0.0
      %vm1424 = vcmp.gt.f32.partialorder %v1276, 0.0
      %vm1425 = vcmp.gt.f32.partialorder %v1281, 0.0
      %vm1426 = vcmp.gt.f32.partialorder %v1284, 0.0
      %vm1427 = vcmp.gt.f32.partialorder %v1289, 0.0
      %vm1428 = vcmp.gt.f32.partialorder %v1292, 0.0
      %vm1429 = vcmp.gt.f32.partialorder %v1297, 0.0
      %vm1430 = vcmp.gt.f32.partialorder %v1300, 0.0
      %v1431 = vmul.f32 %v793, 0.2
      %v1432 = vmul.f32 %v796, 0.2
      %v1433 = vmul.f32 %v801, 0.2
      %v1434 = vmul.f32 %v804, 0.2
      %v1435 = vmul.f32 %v809, 0.2
      %v1436 = vmul.f32 %v812, 0.2
      %v1437 = vmul.f32 %v817, 0.2
      %v1438 = vmul.f32 %v820, 0.2
      %v1439 = vmul.f32 %v825, 0.2
      %v1440 = vmul.f32 %v828, 0.2
      %v1441 = vmul.f32 %v833, 0.2
      %v1442 = vmul.f32 %v836, 0.2
      %v1443 = vmul.f32 %v841, 0.2
      %v1444 = vmul.f32 %v844, 0.2
      %v1445 = vmul.f32 %v849, 0.2
      %v1446 = vmul.f32 %v852, 0.2
      %v1447 = vmul.f32 %v857, 0.2
      %v1448 = vmul.f32 %v860, 0.2
      %v1449 = vmul.f32 %v865, 0.2
      %v1450 = vmul.f32 %v868, 0.2
      %v1451 = vmul.f32 %v873, 0.2
      %v1452 = vmul.f32 %v876, 0.2
      %v1453 = vmul.f32 %v881, 0.2
      %v1454 = vmul.f32 %v884, 0.2
      %v1455 = vmul.f32 %v889, 0.2
      %v1456 = vmul.f32 %v892, 0.2
      %v1457 = vmul.f32 %v897, 0.2
      %v1458 = vmul.f32 %v900, 0.2
      %v1459 = vmul.f32 %v905, 0.2
      %v1460 = vmul.f32 %v908, 0.2
      %v1461 = vmul.f32 %v913, 0.2
      %v1462 = vmul.f32 %v916, 0.2
      %v1463 = vmul.f32 %v921, 0.2
      %v1464 = vmul.f32 %v924, 0.2
      %v1465 = vmul.f32 %v929, 0.2
      %v1466 = vmul.f32 %v932, 0.2
      %v1467 = vmul.f32 %v937, 0.2
      %v1468 = vmul.f32 %v940, 0.2
      %v1469 = vmul.f32 %v945, 0.2
      %v1470 = vmul.f32 %v948, 0.2
      %v1471 = vmul.f32 %v953, 0.2
      %v1472 = vmul.f32 %v956, 0.2
      %v1473 = vmul.f32 %v961, 0.2
      %v1474 = vmul.f32 %v964, 0.2
      %v1475 = vmul.f32 %v969, 0.2
      %v1476 = vmul.f32 %v972, 0.2
      %v1477 = vmul.f32 %v977, 0.2
      %v1478 = vmul.f32 %v980, 0.2
      %v1479 = vmul.f32 %v985, 0.2
      %v1480 = vmul.f32 %v988, 0.2
      %v1481 = vmul.f32 %v993, 0.2
      %v1482 = vmul.f32 %v996, 0.2
      %v1483 = vmul.f32 %v1001, 0.2
      %v1484 = vmul.f32 %v1004, 0.2
      %v1485 = vmul.f32 %v1009, 0.2
      %v1486 = vmul.f32 %v1012, 0.2
      %v1487 = vmul.f32 %v1017, 0.2
      %v1488 = vmul.f32 %v1020, 0.2
      %v1489 = vmul.f32 %v1025, 0.2
      %v1490 = vmul.f32 %v1028, 0.2
      %v1491 = vmul.f32 %v1033, 0.2
      %v1492 = vmul.f32 %v1036, 0.2
      %v1493 = vmul.f32 %v1041, 0.2
      %v1494 = vmul.f32 %v1044, 0.2
      %v1495 = vmul.f32 %v1049, 0.2
      %v1496 = vmul.f32 %v1052, 0.2
      %v1497 = vmul.f32 %v1057, 0.2
      %v1498 = vmul.f32 %v1060, 0.2
      %v1499 = vmul.f32 %v1065, 0.2
      %v1500 = vmul.f32 %v1068, 0.2
      %v1501 = vmul.f32 %v1073, 0.2
      %v1502 = vmul.f32 %v1076, 0.2
      %v1503 = vmul.f32 %v1081, 0.2
      %v1504 = vmul.f32 %v1084, 0.2
      %v1505 = vmul.f32 %v1089, 0.2
      %v1506 = vmul.f32 %v1092, 0.2
      %v1507 = vmul.f32 %v1097, 0.2
      %v1508 = vmul.f32 %v1100, 0.2
      %v1509 = vmul.f32 %v1105, 0.2
      %v1510 = vmul.f32 %v1108, 0.2
      %v1511 = vmul.f32 %v1113, 0.2
      %v1512 = vmul.f32 %v1116, 0.2
      %v1513 = vmul.f32 %v1121, 0.2
      %v1514 = vmul.f32 %v1124, 0.2
      %v1515 = vmul.f32 %v1129, 0.2
      %v1516 = vmul.f32 %v1132, 0.2
      %v1517 = vmul.f32 %v1137, 0.2
      %v1518 = vmul.f32 %v1140, 0.2
      %v1519 = vmul.f32 %v1145, 0.2
      %v1520 = vmul.f32 %v1148, 0.2
      %v1521 = vmul.f32 %v1153, 0.2
      %v1522 = vmul.f32 %v1156, 0.2
      %v1523 = vmul.f32 %v1161, 0.2
      %v1524 = vmul.f32 %v1164, 0.2
      %v1525 = vmul.f32 %v1169, 0.2
      %v1526 = vmul.f32 %v1172, 0.2
      %v1527 = vmul.f32 %v1177, 0.2
      %v1528 = vmul.f32 %v1180, 0.2
      %v1529 = vmul.f32 %v1185, 0.2
      %v1530 = vmul.f32 %v1188, 0.2
      %v1531 = vmul.f32 %v1193, 0.2
      %v1532 = vmul.f32 %v1196, 0.2
      %v1533 = vmul.f32 %v1201, 0.2
      %v1534 = vmul.f32 %v1204, 0.2
      %v1535 = vmul.f32 %v1209, 0.2
      %v1536 = vmul.f32 %v1212, 0.2
      %v1537 = vmul.f32 %v1217, 0.2
      %v1538 = vmul.f32 %v1220, 0.2
      %v1539 = vmul.f32 %v1225, 0.2
      %v1540 = vmul.f32 %v1228, 0.2
      %v1541 = vmul.f32 %v1233, 0.2
      %v1542 = vmul.f32 %v1236, 0.2
      %v1543 = vmul.f32 %v1241, 0.2
      %v1544 = vmul.f32 %v1244, 0.2
      %v1545 = vmul.f32 %v1249, 0.2
      %v1546 = vmul.f32 %v1252, 0.2
      %v1547 = vmul.f32 %v1257, 0.2
      %v1548 = vmul.f32 %v1260, 0.2
      %v1549 = vmul.f32 %v1265, 0.2
      %v1550 = vmul.f32 %v1268, 0.2
      %v1551 = vmul.f32 %v1273, 0.2
      %v1552 = vmul.f32 %v1276, 0.2
      %v1553 = vmul.f32 %v1281, 0.2
      %v1554 = vmul.f32 %v1284, 0.2
      %v1555 = vmul.f32 %v1289, 0.2
      %v1556 = vmul.f32 %v1292, 0.2
      %v1557 = vmul.f32 %v1297, 0.2
      %v1558 = vmul.f32 %v1300, 0.2
      %v1559 = vsel %vm1303, %v793, %v1431
      %v1560 = vsel %vm1304, %v796, %v1432
      %v1561 = vsel %vm1305, %v801, %v1433
      %v1562 = vsel %vm1306, %v804, %v1434
      %v1563 = vsel %vm1307, %v809, %v1435
      %v1564 = vsel %vm1308, %v812, %v1436
      %v1565 = vsel %vm1309, %v817, %v1437
      %v1566 = vsel %vm1310, %v820, %v1438
      %v1567 = vsel %vm1311, %v825, %v1439
      %v1568 = vsel %vm1312, %v828, %v1440
      %v1569 = vsel %vm1313, %v833, %v1441
      %v1570 = vsel %vm1314, %v836, %v1442
      %v1571 = vsel %vm1315, %v841, %v1443
      %v1572 = vsel %vm1316, %v844, %v1444
      %v1573 = vsel %vm1317, %v849, %v1445
      %v1574 = vsel %vm1318, %v852, %v1446
      %v1575 = vsel %vm1319, %v857, %v1447
      %v1576 = vsel %vm1320, %v860, %v1448
      %v1577 = vsel %vm1321, %v865, %v1449
      %v1578 = vsel %vm1322, %v868, %v1450
      %v1579 = vsel %vm1323, %v873, %v1451
      %v1580 = vsel %vm1324, %v876, %v1452
      %v1581 = vsel %vm1325, %v881, %v1453
      %v1582 = vsel %vm1326, %v884, %v1454
      %v1583 = vsel %vm1327, %v889, %v1455
      %v1584 = vsel %vm1328, %v892, %v1456
      %v1585 = vsel %vm1329, %v897, %v1457
      %v1586 = vsel %vm1330, %v900, %v1458
      %v1587 = vsel %vm1331, %v905, %v1459
      %v1588 = vsel %vm1332, %v908, %v1460
      %v1589 = vsel %vm1333, %v913, %v1461
      %v1590 = vsel %vm1334, %v916, %v1462
      %v1591 = vsel %vm1335, %v921, %v1463
      %v1592 = vsel %vm1336, %v924, %v1464
      %v1593 = vsel %vm1337, %v929, %v1465
      %v1594 = vsel %vm1338, %v932, %v1466
      %v1595 = vsel %vm1339, %v937, %v1467
      %v1596 = vsel %vm1340, %v940, %v1468
      %v1597 = vsel %vm1341, %v945, %v1469
      %v1598 = vsel %vm1342, %v948, %v1470
      %v1599 = vsel %vm1343, %v953, %v1471
      %v1600 = vsel %vm1344, %v956, %v1472
      %v1601 = vsel %vm1345, %v961, %v1473
      %v1602 = vsel %vm1346, %v964, %v1474
      %v1603 = vsel %vm1347, %v969, %v1475
      %v1604 = vsel %vm1348, %v972, %v1476
      %v1605 = vsel %vm1349, %v977, %v1477
      %v1606 = vsel %vm1350, %v980, %v1478
      %v1607 = vsel %vm1351, %v985, %v1479
      %v1608 = vsel %vm1352, %v988, %v1480
      %v1609 = vsel %vm1353, %v993, %v1481
      %v1610 = vsel %vm1354, %v996, %v1482
      %v1611 = vsel %vm1355, %v1001, %v1483
      %v1612 = vsel %vm1356, %v1004, %v1484
      %v1613 = vsel %vm1357, %v1009, %v1485
      %v1614 = vsel %vm1358, %v1012, %v1486
      %v1615 = vsel %vm1359, %v1017, %v1487
      %v1616 = vsel %vm1360, %v1020, %v1488
      %v1617 = vsel %vm1361, %v1025, %v1489
      %v1618 = vsel %vm1362, %v1028, %v1490
      %v1619 = vsel %vm1363, %v1033, %v1491
      %v1620 = vsel %vm1364, %v1036, %v1492
      %v1621 = vsel %vm1365, %v1041, %v1493
      %v1622 = vsel %vm1366, %v1044, %v1494
      %v1623 = vsel %vm1367, %v1049, %v1495
      %v1624 = vsel %vm1368, %v1052, %v1496
      %v1625 = vsel %vm1369, %v1057, %v1497
      %v1626 = vsel %vm1370, %v1060, %v1498
      %v1627 = vsel %vm1371, %v1065, %v1499
      %v1628 = vsel %vm1372, %v1068, %v1500
      %v1629 = vsel %vm1373, %v1073, %v1501
      %v1630 = vsel %vm1374, %v1076, %v1502
      %v1631 = vsel %vm1375, %v1081, %v1503
      %v1632 = vsel %vm1376, %v1084, %v1504
      %v1633 = vsel %vm1377, %v1089, %v1505
      %v1634 = vsel %vm1378, %v1092, %v1506
      %v1635 = vsel %vm1379, %v1097, %v1507
      %v1636 = vsel %vm1380, %v1100, %v1508
      %v1637 = vsel %vm1381, %v1105, %v1509
      %v1638 = vsel %vm1382, %v1108, %v1510
      %v1639 = vsel %vm1383, %v1113, %v1511
      %v1640 = vsel %vm1384, %v1116, %v1512
      %v1641 = vsel %vm1385, %v1121, %v1513
      %v1642 = vsel %vm1386, %v1124, %v1514
      %v1643 = vsel %vm1387, %v1129, %v1515
      %v1644 = vsel %vm1388, %v1132, %v1516
      %v1645 = vsel %vm1389, %v1137, %v1517
      %v1646 = vsel %vm1390, %v1140, %v1518
      %v1647 = vsel %vm1391, %v1145, %v1519
      %v1648 = vsel %vm1392, %v1148, %v1520
      %v1649 = vsel %vm1393, %v1153, %v1521
      %v1650 = vsel %vm1394, %v1156, %v1522
      %v1651 = vsel %vm1395, %v1161, %v1523
      %v1652 = vsel %vm1396, %v1164, %v1524
      %v1653 = vsel %vm1397, %v1169, %v1525
      %v1654 = vsel %vm1398, %v1172, %v1526
      %v1655 = vsel %vm1399, %v1177, %v1527
      %v1656 = vsel %vm1400, %v1180, %v1528
      %v1657 = vsel %vm1401, %v1185, %v1529
      %v1658 = vsel %vm1402, %v1188, %v1530
      %v1659 = vsel %vm1403, %v1193, %v1531
      %v1660 = vsel %vm1404, %v1196, %v1532
      %v1661 = vsel %vm1405, %v1201, %v1533
      %v1662 = vsel %vm1406, %v1204, %v1534
      %v1663 = vsel %vm1407, %v1209, %v1535
      %v1664 = vsel %vm1408, %v1212, %v1536
      %v1665 = vsel %vm1409, %v1217, %v1537
      %v1666 = vsel %vm1410, %v1220, %v1538
      %v1667 = vsel %vm1411, %v1225, %v1539
      %v1668 = vsel %vm1412, %v1228, %v1540
      %v1669 = vsel %vm1413, %v1233, %v1541
      %v1670 = vsel %vm1414, %v1236, %v1542
      %v1671 = vsel %vm1415, %v1241, %v1543
      %v1672 = vsel %vm1416, %v1244, %v1544
      %v1673 = vsel %vm1417, %v1249, %v1545
      %v1674 = vsel %vm1418, %v1252, %v1546
      %v1675 = vsel %vm1419, %v1257, %v1547
      %v1676 = vsel %vm1420, %v1260, %v1548
      %v1677 = vsel %vm1421, %v1265, %v1549
      %v1678 = vsel %vm1422, %v1268, %v1550
      %v1679 = vsel %vm1423, %v1273, %v1551
      %v1680 = vsel %vm1424, %v1276, %v1552
      %v1681 = vsel %vm1425, %v1281, %v1553
      %v1682 = vsel %vm1426, %v1284, %v1554
      %v1683 = vsel %vm1427, %v1289, %v1555
      %v1684 = vsel %vm1428, %v1292, %v1556
      %v1685 = vsel %vm1429, %v1297, %v1557
      %v1686 = vsel %vm1430, %v1300, %v1558
      %v1687 = vpack.c.bf16 %v1560, %v1559
      %v1688 = vpack.c.bf16 %v1562, %v1561
      %v1689 = vpack.c.bf16 %v1564, %v1563
      %v1690 = vpack.c.bf16 %v1566, %v1565
      %v1691 = vpack.c.bf16 %v1568, %v1567
      %v1692 = vpack.c.bf16 %v1570, %v1569
      %v1693 = vpack.c.bf16 %v1572, %v1571
      %v1694 = vpack.c.bf16 %v1574, %v1573
      %v1695 = vpack.c.bf16 %v1576, %v1575
      %v1696 = vpack.c.bf16 %v1578, %v1577
      %v1697 = vpack.c.bf16 %v1580, %v1579
      %v1698 = vpack.c.bf16 %v1582, %v1581
      %v1699 = vpack.c.bf16 %v1584, %v1583
      %v1700 = vpack.c.bf16 %v1586, %v1585
      %v1701 = vpack.c.bf16 %v1588, %v1587
      %v1702 = vpack.c.bf16 %v1590, %v1589
      %v1703 = vpack.c.bf16 %v1592, %v1591
      %v1704 = vpack.c.bf16 %v1594, %v1593
      %v1705 = vpack.c.bf16 %v1596, %v1595
      %v1706 = vpack.c.bf16 %v1598, %v1597
      %v1707 = vpack.c.bf16 %v1600, %v1599
      %v1708 = vpack.c.bf16 %v1602, %v1601
      %v1709 = vpack.c.bf16 %v1604, %v1603
      %v1710 = vpack.c.bf16 %v1606, %v1605
      %v1711 = vpack.c.bf16 %v1608, %v1607
      %v1712 = vpack.c.bf16 %v1610, %v1609
      %v1713 = vpack.c.bf16 %v1612, %v1611
      %v1714 = vpack.c.bf16 %v1614, %v1613
      %v1715 = vpack.c.bf16 %v1616, %v1615
      %v1716 = vpack.c.bf16 %v1618, %v1617
      %v1717 = vpack.c.bf16 %v1620, %v1619
      %v1718 = vpack.c.bf16 %v1622, %v1621
      %v1719 = vpack.c.bf16 %v1624, %v1623
      %v1720 = vpack.c.bf16 %v1626, %v1625
      %v1721 = vpack.c.bf16 %v1628, %v1627
      %v1722 = vpack.c.bf16 %v1630, %v1629
      %v1723 = vpack.c.bf16 %v1632, %v1631
      %v1724 = vpack.c.bf16 %v1634, %v1633
      %v1725 = vpack.c.bf16 %v1636, %v1635
      %v1726 = vpack.c.bf16 %v1638, %v1637
      %v1727 = vpack.c.bf16 %v1640, %v1639
      %v1728 = vpack.c.bf16 %v1642, %v1641
      %v1729 = vpack.c.bf16 %v1644, %v1643
      %v1730 = vpack.c.bf16 %v1646, %v1645
      %v1731 = vpack.c.bf16 %v1648, %v1647
      %v1732 = vpack.c.bf16 %v1650, %v1649
      %v1733 = vpack.c.bf16 %v1652, %v1651
      %v1734 = vpack.c.bf16 %v1654, %v1653
      %v1735 = vpack.c.bf16 %v1656, %v1655
      %v1736 = vpack.c.bf16 %v1658, %v1657
      %v1737 = vpack.c.bf16 %v1660, %v1659
      %v1738 = vpack.c.bf16 %v1662, %v1661
      %v1739 = vpack.c.bf16 %v1664, %v1663
      %v1740 = vpack.c.bf16 %v1666, %v1665
      %v1741 = vpack.c.bf16 %v1668, %v1667
      %v1742 = vpack.c.bf16 %v1670, %v1669
      %v1743 = vpack.c.bf16 %v1672, %v1671
      %v1744 = vpack.c.bf16 %v1674, %v1673
      %v1745 = vpack.c.bf16 %v1676, %v1675
      %v1746 = vpack.c.bf16 %v1678, %v1677
      %v1747 = vpack.c.bf16 %v1680, %v1679
      %v1748 = vpack.c.bf16 %v1682, %v1681
      %v1749 = vpack.c.bf16 %v1684, %v1683
      %v1750 = vpack.c.bf16 %v1686, %v1685
      %v1815 = vunpack.c.l.b16 %v1687
      %v1816 = vunpack.c.h.b16 %v1687
      %v1817 = vunpack.c.l.b16 %v1688
      %v1818 = vunpack.c.h.b16 %v1688
      %v1819 = vunpack.c.l.b16 %v1689
      %v1820 = vunpack.c.h.b16 %v1689
      %v1821 = vunpack.c.l.b16 %v1690
      %v1822 = vunpack.c.h.b16 %v1690
      %v1823 = vunpack.c.l.b16 %v1691
      %v1824 = vunpack.c.h.b16 %v1691
      %v1825 = vunpack.c.l.b16 %v1692
      %v1826 = vunpack.c.h.b16 %v1692
      %v1827 = vunpack.c.l.b16 %v1693
      %v1828 = vunpack.c.h.b16 %v1693
      %v1829 = vunpack.c.l.b16 %v1694
      %v1830 = vunpack.c.h.b16 %v1694
      %v1831 = vunpack.c.l.b16 %v1695
      %v1832 = vunpack.c.h.b16 %v1695
      %v1833 = vunpack.c.l.b16 %v1696
      %v1834 = vunpack.c.h.b16 %v1696
      %v1835 = vunpack.c.l.b16 %v1697
      %v1836 = vunpack.c.h.b16 %v1697
      %v1837 = vunpack.c.l.b16 %v1698
      %v1838 = vunpack.c.h.b16 %v1698
      %v1839 = vunpack.c.l.b16 %v1699
      %v1840 = vunpack.c.h.b16 %v1699
      %v1841 = vunpack.c.l.b16 %v1700
      %v1842 = vunpack.c.h.b16 %v1700
      %v1843 = vunpack.c.l.b16 %v1701
      %v1844 = vunpack.c.h.b16 %v1701
      %v1845 = vunpack.c.l.b16 %v1702
      %v1846 = vunpack.c.h.b16 %v1702
      %v1847 = vunpack.c.l.b16 %v1703
      %v1848 = vunpack.c.h.b16 %v1703
      %v1849 = vunpack.c.l.b16 %v1704
      %v1850 = vunpack.c.h.b16 %v1704
      %v1851 = vunpack.c.l.b16 %v1705
      %v1852 = vunpack.c.h.b16 %v1705
      %v1853 = vunpack.c.l.b16 %v1706
      %v1854 = vunpack.c.h.b16 %v1706
      %v1855 = vunpack.c.l.b16 %v1707
      %v1856 = vunpack.c.h.b16 %v1707
      %v1857 = vunpack.c.l.b16 %v1708
      %v1858 = vunpack.c.h.b16 %v1708
      %v1859 = vunpack.c.l.b16 %v1709
      %v1860 = vunpack.c.h.b16 %v1709
      %v1861 = vunpack.c.l.b16 %v1710
      %v1862 = vunpack.c.h.b16 %v1710
      %v1863 = vunpack.c.l.b16 %v1711
      %v1864 = vunpack.c.h.b16 %v1711
      %v1865 = vunpack.c.l.b16 %v1712
      %v1866 = vunpack.c.h.b16 %v1712
      %v1867 = vunpack.c.l.b16 %v1713
      %v1868 = vunpack.c.h.b16 %v1713
      %v1869 = vunpack.c.l.b16 %v1714
      %v1870 = vunpack.c.h.b16 %v1714
      %v1871 = vunpack.c.l.b16 %v1715
      %v1872 = vunpack.c.h.b16 %v1715
      %v1873 = vunpack.c.l.b16 %v1716
      %v1874 = vunpack.c.h.b16 %v1716
      %v1875 = vunpack.c.l.b16 %v1717
      %v1876 = vunpack.c.h.b16 %v1717
      %v1877 = vunpack.c.l.b16 %v1718
      %v1878 = vunpack.c.h.b16 %v1718
      %v1879 = vunpack.c.l.b16 %v1719
      %v1880 = vunpack.c.h.b16 %v1719
      %v1881 = vunpack.c.l.b16 %v1720
      %v1882 = vunpack.c.h.b16 %v1720
      %v1883 = vunpack.c.l.b16 %v1721
      %v1884 = vunpack.c.h.b16 %v1721
      %v1885 = vunpack.c.l.b16 %v1722
      %v1886 = vunpack.c.h.b16 %v1722
      %v1887 = vunpack.c.l.b16 %v1723
      %v1888 = vunpack.c.h.b16 %v1723
      %v1889 = vunpack.c.l.b16 %v1724
      %v1890 = vunpack.c.h.b16 %v1724
      %v1891 = vunpack.c.l.b16 %v1725
      %v1892 = vunpack.c.h.b16 %v1725
      %v1893 = vunpack.c.l.b16 %v1726
      %v1894 = vunpack.c.h.b16 %v1726
      %v1895 = vunpack.c.l.b16 %v1727
      %v1896 = vunpack.c.h.b16 %v1727
      %v1897 = vunpack.c.l.b16 %v1728
      %v1898 = vunpack.c.h.b16 %v1728
      %v1899 = vunpack.c.l.b16 %v1729
      %v1900 = vunpack.c.h.b16 %v1729
      %v1901 = vunpack.c.l.b16 %v1730
      %v1902 = vunpack.c.h.b16 %v1730
      %v1903 = vunpack.c.l.b16 %v1731
      %v1904 = vunpack.c.h.b16 %v1731
      %v1905 = vunpack.c.l.b16 %v1732
      %v1906 = vunpack.c.h.b16 %v1732
      %v1907 = vunpack.c.l.b16 %v1733
      %v1908 = vunpack.c.h.b16 %v1733
      %v1909 = vunpack.c.l.b16 %v1734
      %v1910 = vunpack.c.h.b16 %v1734
      %v1911 = vunpack.c.l.b16 %v1735
      %v1912 = vunpack.c.h.b16 %v1735
      %v1913 = vunpack.c.l.b16 %v1736
      %v1914 = vunpack.c.h.b16 %v1736
      %v1915 = vunpack.c.l.b16 %v1737
      %v1916 = vunpack.c.h.b16 %v1737
      %v1917 = vunpack.c.l.b16 %v1738
      %v1918 = vunpack.c.h.b16 %v1738
      %v1919 = vunpack.c.l.b16 %v1739
      %v1920 = vunpack.c.h.b16 %v1739
      %v1921 = vunpack.c.l.b16 %v1740
      %v1922 = vunpack.c.h.b16 %v1740
      %v1923 = vunpack.c.l.b16 %v1741
      %v1924 = vunpack.c.h.b16 %v1741
      %v1925 = vunpack.c.l.b16 %v1742
      %v1926 = vunpack.c.h.b16 %v1742
      %v1927 = vunpack.c.l.b16 %v1743
      %v1928 = vunpack.c.h.b16 %v1743
      %v1929 = vunpack.c.l.b16 %v1744
      %v1930 = vunpack.c.h.b16 %v1744
      %v1931 = vunpack.c.l.b16 %v1745
      %v1932 = vunpack.c.h.b16 %v1745
      %v1933 = vunpack.c.l.b16 %v1746
      %v1934 = vunpack.c.h.b16 %v1746
      %v1935 = vunpack.c.l.b16 %v1747
      %v1936 = vunpack.c.h.b16 %v1747
      %v1937 = vunpack.c.l.b16 %v1748
      %v1938 = vunpack.c.h.b16 %v1748
      %v1939 = vunpack.c.l.b16 %v1749
      %v1940 = vunpack.c.h.b16 %v1749
      %v1941 = vunpack.c.l.b16 %v1750
      %v1942 = vunpack.c.h.b16 %v1750
      %v1943 = vpack.c.b16 %v1815, %v1815
      %v1944 = vpack.c.b16 %v1816, %v1816
      %v1945 = vpack.c.b16 %v1817, %v1817
      %v1946 = vpack.c.b16 %v1818, %v1818
      %v1947 = vpack.c.b16 %v1819, %v1819
      %v1948 = vpack.c.b16 %v1820, %v1820
      %v1949 = vpack.c.b16 %v1821, %v1821
      %v1950 = vpack.c.b16 %v1822, %v1822
      %v1951 = vpack.c.b16 %v1823, %v1823
      %v1952 = vpack.c.b16 %v1824, %v1824
      %v1953 = vpack.c.b16 %v1825, %v1825
      %v1954 = vpack.c.b16 %v1826, %v1826
      %v1955 = vpack.c.b16 %v1827, %v1827
      %v1956 = vpack.c.b16 %v1828, %v1828
      %v1957 = vpack.c.b16 %v1829, %v1829
      %v1958 = vpack.c.b16 %v1830, %v1830
      %v1959 = vpack.c.b16 %v1831, %v1831
      %v1960 = vpack.c.b16 %v1832, %v1832
      %v1961 = vpack.c.b16 %v1833, %v1833
      %v1962 = vpack.c.b16 %v1834, %v1834
      %v1963 = vpack.c.b16 %v1835, %v1835
      %v1964 = vpack.c.b16 %v1836, %v1836
      %v1965 = vpack.c.b16 %v1837, %v1837
      %v1966 = vpack.c.b16 %v1838, %v1838
      %v1967 = vpack.c.b16 %v1839, %v1839
      %v1968 = vpack.c.b16 %v1840, %v1840
      %v1969 = vpack.c.b16 %v1841, %v1841
      %v1970 = vpack.c.b16 %v1842, %v1842
      %v1971 = vpack.c.b16 %v1843, %v1843
      %v1972 = vpack.c.b16 %v1844, %v1844
      %v1973 = vpack.c.b16 %v1845, %v1845
      %v1974 = vpack.c.b16 %v1846, %v1846
      %v1975 = vpack.c.b16 %v1847, %v1847
      %v1976 = vpack.c.b16 %v1848, %v1848
      %v1977 = vpack.c.b16 %v1849, %v1849
      %v1978 = vpack.c.b16 %v1850, %v1850
      %v1979 = vpack.c.b16 %v1851, %v1851
      %v1980 = vpack.c.b16 %v1852, %v1852
      %v1981 = vpack.c.b16 %v1853, %v1853
      %v1982 = vpack.c.b16 %v1854, %v1854
      %v1983 = vpack.c.b16 %v1855, %v1855
      %v1984 = vpack.c.b16 %v1856, %v1856
      %v1985 = vpack.c.b16 %v1857, %v1857
      %v1986 = vpack.c.b16 %v1858, %v1858
      %v1987 = vpack.c.b16 %v1859, %v1859
      %v1988 = vpack.c.b16 %v1860, %v1860
      %v1989 = vpack.c.b16 %v1861, %v1861
      %v1990 = vpack.c.b16 %v1862, %v1862
      %v1991 = vpack.c.b16 %v1863, %v1863
      %v1992 = vpack.c.b16 %v1864, %v1864
      %v1993 = vpack.c.b16 %v1865, %v1865
      %v1994 = vpack.c.b16 %v1866, %v1866
      %v1995 = vpack.c.b16 %v1867, %v1867
      %v1996 = vpack.c.b16 %v1868, %v1868
      %v1997 = vpack.c.b16 %v1869, %v1869
      %v1998 = vpack.c.b16 %v1870, %v1870
      %v1999 = vpack.c.b16 %v1871, %v1871
      %v2000 = vpack.c.b16 %v1872, %v1872
      %v2001 = vpack.c.b16 %v1873, %v1873
      %v2002 = vpack.c.b16 %v1874, %v1874
      %v2003 = vpack.c.b16 %v1875, %v1875
      %v2004 = vpack.c.b16 %v1876, %v1876
      %v2005 = vpack.c.b16 %v1877, %v1877
      %v2006 = vpack.c.b16 %v1878, %v1878
      %v2007 = vpack.c.b16 %v1879, %v1879
      %v2008 = vpack.c.b16 %v1880, %v1880
      %v2009 = vpack.c.b16 %v1881, %v1881
      %v2010 = vpack.c.b16 %v1882, %v1882
      %v2011 = vpack.c.b16 %v1883, %v1883
      %v2012 = vpack.c.b16 %v1884, %v1884
      %v2013 = vpack.c.b16 %v1885, %v1885
      %v2014 = vpack.c.b16 %v1886, %v1886
      %v2015 = vpack.c.b16 %v1887, %v1887
      %v2016 = vpack.c.b16 %v1888, %v1888
      %v2017 = vpack.c.b16 %v1889, %v1889
      %v2018 = vpack.c.b16 %v1890, %v1890
      %v2019 = vpack.c.b16 %v1891, %v1891
      %v2020 = vpack.c.b16 %v1892, %v1892
      %v2021 = vpack.c.b16 %v1893, %v1893
      %v2022 = vpack.c.b16 %v1894, %v1894
      %v2023 = vpack.c.b16 %v1895, %v1895
      %v2024 = vpack.c.b16 %v1896, %v1896
      %v2025 = vpack.c.b16 %v1897, %v1897
      %v2026 = vpack.c.b16 %v1898, %v1898
      %v2027 = vpack.c.b16 %v1899, %v1899
      %v2028 = vpack.c.b16 %v1900, %v1900
      %v2029 = vpack.c.b16 %v1901, %v1901
      %v2030 = vpack.c.b16 %v1902, %v1902
      %v2031 = vpack.c.b16 %v1903, %v1903
      %v2032 = vpack.c.b16 %v1904, %v1904
      %v2033 = vpack.c.b16 %v1905, %v1905
      %v2034 = vpack.c.b16 %v1906, %v1906
      %v2035 = vpack.c.b16 %v1907, %v1907
      %v2036 = vpack.c.b16 %v1908, %v1908
      %v2037 = vpack.c.b16 %v1909, %v1909
      %v2038 = vpack.c.b16 %v1910, %v1910
      %v2039 = vpack.c.b16 %v1911, %v1911
      %v2040 = vpack.c.b16 %v1912, %v1912
      %v2041 = vpack.c.b16 %v1913, %v1913
      %v2042 = vpack.c.b16 %v1914, %v1914
      %v2043 = vpack.c.b16 %v1915, %v1915
      %v2044 = vpack.c.b16 %v1916, %v1916
      %v2045 = vpack.c.b16 %v1917, %v1917
      %v2046 = vpack.c.b16 %v1918, %v1918
      %v2047 = vpack.c.b16 %v1919, %v1919
      %v2048 = vpack.c.b16 %v1920, %v1920
      %v2049 = vpack.c.b16 %v1921, %v1921
      %v2050 = vpack.c.b16 %v1922, %v1922
      %v2051 = vpack.c.b16 %v1923, %v1923
      %v2052 = vpack.c.b16 %v1924, %v1924
      %v2053 = vpack.c.b16 %v1925, %v1925
      %v2054 = vpack.c.b16 %v1926, %v1926
      %v2055 = vpack.c.b16 %v1927, %v1927
      %v2056 = vpack.c.b16 %v1928, %v1928
      %v2057 = vpack.c.b16 %v1929, %v1929
      %v2058 = vpack.c.b16 %v1930, %v1930
      %v2059 = vpack.c.b16 %v1931, %v1931
      %v2060 = vpack.c.b16 %v1932, %v1932
      %v2061 = vpack.c.b16 %v1933, %v1933
      %v2062 = vpack.c.b16 %v1934, %v1934
      %v2063 = vpack.c.b16 %v1935, %v1935
      %v2064 = vpack.c.b16 %v1936, %v1936
      %v2065 = vpack.c.b16 %v1937, %v1937
      %v2066 = vpack.c.b16 %v1938, %v1938
      %v2067 = vpack.c.b16 %v1939, %v1939
      %v2068 = vpack.c.b16 %v1940, %v1940
      %v2069 = vpack.c.b16 %v1941, %v1941
      %v2070 = vpack.c.b16 %v1942, %v1942
      %vm2199 = vcmask 125952
      %2200 = vst.msk [vmem:[%s172] sm:$0xf] %vm2199, %v1943
      %2201 = vst.msk [vmem:[%s172 + $0x4] sm:$0xf] %vm2199, %v1944
      %2202 = vst.msk [vmem:[%s172 + $0x8] sm:$0xf] %vm2199, %v1945
      %2203 = vst.msk [vmem:[%s172 + $0xc] sm:$0xf] %vm2199, %v1946
      %2204 = vst.msk [vmem:[%s172 + $0x10] sm:$0xf] %vm2199, %v1947
      %2205 = vst.msk [vmem:[%s172 + $0x14] sm:$0xf] %vm2199, %v1948
      %2206 = vst.msk [vmem:[%s172 + $0x18] sm:$0xf] %vm2199, %v1949
      %2207 = vst.msk [vmem:[%s172 + $0x1c] sm:$0xf] %vm2199, %v1950
      %2208 = vst.msk [vmem:[%s172 + $0x20] sm:$0xf] %vm2199, %v1951
      %2209 = vst.msk [vmem:[%s172 + $0x24] sm:$0xf] %vm2199, %v1952
      %2210 = vst.msk [vmem:[%s172 + $0x28] sm:$0xf] %vm2199, %v1953
      %2211 = vst.msk [vmem:[%s172 + $0x2c] sm:$0xf] %vm2199, %v1954
      %2212 = vst.msk [vmem:[%s172 + $0x30] sm:$0xf] %vm2199, %v1955
      %2213 = vst.msk [vmem:[%s172 + $0x34] sm:$0xf] %vm2199, %v1956
      %2214 = vst.msk [vmem:[%s172 + $0x38] sm:$0xf] %vm2199, %v1957
      %2215 = vst.msk [vmem:[%s172 + $0x3c] sm:$0xf] %vm2199, %v1958
      %2216 = vst.msk [vmem:[%s172 + $0x40] sm:$0xf] %vm2199, %v1959
      %2217 = vst.msk [vmem:[%s172 + $0x44] sm:$0xf] %vm2199, %v1960
      %2218 = vst.msk [vmem:[%s172 + $0x48] sm:$0xf] %vm2199, %v1961
      %2219 = vst.msk [vmem:[%s172 + $0x4c] sm:$0xf] %vm2199, %v1962
      %2220 = vst.msk [vmem:[%s172 + $0x50] sm:$0xf] %vm2199, %v1963
      %2221 = vst.msk [vmem:[%s172 + $0x54] sm:$0xf] %vm2199, %v1964
      %2222 = vst.msk [vmem:[%s172 + $0x58] sm:$0xf] %vm2199, %v1965
      %2223 = vst.msk [vmem:[%s172 + $0x5c] sm:$0xf] %vm2199, %v1966
      %2224 = vst.msk [vmem:[%s172 + $0x60] sm:$0xf] %vm2199, %v1967
      %2225 = vst.msk [vmem:[%s172 + $0x64] sm:$0xf] %vm2199, %v1968
      %2226 = vst.msk [vmem:[%s172 + $0x68] sm:$0xf] %vm2199, %v1969
      %2227 = vst.msk [vmem:[%s172 + $0x6c] sm:$0xf] %vm2199, %v1970
      %2228 = vst.msk [vmem:[%s172 + $0x70] sm:$0xf] %vm2199, %v1971
      %2229 = vst.msk [vmem:[%s172 + $0x74] sm:$0xf] %vm2199, %v1972
      %2230 = vst.msk [vmem:[%s172 + $0x78] sm:$0xf] %vm2199, %v1973
      %2231 = vst.msk [vmem:[%s172 + $0x7c] sm:$0xf] %vm2199, %v1974
      %2232 = vst.msk [vmem:[%s172 + $0x80] sm:$0xf] %vm2199, %v1975
      %2233 = vst.msk [vmem:[%s172 + $0x84] sm:$0xf] %vm2199, %v1976
      %2234 = vst.msk [vmem:[%s172 + $0x88] sm:$0xf] %vm2199, %v1977
      %2235 = vst.msk [vmem:[%s172 + $0x8c] sm:$0xf] %vm2199, %v1978
      %2236 = vst.msk [vmem:[%s172 + $0x90] sm:$0xf] %vm2199, %v1979
      %2237 = vst.msk [vmem:[%s172 + $0x94] sm:$0xf] %vm2199, %v1980
      %2238 = vst.msk [vmem:[%s172 + $0x98] sm:$0xf] %vm2199, %v1981
      %2239 = vst.msk [vmem:[%s172 + $0x9c] sm:$0xf] %vm2199, %v1982
      %2240 = vst.msk [vmem:[%s172 + $0xa0] sm:$0xf] %vm2199, %v1983
      %2241 = vst.msk [vmem:[%s172 + $0xa4] sm:$0xf] %vm2199, %v1984
      %2242 = vst.msk [vmem:[%s172 + $0xa8] sm:$0xf] %vm2199, %v1985
      %2243 = vst.msk [vmem:[%s172 + $0xac] sm:$0xf] %vm2199, %v1986
      %2244 = vst.msk [vmem:[%s172 + $0xb0] sm:$0xf] %vm2199, %v1987
      %2245 = vst.msk [vmem:[%s172 + $0xb4] sm:$0xf] %vm2199, %v1988
      %2246 = vst.msk [vmem:[%s172 + $0xb8] sm:$0xf] %vm2199, %v1989
      %2247 = vst.msk [vmem:[%s172 + $0xbc] sm:$0xf] %vm2199, %v1990
      %2248 = vst.msk [vmem:[%s172 + $0xc0] sm:$0xf] %vm2199, %v1991
      %2249 = vst.msk [vmem:[%s172 + $0xc4] sm:$0xf] %vm2199, %v1992
      %2250 = vst.msk [vmem:[%s172 + $0xc8] sm:$0xf] %vm2199, %v1993
      %2251 = vst.msk [vmem:[%s172 + $0xcc] sm:$0xf] %vm2199, %v1994
      %2252 = vst.msk [vmem:[%s172 + $0xd0] sm:$0xf] %vm2199, %v1995
      %2253 = vst.msk [vmem:[%s172 + $0xd4] sm:$0xf] %vm2199, %v1996
      %2254 = vst.msk [vmem:[%s172 + $0xd8] sm:$0xf] %vm2199, %v1997
      %2255 = vst.msk [vmem:[%s172 + $0xdc] sm:$0xf] %vm2199, %v1998
      %2256 = vst.msk [vmem:[%s172 + $0xe0] sm:$0xf] %vm2199, %v1999
      %2257 = vst.msk [vmem:[%s172 + $0xe4] sm:$0xf] %vm2199, %v2000
      %2258 = vst.msk [vmem:[%s172 + $0xe8] sm:$0xf] %vm2199, %v2001
      %2259 = vst.msk [vmem:[%s172 + $0xec] sm:$0xf] %vm2199, %v2002
      %2260 = vst.msk [vmem:[%s172 + $0xf0] sm:$0xf] %vm2199, %v2003
      %2261 = vst.msk [vmem:[%s172 + $0xf4] sm:$0xf] %vm2199, %v2004
      %2262 = vst.msk [vmem:[%s172 + $0xf8] sm:$0xf] %vm2199, %v2005
      %2263 = vst.msk [vmem:[%s172 + $0xfc] sm:$0xf] %vm2199, %v2006
      %2264 = vst.msk [vmem:[%s172 + $0x100] sm:$0xf] %vm2199, %v2007
      %2265 = vst.msk [vmem:[%s172 + $0x104] sm:$0xf] %vm2199, %v2008
      %2266 = vst.msk [vmem:[%s172 + $0x108] sm:$0xf] %vm2199, %v2009
      %2267 = vst.msk [vmem:[%s172 + $0x10c] sm:$0xf] %vm2199, %v2010
      %2268 = vst.msk [vmem:[%s172 + $0x110] sm:$0xf] %vm2199, %v2011
      %2269 = vst.msk [vmem:[%s172 + $0x114] sm:$0xf] %vm2199, %v2012
      %2270 = vst.msk [vmem:[%s172 + $0x118] sm:$0xf] %vm2199, %v2013
      %2271 = vst.msk [vmem:[%s172 + $0x11c] sm:$0xf] %vm2199, %v2014
      %2272 = vst.msk [vmem:[%s172 + $0x120] sm:$0xf] %vm2199, %v2015
      %2273 = vst.msk [vmem:[%s172 + $0x124] sm:$0xf] %vm2199, %v2016
      %2274 = vst.msk [vmem:[%s172 + $0x128] sm:$0xf] %vm2199, %v2017
      %2275 = vst.msk [vmem:[%s172 + $0x12c] sm:$0xf] %vm2199, %v2018
      %2276 = vst.msk [vmem:[%s172 + $0x130] sm:$0xf] %vm2199, %v2019
      %2277 = vst.msk [vmem:[%s172 + $0x134] sm:$0xf] %vm2199, %v2020
      %2278 = vst.msk [vmem:[%s172 + $0x138] sm:$0xf] %vm2199, %v2021
      %2279 = vst.msk [vmem:[%s172 + $0x13c] sm:$0xf] %vm2199, %v2022
      %2280 = vst.msk [vmem:[%s172 + $0x140] sm:$0xf] %vm2199, %v2023
      %2281 = vst.msk [vmem:[%s172 + $0x144] sm:$0xf] %vm2199, %v2024
      %2282 = vst.msk [vmem:[%s172 + $0x148] sm:$0xf] %vm2199, %v2025
      %2283 = vst.msk [vmem:[%s172 + $0x14c] sm:$0xf] %vm2199, %v2026
      %2284 = vst.msk [vmem:[%s172 + $0x150] sm:$0xf] %vm2199, %v2027
      %2285 = vst.msk [vmem:[%s172 + $0x154] sm:$0xf] %vm2199, %v2028
      %2286 = vst.msk [vmem:[%s172 + $0x158] sm:$0xf] %vm2199, %v2029
      %2287 = vst.msk [vmem:[%s172 + $0x15c] sm:$0xf] %vm2199, %v2030
      %2288 = vst.msk [vmem:[%s172 + $0x160] sm:$0xf] %vm2199, %v2031
      %2289 = vst.msk [vmem:[%s172 + $0x164] sm:$0xf] %vm2199, %v2032
      %2290 = vst.msk [vmem:[%s172 + $0x168] sm:$0xf] %vm2199, %v2033
      %2291 = vst.msk [vmem:[%s172 + $0x16c] sm:$0xf] %vm2199, %v2034
      %2292 = vst.msk [vmem:[%s172 + $0x170] sm:$0xf] %vm2199, %v2035
      %2293 = vst.msk [vmem:[%s172 + $0x174] sm:$0xf] %vm2199, %v2036
      %2294 = vst.msk [vmem:[%s172 + $0x178] sm:$0xf] %vm2199, %v2037
      %2295 = vst.msk [vmem:[%s172 + $0x17c] sm:$0xf] %vm2199, %v2038
      %2296 = vst.msk [vmem:[%s172 + $0x180] sm:$0xf] %vm2199, %v2039
      %2297 = vst.msk [vmem:[%s172 + $0x184] sm:$0xf] %vm2199, %v2040
      %2298 = vst.msk [vmem:[%s172 + $0x188] sm:$0xf] %vm2199, %v2041
      %2299 = vst.msk [vmem:[%s172 + $0x18c] sm:$0xf] %vm2199, %v2042
      %2300 = vst.msk [vmem:[%s172 + $0x190] sm:$0xf] %vm2199, %v2043
      %2301 = vst.msk [vmem:[%s172 + $0x194] sm:$0xf] %vm2199, %v2044
      %2302 = vst.msk [vmem:[%s172 + $0x198] sm:$0xf] %vm2199, %v2045
      %2303 = vst.msk [vmem:[%s172 + $0x19c] sm:$0xf] %vm2199, %v2046
      %2304 = vst.msk [vmem:[%s172 + $0x1a0] sm:$0xf] %vm2199, %v2047
      %2305 = vst.msk [vmem:[%s172 + $0x1a4] sm:$0xf] %vm2199, %v2048
      %2306 = vst.msk [vmem:[%s172 + $0x1a8] sm:$0xf] %vm2199, %v2049
      %2307 = vst.msk [vmem:[%s172 + $0x1ac] sm:$0xf] %vm2199, %v2050
      %2308 = vst.msk [vmem:[%s172 + $0x1b0] sm:$0xf] %vm2199, %v2051
      %2309 = vst.msk [vmem:[%s172 + $0x1b4] sm:$0xf] %vm2199, %v2052
      %2310 = vst.msk [vmem:[%s172 + $0x1b8] sm:$0xf] %vm2199, %v2053
      %2311 = vst.msk [vmem:[%s172 + $0x1bc] sm:$0xf] %vm2199, %v2054
      %2312 = vst.msk [vmem:[%s172 + $0x1c0] sm:$0xf] %vm2199, %v2055
      %2313 = vst.msk [vmem:[%s172 + $0x1c4] sm:$0xf] %vm2199, %v2056
      %2314 = vst.msk [vmem:[%s172 + $0x1c8] sm:$0xf] %vm2199, %v2057
      %2315 = vst.msk [vmem:[%s172 + $0x1cc] sm:$0xf] %vm2199, %v2058
      %2316 = vst.msk [vmem:[%s172 + $0x1d0] sm:$0xf] %vm2199, %v2059
      %2317 = vst.msk [vmem:[%s172 + $0x1d4] sm:$0xf] %vm2199, %v2060
      %2318 = vst.msk [vmem:[%s172 + $0x1d8] sm:$0xf] %vm2199, %v2061
      %2319 = vst.msk [vmem:[%s172 + $0x1dc] sm:$0xf] %vm2199, %v2062
      %2320 = vst.msk [vmem:[%s172 + $0x1e0] sm:$0xf] %vm2199, %v2063
      %2321 = vst.msk [vmem:[%s172 + $0x1e4] sm:$0xf] %vm2199, %v2064
      %2322 = vst.msk [vmem:[%s172 + $0x1e8] sm:$0xf] %vm2199, %v2065
      %2323 = vst.msk [vmem:[%s172 + $0x1ec] sm:$0xf] %vm2199, %v2066
      %2324 = vst.msk [vmem:[%s172 + $0x1f0] sm:$0xf] %vm2199, %v2067
      %2325 = vst.msk [vmem:[%s172 + $0x1f4] sm:$0xf] %vm2199, %v2068
      %2326 = vst.msk [vmem:[%s172 + $0x1f8] sm:$0xf] %vm2199, %v2069
      %2327 = vst.msk [vmem:[%s172 + $0x1fc] sm:$0xf] %vm2199, %v2070
      %s2328 = smul.u32 128, %s14
      %p2329 = scmp.lt.s32.totalorder %s2328, 255
      %s2330 = scalar_select %p2329, %s2328, 255
      %s2331 = smul.addr %s2330, 4
      %s2332 = scalar_lea.vmem %s3, %s2331
      // Predicated region
      $region33: #{encoder_d_forward.3} parent=31 // pred_check
        %p2333 = pneg %p100
      $region34: #{encoder_d_forward.3} parent=31 // pred_check_branch
        %2335 = sbr.rel (%p2333) target = $region36
      $region35: #{encoder_d_forward.3} parent=31 // pred_region
        %s2336 = smul.u32 128, %s14
      $region36: #{encoder_d_forward.3} parent=31 // pred_fallthru
        _
    $region32: #{encoder_d_forward.3} parent=5 // pred_fallthru
      _
    %p2337 = scmp.le.s32.totalorder 2, %s9
    // Predicated region
    $region37: #{encoder_d_forward.3} parent=5 // pred_check
      %p2338 = pneg %p2337
    $region38: #{encoder_d_forward.3} parent=5 // pred_check_branch
      %2340 = sbr.rel (%p2338) target = $region40
    $region39: #{encoder_d_forward.3} parent=5 // pred_region
      %s2341 = ssub.s32 %s9, 2
      // Predicated region
      $region41: #{encoder_d_forward.3} parent=39 // pred_check
        %p2342 = pneg %p106
      $region42: #{encoder_d_forward.3} parent=39 // pred_check_branch
        %2344 = sbr.rel (%p2342) target = $region44
      $region43: #{encoder_d_forward.3} parent=39 // pred_region
        %s2345 = smul.u32 128, %s15
        %p2346 = scmp.lt.s32.totalorder %s2345, 255
        %s2347 = scalar_select %p2346, %s2345, 255
        %s2348 = smul.addr %s2347, 4
        %s2349 = scalar_lea.vmem %s3, %s2348
      $region44: #{encoder_d_forward.3} parent=39 // pred_fallthru
        _
    $region40: #{encoder_d_forward.3} parent=5 // pred_fallthru
      _
  $region6: #{encoder_d_forward.3} parent=0 // loop_footer
    %s13 = sadd.s32 1, %s9
  $region7: #{encoder_d_forward.3} parent=0 // loop_footer_branch
    %8 = sbr.rel target = $region3
  $region8: #{encoder_d_forward.3} parent=0 // loop_exit
    _

</llo_original>
